<compile_context>
chip_gen: v7x
topology: tpu7x:2x2x1
jax: 0.10.0
libtpu: 0.0.40
codegen_flags: <defaults>
</compile_context>

<pallas_src>
import functools

import jax
import jax.numpy as jnp
from jax import lax
from jax.experimental import pallas as pl
from jax.experimental.pallas import tpu as pltpu

EPS = 1e-5  # torch.nn.InstanceNorm2d default eps


def _round_up(x, m):
    return (x + m - 1) // m * m


def _resblock_kernel(x_ref, w1_ref, w2_ref, p_ref, mask_ref, o_ref,
                     *, H, W, Wp, L, margin):
    """One batch element per grid step, everything lane-dense (C, L)."""
    C = x_ref.shape[1]
    inv_hw = jnp.float32(1.0 / (H * W))

    x2d = x_ref[0].astype(jnp.float32)        # (C, L)  zero-padded image layout
    mask = mask_ref[...]                       # (1, L)  1.0 at the H*W interior pixels
    w1 = w1_ref[...]                           # (C, 9C) column = (dy*3+dx)*Cin + cin
    w2 = w2_ref[...]
    prm = p_ref[...]                           # (C, 4)  [g1, bt1, g2, bt2]
    zpad = jnp.zeros((C, margin), jnp.float32)

    def conv3x3(src, w):
        # src: (C, L), already zero on the padding ring; each tap is a static
        # lane offset into the padded layout -> no masks, no rolls.
        wide = jnp.concatenate([zpad, src, zpad], axis=1)       # (C, L + 2*margin)
        acc = jnp.zeros((C, L), jnp.float32)
        for dy in range(3):
            for dx in range(3):
                tap = dy * 3 + dx
                s = (dy - 1) * Wp + (dx - 1)
                patch = wide[:, margin + s:margin + s + L]      # (Cin, L)
                acc = acc + jnp.dot(w[:, tap * C:(tap + 1) * C], patch,
                                    preferred_element_type=jnp.float32)
        return acc

    def instance_norm(y, g, b):
        # single-pass stats over the interior pixels only (padding masked out)
        ym = y * mask
        s1 = jnp.sum(ym, axis=-1, keepdims=True)
        s2 = jnp.sum(ym * ym, axis=-1, keepdims=True)
        mean = s1 * inv_hw
        var = s2 * inv_hw - mean * mean
        return (y - mean) * lax.rsqrt(var + EPS) * g + b

    y = conv3x3(x2d, w1)
    y = instance_norm(y, prm[:, 0:1], prm[:, 1:2])
    y = jnp.maximum(y, 0.0) * mask             # ReLU + re-zero padding ring for conv2

    z = conv3x3(y, w2)
    z = instance_norm(z, prm[:, 2:3], prm[:, 3:4])

    o_ref[0] = (z + x2d).astype(o_ref.dtype)   # residual add (x is 0 on the ring)


def residual_block(x_nchw, params):
    """Pallas ResidualBlock forward. x_nchw: (N, C, H, W) float32 (PyTorch layout)."""
    N, C, H, W = x_nchw.shape
    Hp, Wp = H + 2, W + 2
    L = _round_up(Hp * Wp, 128)        # lane-dense flattened padded image
    margin = _round_up(Wp + 1, 128)    # slack so every tap is an in-bounds static slice

    # Zero-pad spatially (the conv padding ring), flatten, pad lanes to L.
    x_pad = jnp.pad(x_nchw, ((0, 0), (0, 0), (1, 1), (1, 1)))
    x_flat = x_pad.reshape(N, C, Hp * Wp)
    x_flat = jnp.pad(x_flat, ((0, 0), (0, 0), (0, L - Hp * Wp)))

    # Interior-pixel mask, built once on the host side.
    idx = jnp.arange(Hp * Wp)
    r, c = idx // Wp, idx % Wp
    interior = (r >= 1) & (r <= H) & (c >= 1) & (c <= W)
    mask = jnp.pad(interior.astype(jnp.float32), (0, L - Hp * Wp)).reshape(1, L)

    # PyTorch conv weight (Cout, Cin, 3, 3) -> (Cout, 9*Cin), col = (dy*3+dx)*Cin + cin.
    w1 = jnp.transpose(params["w1"], (0, 2, 3, 1)).reshape(C, 9 * C)
    w2 = jnp.transpose(params["w2"], (0, 2, 3, 1)).reshape(C, 9 * C)
    # Conv biases b1/b2 are intentionally NOT passed: they cancel in InstanceNorm.
    pvec = jnp.stack([params["g1"], params["bt1"], params["g2"], params["bt2"]],
                     axis=1)            # (C, 4)

    kernel = functools.partial(_resblock_kernel, H=H, W=W, Wp=Wp, L=L, margin=margin)

    out_flat = pl.pallas_call(
        kernel,
        out_shape=jax.ShapeDtypeStruct((N, C, L), x_nchw.dtype),
        grid_spec=pl.GridSpec(
            grid=(N,),
            in_specs=[
                pl.BlockSpec((1, C, L), lambda b: (b, 0, 0)),   # x (padded layout)
                pl.BlockSpec((C, 9 * C), lambda b: (0, 0)),     # conv1 weights
                pl.BlockSpec((C, 9 * C), lambda b: (0, 0)),     # conv2 weights
                pl.BlockSpec((C, 4), lambda b: (0, 0)),         # packed IN affine params
                pl.BlockSpec((1, L), lambda b: (0, 0)),         # interior mask
            ],
            out_specs=pl.BlockSpec((1, C, L), lambda b: (b, 0, 0)),
        ),
        compiler_params=pltpu.CompilerParams(
            dimension_semantics=("parallel",),
            vmem_limit_bytes=32 * 1024 * 1024,
        ),
    )(x_flat, w1, w2, pvec, mask)

    out = out_flat[:, :, :Hp * Wp].reshape(N, C, Hp, Wp)
    return out[:, :, 1:H + 1, 1:W + 1]


def ref_residual_block(x, params):
    """Pure-JAX reference (NCHW), mirrors the PyTorch module exactly (incl. biases)."""
    def conv(x, w, b):
        y = lax.conv_general_dilated(x, w, (1, 1), ((1, 1), (1, 1)),
                                     dimension_numbers=("NCHW", "OIHW", "NCHW"))
        return y + b[None, :, None, None]

    def inorm(x, g, bt):
        mean = jnp.mean(x, axis=(2, 3), keepdims=True)
        var = jnp.mean(jnp.square(x - mean), axis=(2, 3), keepdims=True)
        return (x - mean) * lax.rsqrt(var + EPS) * g[None, :, None, None] \
            + bt[None, :, None, None]

    y = conv(x, params["w1"], params["b1"])
    y = inorm(y, params["g1"], params["bt1"])
    y = jnp.maximum(y, 0.0)
    z = conv(y, params["w2"], params["b2"])
    z = inorm(z, params["g2"], params["bt2"])
    return z + x


if __name__ == "__main__":
    N, C, H, W = 2, 4, 16, 16
    key = jax.random.PRNGKey(0)
    ks = jax.random.split(key, 9)

    params = {
        "w1": 0.1 * jax.random.normal(ks[0], (C, C, 3, 3), jnp.float32),
        "b1": 0.05 * jax.random.normal(ks[1], (C,), jnp.float32),
        "g1": 1.0 + 0.1 * jax.random.normal(ks[2], (C,), jnp.float32),
        "bt1": 0.1 * jax.random.normal(ks[3], (C,), jnp.float32),
        "w2": 0.1 * jax.random.normal(ks[4], (C, C, 3, 3), jnp.float32),
        "b2": 0.05 * jax.random.normal(ks[5], (C,), jnp.float32),
        "g2": 1.0 + 0.1 * jax.random.normal(ks[6], (C,), jnp.float32),
        "bt2": 0.1 * jax.random.normal(ks[7], (C,), jnp.float32),
    }
    x = jax.random.normal(ks[8], (N, C, H, W), jnp.float32)

    out = jax.block_until_ready(residual_block(x, params))
    ref = jax.block_until_ready(ref_residual_block(x, params))

    assert out.shape == x.shape and out.dtype == x.dtype
    assert jnp.allclose(out, ref, atol=1e-4, rtol=1e-4), \
        f"max abs err = {jnp.max(jnp.abs(out - ref))}"
    print("KERNEL_OK")
</pallas_src>

<mosaic_0001>
module attributes {stable_mosaic.version = 11 : i64} {
  func.func @_resblock_kernel(%arg0: i32, %arg1: memref<1x4x384xf32, #tpu.memory_space<vmem>>, %arg2: memref<4x36xf32, #tpu.memory_space<vmem>>, %arg3: memref<4x36xf32, #tpu.memory_space<vmem>>, %arg4: memref<4x4xf32, #tpu.memory_space<vmem>>, %arg5: memref<1x384xf32, #tpu.memory_space<vmem>>, %arg6: memref<1x4x384xf32, #tpu.memory_space<vmem>>) attributes {dimension_semantics = [#tpu.dimension_semantics<parallel>], iteration_bounds = array<i64: 2>, scalar_prefetch = 0 : i64, scratch_operands = 0 : i64, tpu.core_type = #tpu.core_type<tc>, window_params = [{transform_indices = @transform_0, window_bounds = array<i64: 1, 4, 384>}, {pipeline_mode = #tpu.pipeline_mode<synchronous>, transform_indices = @transform_1, window_bounds = array<i64: 4, 36>}, {pipeline_mode = #tpu.pipeline_mode<synchronous>, transform_indices = @transform_2, window_bounds = array<i64: 4, 36>}, {pipeline_mode = #tpu.pipeline_mode<synchronous>, transform_indices = @transform_3, window_bounds = array<i64: 4, 4>}, {pipeline_mode = #tpu.pipeline_mode<synchronous>, transform_indices = @transform_4, window_bounds = array<i64: 1, 384>}, {transform_indices = @transform_5, window_bounds = array<i64: 1, 4, 384>}]} {
    %c0 = arith.constant 0 : index
    %c0_0 = arith.constant 0 : index
    %c0_1 = arith.constant 0 : index
    %0 = vector.load %arg1[%c0, %c0_0, %c0_1] : memref<1x4x384xf32, #tpu.memory_space<vmem>>, vector<1x4x384xf32>
    %1 = vector.shape_cast %0 : vector<1x4x384xf32> to vector<4x384xf32>
    %c0_2 = arith.constant 0 : index
    %c0_3 = arith.constant 0 : index
    %2 = vector.load %arg5[%c0_2, %c0_3] : memref<1x384xf32, #tpu.memory_space<vmem>>, vector<1x384xf32>
    %c0_4 = arith.constant 0 : index
    %c0_5 = arith.constant 0 : index
    %3 = vector.load %arg2[%c0_4, %c0_5] : memref<4x36xf32, #tpu.memory_space<vmem>>, vector<4x36xf32>
    %c0_6 = arith.constant 0 : index
    %c0_7 = arith.constant 0 : index
    %4 = vector.load %arg3[%c0_6, %c0_7] : memref<4x36xf32, #tpu.memory_space<vmem>>, vector<4x36xf32>
    %c0_8 = arith.constant 0 : index
    %c0_9 = arith.constant 0 : index
    %5 = vector.load %arg4[%c0_8, %c0_9] : memref<4x4xf32, #tpu.memory_space<vmem>>, vector<4x4xf32>
    %cst = arith.constant 0.000000e+00 : f32
    %6 = vector.broadcast %cst : f32 to vector<4x128xf32>
    %7 = tpu.concatenate %6, %1, %6 in 1 : vector<4x128xf32>, vector<4x384xf32>, vector<4x128xf32> -> vector<4x640xf32>
    %cst_10 = arith.constant 0.000000e+00 : f32
    %8 = vector.broadcast %cst_10 : f32 to vector<4x384xf32>
    %9 = vector.extract_strided_slice %7 {offsets = [0, 109], sizes = [4, 384], strides = [1, 1]} : vector<4x640xf32> to vector<4x384xf32>
    %10 = vector.extract_strided_slice %3 {offsets = [0, 0], sizes = [4, 4], strides = [1, 1]} : vector<4x36xf32> to vector<4x4xf32>
    %cst_11 = arith.constant dense<0.000000e+00> : vector<4x384xf32>
    %11 = tpu.matmul %10, %9, %cst_11 {dimension_numbers = #tpu.dot_dimension_numbers<[1], [0], [0], [1], [0, 0, 1, 1], [], []>} : vector<4x4xf32>, vector<4x384xf32>, vector<4x384xf32> -> vector<4x384xf32>
    %12 = arith.addf %8, %11 : vector<4x384xf32>
    %13 = vector.extract_strided_slice %7 {offsets = [0, 110], sizes = [4, 384], strides = [1, 1]} : vector<4x640xf32> to vector<4x384xf32>
    %14 = vector.extract_strided_slice %3 {offsets = [0, 4], sizes = [4, 4], strides = [1, 1]} : vector<4x36xf32> to vector<4x4xf32>
    %cst_12 = arith.constant dense<0.000000e+00> : vector<4x384xf32>
    %15 = tpu.matmul %14, %13, %cst_12 {dimension_numbers = #tpu.dot_dimension_numbers<[1], [0], [0], [1], [0, 0, 1, 1], [], []>} : vector<4x4xf32>, vector<4x384xf32>, vector<4x384xf32> -> vector<4x384xf32>
    %16 = arith.addf %12, %15 : vector<4x384xf32>
    %17 = vector.extract_strided_slice %7 {offsets = [0, 111], sizes = [4, 384], strides = [1, 1]} : vector<4x640xf32> to vector<4x384xf32>
    %18 = vector.extract_strided_slice %3 {offsets = [0, 8], sizes = [4, 4], strides = [1, 1]} : vector<4x36xf32> to vector<4x4xf32>
    %cst_13 = arith.constant dense<0.000000e+00> : vector<4x384xf32>
    %19 = tpu.matmul %18, %17, %cst_13 {dimension_numbers = #tpu.dot_dimension_numbers<[1], [0], [0], [1], [0, 0, 1, 1], [], []>} : vector<4x4xf32>, vector<4x384xf32>, vector<4x384xf32> -> vector<4x384xf32>
    %20 = arith.addf %16, %19 : vector<4x384xf32>
    %21 = vector.extract_strided_slice %7 {offsets = [0, 127], sizes = [4, 384], strides = [1, 1]} : vector<4x640xf32> to vector<4x384xf32>
    %22 = vector.extract_strided_slice %3 {offsets = [0, 12], sizes = [4, 4], strides = [1, 1]} : vector<4x36xf32> to vector<4x4xf32>
    %cst_14 = arith.constant dense<0.000000e+00> : vector<4x384xf32>
    %23 = tpu.matmul %22, %21, %cst_14 {dimension_numbers = #tpu.dot_dimension_numbers<[1], [0], [0], [1], [0, 0, 1, 1], [], []>} : vector<4x4xf32>, vector<4x384xf32>, vector<4x384xf32> -> vector<4x384xf32>
    %24 = arith.addf %20, %23 : vector<4x384xf32>
    %25 = vector.extract_strided_slice %7 {offsets = [0, 128], sizes = [4, 384], strides = [1, 1]} : vector<4x640xf32> to vector<4x384xf32>
    %26 = vector.extract_strided_slice %3 {offsets = [0, 16], sizes = [4, 4], strides = [1, 1]} : vector<4x36xf32> to vector<4x4xf32>
    %cst_15 = arith.constant dense<0.000000e+00> : vector<4x384xf32>
    %27 = tpu.matmul %26, %25, %cst_15 {dimension_numbers = #tpu.dot_dimension_numbers<[1], [0], [0], [1], [0, 0, 1, 1], [], []>} : vector<4x4xf32>, vector<4x384xf32>, vector<4x384xf32> -> vector<4x384xf32>
    %28 = arith.addf %24, %27 : vector<4x384xf32>
    %29 = vector.extract_strided_slice %7 {offsets = [0, 129], sizes = [4, 384], strides = [1, 1]} : vector<4x640xf32> to vector<4x384xf32>
    %30 = vector.extract_strided_slice %3 {offsets = [0, 20], sizes = [4, 4], strides = [1, 1]} : vector<4x36xf32> to vector<4x4xf32>
    %cst_16 = arith.constant dense<0.000000e+00> : vector<4x384xf32>
    %31 = tpu.matmul %30, %29, %cst_16 {dimension_numbers = #tpu.dot_dimension_numbers<[1], [0], [0], [1], [0, 0, 1, 1], [], []>} : vector<4x4xf32>, vector<4x384xf32>, vector<4x384xf32> -> vector<4x384xf32>
    %32 = arith.addf %28, %31 : vector<4x384xf32>
    %33 = vector.extract_strided_slice %7 {offsets = [0, 145], sizes = [4, 384], strides = [1, 1]} : vector<4x640xf32> to vector<4x384xf32>
    %34 = vector.extract_strided_slice %3 {offsets = [0, 24], sizes = [4, 4], strides = [1, 1]} : vector<4x36xf32> to vector<4x4xf32>
    %cst_17 = arith.constant dense<0.000000e+00> : vector<4x384xf32>
    %35 = tpu.matmul %34, %33, %cst_17 {dimension_numbers = #tpu.dot_dimension_numbers<[1], [0], [0], [1], [0, 0, 1, 1], [], []>} : vector<4x4xf32>, vector<4x384xf32>, vector<4x384xf32> -> vector<4x384xf32>
    %36 = arith.addf %32, %35 : vector<4x384xf32>
    %37 = vector.extract_strided_slice %7 {offsets = [0, 146], sizes = [4, 384], strides = [1, 1]} : vector<4x640xf32> to vector<4x384xf32>
    %38 = vector.extract_strided_slice %3 {offsets = [0, 28], sizes = [4, 4], strides = [1, 1]} : vector<4x36xf32> to vector<4x4xf32>
    %cst_18 = arith.constant dense<0.000000e+00> : vector<4x384xf32>
    %39 = tpu.matmul %38, %37, %cst_18 {dimension_numbers = #tpu.dot_dimension_numbers<[1], [0], [0], [1], [0, 0, 1, 1], [], []>} : vector<4x4xf32>, vector<4x384xf32>, vector<4x384xf32> -> vector<4x384xf32>
    %40 = arith.addf %36, %39 : vector<4x384xf32>
    %41 = vector.extract_strided_slice %7 {offsets = [0, 147], sizes = [4, 384], strides = [1, 1]} : vector<4x640xf32> to vector<4x384xf32>
    %42 = vector.extract_strided_slice %3 {offsets = [0, 32], sizes = [4, 4], strides = [1, 1]} : vector<4x36xf32> to vector<4x4xf32>
    %cst_19 = arith.constant dense<0.000000e+00> : vector<4x384xf32>
    %43 = tpu.matmul %42, %41, %cst_19 {dimension_numbers = #tpu.dot_dimension_numbers<[1], [0], [0], [1], [0, 0, 1, 1], [], []>} : vector<4x4xf32>, vector<4x384xf32>, vector<4x384xf32> -> vector<4x384xf32>
    %44 = arith.addf %40, %43 : vector<4x384xf32>
    %45 = vector.extract_strided_slice %5 {offsets = [0, 0], sizes = [4, 1], strides = [1, 1]} : vector<4x4xf32> to vector<4x1xf32>
    %46 = vector.extract_strided_slice %5 {offsets = [0, 1], sizes = [4, 1], strides = [1, 1]} : vector<4x4xf32> to vector<4x1xf32>
    %47 = vector.broadcast %2 : vector<1x384xf32> to vector<4x384xf32>
    %48 = arith.mulf %44, %47 : vector<4x384xf32>
    %cst_20 = arith.constant dense<0.000000e+00> : vector<4xf32>
    %49 = vector.multi_reduction <add>, %48, %cst_20 [1] : vector<4x384xf32> to vector<4xf32>
    %50 = vector.shape_cast %49 : vector<4xf32> to vector<4x1xf32>
    %51 = arith.mulf %48, %48 : vector<4x384xf32>
    %cst_21 = arith.constant dense<0.000000e+00> : vector<4xf32>
    %52 = vector.multi_reduction <add>, %51, %cst_21 [1] : vector<4x384xf32> to vector<4xf32>
    %53 = vector.shape_cast %52 : vector<4xf32> to vector<4x1xf32>
    %cst_22 = arith.constant 3.906250e-03 : f32
    %54 = vector.broadcast %cst_22 : f32 to vector<4x1xf32>
    %55 = arith.mulf %50, %54 : vector<4x1xf32>
    %cst_23 = arith.constant 3.906250e-03 : f32
    %56 = vector.broadcast %cst_23 : f32 to vector<4x1xf32>
    %57 = arith.mulf %53, %56 : vector<4x1xf32>
    %58 = arith.mulf %55, %55 : vector<4x1xf32>
    %59 = arith.subf %57, %58 : vector<4x1xf32>
    %60 = vector.broadcast %55 : vector<4x1xf32> to vector<4x384xf32>
    %61 = arith.subf %44, %60 : vector<4x384xf32>
    %cst_24 = arith.constant 9.99999974E-6 : f32
    %62 = vector.broadcast %cst_24 : f32 to vector<4x1xf32>
    %63 = arith.addf %59, %62 : vector<4x1xf32>
    %64 = math.rsqrt %63 : vector<4x1xf32>
    %65 = vector.broadcast %64 : vector<4x1xf32> to vector<4x384xf32>
    %66 = arith.mulf %61, %65 : vector<4x384xf32>
    %67 = vector.broadcast %45 : vector<4x1xf32> to vector<4x384xf32>
    %68 = arith.mulf %66, %67 : vector<4x384xf32>
    %69 = vector.broadcast %46 : vector<4x1xf32> to vector<4x384xf32>
    %70 = arith.addf %68, %69 : vector<4x384xf32>
    %cst_25 = arith.constant 0.000000e+00 : f32
    %71 = vector.broadcast %cst_25 : f32 to vector<4x384xf32>
    %72 = arith.maximumf %70, %71 : vector<4x384xf32>
    %73 = vector.broadcast %2 : vector<1x384xf32> to vector<4x384xf32>
    %74 = arith.mulf %72, %73 : vector<4x384xf32>
    %75 = tpu.concatenate %6, %74, %6 in 1 : vector<4x128xf32>, vector<4x384xf32>, vector<4x128xf32> -> vector<4x640xf32>
    %cst_26 = arith.constant 0.000000e+00 : f32
    %76 = vector.broadcast %cst_26 : f32 to vector<4x384xf32>
    %77 = vector.extract_strided_slice %75 {offsets = [0, 109], sizes = [4, 384], strides = [1, 1]} : vector<4x640xf32> to vector<4x384xf32>
    %78 = vector.extract_strided_slice %4 {offsets = [0, 0], sizes = [4, 4], strides = [1, 1]} : vector<4x36xf32> to vector<4x4xf32>
    %cst_27 = arith.constant dense<0.000000e+00> : vector<4x384xf32>
    %79 = tpu.matmul %78, %77, %cst_27 {dimension_numbers = #tpu.dot_dimension_numbers<[1], [0], [0], [1], [0, 0, 1, 1], [], []>} : vector<4x4xf32>, vector<4x384xf32>, vector<4x384xf32> -> vector<4x384xf32>
    %80 = arith.addf %76, %79 : vector<4x384xf32>
    %81 = vector.extract_strided_slice %75 {offsets = [0, 110], sizes = [4, 384], strides = [1, 1]} : vector<4x640xf32> to vector<4x384xf32>
    %82 = vector.extract_strided_slice %4 {offsets = [0, 4], sizes = [4, 4], strides = [1, 1]} : vector<4x36xf32> to vector<4x4xf32>
    %cst_28 = arith.constant dense<0.000000e+00> : vector<4x384xf32>
    %83 = tpu.matmul %82, %81, %cst_28 {dimension_numbers = #tpu.dot_dimension_numbers<[1], [0], [0], [1], [0, 0, 1, 1], [], []>} : vector<4x4xf32>, vector<4x384xf32>, vector<4x384xf32> -> vector<4x384xf32>
    %84 = arith.addf %80, %83 : vector<4x384xf32>
    %85 = vector.extract_strided_slice %75 {offsets = [0, 111], sizes = [4, 384], strides = [1, 1]} : vector<4x640xf32> to vector<4x384xf32>
    %86 = vector.extract_strided_slice %4 {offsets = [0, 8], sizes = [4, 4], strides = [1, 1]} : vector<4x36xf32> to vector<4x4xf32>
    %cst_29 = arith.constant dense<0.000000e+00> : vector<4x384xf32>
    %87 = tpu.matmul %86, %85, %cst_29 {dimension_numbers = #tpu.dot_dimension_numbers<[1], [0], [0], [1], [0, 0, 1, 1], [], []>} : vector<4x4xf32>, vector<4x384xf32>, vector<4x384xf32> -> vector<4x384xf32>
    %88 = arith.addf %84, %87 : vector<4x384xf32>
    %89 = vector.extract_strided_slice %75 {offsets = [0, 127], sizes = [4, 384], strides = [1, 1]} : vector<4x640xf32> to vector<4x384xf32>
    %90 = vector.extract_strided_slice %4 {offsets = [0, 12], sizes = [4, 4], strides = [1, 1]} : vector<4x36xf32> to vector<4x4xf32>
    %cst_30 = arith.constant dense<0.000000e+00> : vector<4x384xf32>
    %91 = tpu.matmul %90, %89, %cst_30 {dimension_numbers = #tpu.dot_dimension_numbers<[1], [0], [0], [1], [0, 0, 1, 1], [], []>} : vector<4x4xf32>, vector<4x384xf32>, vector<4x384xf32> -> vector<4x384xf32>
    %92 = arith.addf %88, %91 : vector<4x384xf32>
    %93 = vector.extract_strided_slice %75 {offsets = [0, 128], sizes = [4, 384], strides = [1, 1]} : vector<4x640xf32> to vector<4x384xf32>
    %94 = vector.extract_strided_slice %4 {offsets = [0, 16], sizes = [4, 4], strides = [1, 1]} : vector<4x36xf32> to vector<4x4xf32>
    %cst_31 = arith.constant dense<0.000000e+00> : vector<4x384xf32>
    %95 = tpu.matmul %94, %93, %cst_31 {dimension_numbers = #tpu.dot_dimension_numbers<[1], [0], [0], [1], [0, 0, 1, 1], [], []>} : vector<4x4xf32>, vector<4x384xf32>, vector<4x384xf32> -> vector<4x384xf32>
    %96 = arith.addf %92, %95 : vector<4x384xf32>
    %97 = vector.extract_strided_slice %75 {offsets = [0, 129], sizes = [4, 384], strides = [1, 1]} : vector<4x640xf32> to vector<4x384xf32>
    %98 = vector.extract_strided_slice %4 {offsets = [0, 20], sizes = [4, 4], strides = [1, 1]} : vector<4x36xf32> to vector<4x4xf32>
    %cst_32 = arith.constant dense<0.000000e+00> : vector<4x384xf32>
    %99 = tpu.matmul %98, %97, %cst_32 {dimension_numbers = #tpu.dot_dimension_numbers<[1], [0], [0], [1], [0, 0, 1, 1], [], []>} : vector<4x4xf32>, vector<4x384xf32>, vector<4x384xf32> -> vector<4x384xf32>
    %100 = arith.addf %96, %99 : vector<4x384xf32>
    %101 = vector.extract_strided_slice %75 {offsets = [0, 145], sizes = [4, 384], strides = [1, 1]} : vector<4x640xf32> to vector<4x384xf32>
    %102 = vector.extract_strided_slice %4 {offsets = [0, 24], sizes = [4, 4], strides = [1, 1]} : vector<4x36xf32> to vector<4x4xf32>
    %cst_33 = arith.constant dense<0.000000e+00> : vector<4x384xf32>
    %103 = tpu.matmul %102, %101, %cst_33 {dimension_numbers = #tpu.dot_dimension_numbers<[1], [0], [0], [1], [0, 0, 1, 1], [], []>} : vector<4x4xf32>, vector<4x384xf32>, vector<4x384xf32> -> vector<4x384xf32>
    %104 = arith.addf %100, %103 : vector<4x384xf32>
    %105 = vector.extract_strided_slice %75 {offsets = [0, 146], sizes = [4, 384], strides = [1, 1]} : vector<4x640xf32> to vector<4x384xf32>
    %106 = vector.extract_strided_slice %4 {offsets = [0, 28], sizes = [4, 4], strides = [1, 1]} : vector<4x36xf32> to vector<4x4xf32>
    %cst_34 = arith.constant dense<0.000000e+00> : vector<4x384xf32>
    %107 = tpu.matmul %106, %105, %cst_34 {dimension_numbers = #tpu.dot_dimension_numbers<[1], [0], [0], [1], [0, 0, 1, 1], [], []>} : vector<4x4xf32>, vector<4x384xf32>, vector<4x384xf32> -> vector<4x384xf32>
    %108 = arith.addf %104, %107 : vector<4x384xf32>
    %109 = vector.extract_strided_slice %75 {offsets = [0, 147], sizes = [4, 384], strides = [1, 1]} : vector<4x640xf32> to vector<4x384xf32>
    %110 = vector.extract_strided_slice %4 {offsets = [0, 32], sizes = [4, 4], strides = [1, 1]} : vector<4x36xf32> to vector<4x4xf32>
    %cst_35 = arith.constant dense<0.000000e+00> : vector<4x384xf32>
    %111 = tpu.matmul %110, %109, %cst_35 {dimension_numbers = #tpu.dot_dimension_numbers<[1], [0], [0], [1], [0, 0, 1, 1], [], []>} : vector<4x4xf32>, vector<4x384xf32>, vector<4x384xf32> -> vector<4x384xf32>
    %112 = arith.addf %108, %111 : vector<4x384xf32>
    %113 = vector.extract_strided_slice %5 {offsets = [0, 2], sizes = [4, 1], strides = [1, 1]} : vector<4x4xf32> to vector<4x1xf32>
    %114 = vector.extract_strided_slice %5 {offsets = [0, 3], sizes = [4, 1], strides = [1, 1]} : vector<4x4xf32> to vector<4x1xf32>
    %115 = vector.broadcast %2 : vector<1x384xf32> to vector<4x384xf32>
    %116 = arith.mulf %112, %115 : vector<4x384xf32>
    %cst_36 = arith.constant dense<0.000000e+00> : vector<4xf32>
    %117 = vector.multi_reduction <add>, %116, %cst_36 [1] : vector<4x384xf32> to vector<4xf32>
    %118 = vector.shape_cast %117 : vector<4xf32> to vector<4x1xf32>
    %119 = arith.mulf %116, %116 : vector<4x384xf32>
    %cst_37 = arith.constant dense<0.000000e+00> : vector<4xf32>
    %120 = vector.multi_reduction <add>, %119, %cst_37 [1] : vector<4x384xf32> to vector<4xf32>
    %121 = vector.shape_cast %120 : vector<4xf32> to vector<4x1xf32>
    %cst_38 = arith.constant 3.906250e-03 : f32
    %122 = vector.broadcast %cst_38 : f32 to vector<4x1xf32>
    %123 = arith.mulf %118, %122 : vector<4x1xf32>
    %cst_39 = arith.constant 3.906250e-03 : f32
    %124 = vector.broadcast %cst_39 : f32 to vector<4x1xf32>
    %125 = arith.mulf %121, %124 : vector<4x1xf32>
    %126 = arith.mulf %123, %123 : vector<4x1xf32>
    %127 = arith.subf %125, %126 : vector<4x1xf32>
    %128 = vector.broadcast %123 : vector<4x1xf32> to vector<4x384xf32>
    %129 = arith.subf %112, %128 : vector<4x384xf32>
    %cst_40 = arith.constant 9.99999974E-6 : f32
    %130 = vector.broadcast %cst_40 : f32 to vector<4x1xf32>
    %131 = arith.addf %127, %130 : vector<4x1xf32>
    %132 = math.rsqrt %131 : vector<4x1xf32>
    %133 = vector.broadcast %132 : vector<4x1xf32> to vector<4x384xf32>
    %134 = arith.mulf %129, %133 : vector<4x384xf32>
    %135 = vector.broadcast %113 : vector<4x1xf32> to vector<4x384xf32>
    %136 = arith.mulf %134, %135 : vector<4x384xf32>
    %137 = vector.broadcast %114 : vector<4x1xf32> to vector<4x384xf32>
    %138 = arith.addf %136, %137 : vector<4x384xf32>
    %139 = arith.addf %138, %1 : vector<4x384xf32>
    %c0_41 = arith.constant 0 : index
    %c0_42 = arith.constant 0 : index
    %c0_43 = arith.constant 0 : index
    %140 = vector.load %arg6[%c0_41, %c0_42, %c0_43] : memref<1x4x384xf32, #tpu.memory_space<vmem>>, vector<1x4x384xf32>
    %141 = vector.shape_cast %140 : vector<1x4x384xf32> to vector<4x384xf32>
    %142 = vector.shape_cast %139 : vector<4x384xf32> to vector<1x4x384xf32>
    tpu.vector_store %arg6[%c0_41, %c0_42, %c0_43], %142 {strides = array<i32>} : memref<1x4x384xf32, #tpu.memory_space<vmem>>, vector<1x4x384xf32>,
    return
  }
  func.func @transform_0(%arg0: i32) -> (i32, i32, i32) {
    %c0_i32 = arith.constant 0 : i32
    %c0_i32_0 = arith.constant 0 : i32
    %c0_i32_1 = arith.constant 0 : i32
    return %arg0, %c0_i32, %c0_i32_0 : i32, i32, i32
  }
  func.func @transform_1(%arg0: i32) -> (i32, i32) {
    %c0_i32 = arith.constant 0 : i32
    %c0_i32_0 = arith.constant 0 : i32
    %c0_i32_1 = arith.constant 0 : i32
    return %c0_i32, %c0_i32_0 : i32, i32
  }
  func.func @transform_2(%arg0: i32) -> (i32, i32) {
    %c0_i32 = arith.constant 0 : i32
    %c0_i32_0 = arith.constant 0 : i32
    %c0_i32_1 = arith.constant 0 : i32
    return %c0_i32, %c0_i32_0 : i32, i32
  }
  func.func @transform_3(%arg0: i32) -> (i32, i32) {
    %c0_i32 = arith.constant 0 : i32
    %c0_i32_0 = arith.constant 0 : i32
    %c0_i32_1 = arith.constant 0 : i32
    return %c0_i32, %c0_i32_0 : i32, i32
  }
  func.func @transform_4(%arg0: i32) -> (i32, i32) {
    %c0_i32 = arith.constant 0 : i32
    %c0_i32_0 = arith.constant 0 : i32
    %c0_i32_1 = arith.constant 0 : i32
    return %c0_i32, %c0_i32_0 : i32, i32
  }
  func.func @transform_5(%arg0: i32) -> (i32, i32, i32) {
    %c0_i32 = arith.constant 0 : i32
    %c0_i32_0 = arith.constant 0 : i32
    %c0_i32_1 = arith.constant 0 : i32
    return %arg0, %c0_i32, %c0_i32_0 : i32, i32, i32
  }
}

</mosaic_0001>

<llo_original>
// kernel: tpu_custom_call.1
$region0: #{tpu_custom_call.1}
  #allocation0 [shape = 'u32[]', space=smem, size = 0x4, offset = 0x4, fixed_abs, tag = 'smem constant byte address 0x4 - core index']
  #allocation1 [shape = 'u32[144,128]{1,0:T(1,128)}', space=vmem, size = 0x12000, scoped, tag = 'internal scratch']
  %s0 = inlined_call_operand.hbm [shape: f32[2,4,384], index: 0, kind: input, shape index: {}]
  %s1 = inlined_call_operand.hbm [shape: f32[4,36], index: 1, kind: input, shape index: {}]
  %s2 = inlined_call_operand.vmem [shape: f32[4,36], index: 2, kind: input, shape index: {}]
  %s3 = inlined_call_operand.vmem [shape: f32[4,4], index: 3, kind: input, shape index: {}]
  %s4 = inlined_call_operand.vmem [shape: f32[1,384], index: 4, kind: input, shape index: {}]
  %s5 = inlined_call_operand.hbm [shape: f32[2,4,384], index: 5, kind: output, shape index: {}]
  %s6 = sld [smem:[#allocation0]]
  $region61: #{tpu_custom_call.1} parent=0
    _
  %s8 = ssub.s32 1, %s6
  %s9 = scalar_select 0, %s8, %s6
  $region1: #{tpu_custom_call.1} parent=0
    #allocation2 [shape = 'u8[12288]{0}', space=vmem, size = 0x3000, scoped, tag = 'input window, operand 0']
    #allocation3 [shape = 's32[2]{0}', space=sflag, size = 0x8, scoped, tag = 'scoped memory for tpu_custom_call.1']
    #allocation4 [shape = 's32[2]{0}', space=sflag, size = 0x8, scoped, tag = 'scoped memory for tpu_custom_call.1']
    #allocation5 [shape = 'u8[2048]{0}', space=vmem, size = 0x800, scoped, tag = 'input window, operand 1, single buffered']
    #allocation6 [shape = 's32[1]{0}', space=sflag, size = 0x4, scoped, tag = 'scoped memory for tpu_custom_call.1']
    #allocation7 [shape = 'u8[12288]{0}', space=vmem, size = 0x3000, scoped, tag = 'output window, operand 0']
    %10 = vsyncpa [#allocation3], 0
    %s11 = scalar_lea.sflag [#allocation3], 1
    %12 = vsyncpa %s11, 0
    %13 = vsyncpa [#allocation6], 0
    %14 = vsyncpa [#allocation4], 0
    %s15 = scalar_lea.sflag [#allocation4], 1
    %16 = vsyncpa %s15, 0
    loop: start=0, step=1, limit=4
    $region2: #{tpu_custom_call.1} parent=1 // loop_pre_header
      _
    $region3: #{tpu_custom_call.1} parent=1 // loop_header
      %s18 = sphi 0, %s22
      %p19 = scmp.ge.s32.totalorder %s18, 4
      %s28 = sphi 0, %s30
      %s31 = sphi 0, %s28
      %s32 = sphi 0, %s31
      %s48 = sphi 0, %s32
      %s52 = sphi 0, %s52
      %s54 = sphi 0, %s52
      %s55 = sphi 0, %s54
      %s69 = sphi 0, %s55
      %s73 = sphi 0, %s73
      %s75 = sphi 0, %s73
      %s76 = sphi 0, %s75
      %s90 = sphi 0, %s76
      %s94 = sphi 0, %s94
      %s96 = sphi 0, %s94
      %s97 = sphi 0, %s96
      %s111 = sphi 0, %s97
      %s115 = sphi 0, %s115
      %s117 = sphi 0, %s115
      %s118 = sphi 0, %s117
      %s132 = sphi 0, %s118
      %s138 = sphi 0, %s140
      %s141 = sphi 0, %s138
      %s142 = sphi 0, %s141
      %s158 = sphi 0, %s142
    $region4: #{tpu_custom_call.1} parent=1 // loop_header_branch
      %21 = sbr.rel (%p19) target = $region8
    $region5: #{tpu_custom_call.1} parent=1 // loop_body
      %s23 = ssub.s32 %s18, 1
      %s24 = ssub.s32 %s18, 2
      %s25 = sadd.s32 %s18, 1
      %s26 = ssub.s32 %s18, %s25
      %p27 = scmp.eq.s32.totalorder %s26, 0
      %s29 = sadd.s32 %s28, 1
      %s30 = scalar_select %p27, %s28, %s29
      %p33 = pneg %p27
      %p34 = scmp.eq.s32.totalorder %s18, 1
      %p35 = por %p33, %p34
      %p36 = scmp.ne.s32.totalorder %s28, %s31
      %p37 = scmp.eq.s32.totalorder %s18, 0
      %p38 = por %p36, %p37
      %p39 = scmp.ne.s32.totalorder %s28, %s31
      %p40 = scmp.eq.s32.totalorder %s23, 1
      %p41 = por %p39, %p40
      %p42 = scmp.ne.s32.totalorder %s31, %s32
      %p43 = scmp.eq.s32.totalorder %s23, 0
      %p44 = por %p42, %p43
      %p45 = scmp.ne.s32.totalorder %s31, %s32
      %p46 = scmp.eq.s32.totalorder %s24, 1
      %p47 = por %p45, %p46
      %p49 = scmp.ne.s32.totalorder %s32, %s48
      %p50 = scmp.eq.s32.totalorder %s24, 0
      %p51 = por %p49, %p50
      %s53 = sadd.s32 %s52, 1
      %p56 = scmp.eq.s32.totalorder %s18, 1
      %p57 = scmp.ne.s32.totalorder %s52, %s54
      %p58 = scmp.eq.s32.totalorder %s18, 0
      %p59 = por %p57, %p58
      %p60 = scmp.ne.s32.totalorder %s52, %s54
      %p61 = scmp.eq.s32.totalorder %s23, 1
      %p62 = por %p60, %p61
      %p63 = scmp.ne.s32.totalorder %s54, %s55
      %p64 = scmp.eq.s32.totalorder %s23, 0
      %p65 = por %p63, %p64
      %p66 = scmp.ne.s32.totalorder %s54, %s55
      %p67 = scmp.eq.s32.totalorder %s24, 1
      %p68 = por %p66, %p67
      %p70 = scmp.ne.s32.totalorder %s55, %s69
      %p71 = scmp.eq.s32.totalorder %s24, 0
      %p72 = por %p70, %p71
      %s74 = sadd.s32 %s73, 1
      %p77 = scmp.eq.s32.totalorder %s18, 1
      %p78 = scmp.ne.s32.totalorder %s73, %s75
      %p79 = scmp.eq.s32.totalorder %s18, 0
      %p80 = por %p78, %p79
      %p81 = scmp.ne.s32.totalorder %s73, %s75
      %p82 = scmp.eq.s32.totalorder %s23, 1
      %p83 = por %p81, %p82
      %p84 = scmp.ne.s32.totalorder %s75, %s76
      %p85 = scmp.eq.s32.totalorder %s23, 0
      %p86 = por %p84, %p85
      %p87 = scmp.ne.s32.totalorder %s75, %s76
      %p88 = scmp.eq.s32.totalorder %s24, 1
      %p89 = por %p87, %p88
      %p91 = scmp.ne.s32.totalorder %s76, %s90
      %p92 = scmp.eq.s32.totalorder %s24, 0
      %p93 = por %p91, %p92
      %s95 = sadd.s32 %s94, 1
      %p98 = scmp.eq.s32.totalorder %s18, 1
      %p99 = scmp.ne.s32.totalorder %s94, %s96
      %p100 = scmp.eq.s32.totalorder %s18, 0
      %p101 = por %p99, %p100
      %p102 = scmp.ne.s32.totalorder %s94, %s96
      %p103 = scmp.eq.s32.totalorder %s23, 1
      %p104 = por %p102, %p103
      %p105 = scmp.ne.s32.totalorder %s96, %s97
      %p106 = scmp.eq.s32.totalorder %s23, 0
      %p107 = por %p105, %p106
      %p108 = scmp.ne.s32.totalorder %s96, %s97
      %p109 = scmp.eq.s32.totalorder %s24, 1
      %p110 = por %p108, %p109
      %p112 = scmp.ne.s32.totalorder %s97, %s111
      %p113 = scmp.eq.s32.totalorder %s24, 0
      %p114 = por %p112, %p113
      %s116 = sadd.s32 %s115, 1
      %p119 = scmp.eq.s32.totalorder %s18, 1
      %p120 = scmp.ne.s32.totalorder %s115, %s117
      %p121 = scmp.eq.s32.totalorder %s18, 0
      %p122 = por %p120, %p121
      %p123 = scmp.ne.s32.totalorder %s115, %s117
      %p124 = scmp.eq.s32.totalorder %s23, 1
      %p125 = por %p123, %p124
      %p126 = scmp.ne.s32.totalorder %s117, %s118
      %p127 = scmp.eq.s32.totalorder %s23, 0
      %p128 = por %p126, %p127
      %p129 = scmp.ne.s32.totalorder %s117, %s118
      %p130 = scmp.eq.s32.totalorder %s24, 1
      %p131 = por %p129, %p130
      %p133 = scmp.ne.s32.totalorder %s118, %s132
      %p134 = scmp.eq.s32.totalorder %s24, 0
      %p135 = por %p133, %p134
      %s136 = ssub.s32 %s18, %s25
      %p137 = scmp.eq.s32.totalorder %s136, 0
      %s139 = sadd.s32 %s138, 1
      %s140 = scalar_select %p137, %s138, %s139
      %p143 = pneg %p137
      %p144 = scmp.eq.s32.totalorder %s18, 1
      %p145 = por %p143, %p144
      %p146 = scmp.ne.s32.totalorder %s138, %s141
      %p147 = scmp.eq.s32.totalorder %s18, 0
      %p148 = por %p146, %p147
      %p149 = scmp.ne.s32.totalorder %s138, %s141
      %p150 = scmp.eq.s32.totalorder %s23, 1
      %p151 = por %p149, %p150
      %p152 = scmp.ne.s32.totalorder %s141, %s142
      %p153 = scmp.eq.s32.totalorder %s23, 0
      %p154 = por %p152, %p153
      %p155 = scmp.ne.s32.totalorder %s141, %s142
      %p156 = scmp.eq.s32.totalorder %s24, 1
      %p157 = por %p155, %p156
      %p159 = scmp.ne.s32.totalorder %s142, %s158
      %p160 = scmp.eq.s32.totalorder %s24, 0
      %p161 = por %p159, %p160
      %p162 = scmp.le.s32.totalorder 1, %s18
      %p163 = scmp.lt.s32.totalorder %s18, 3
      %p164 = pnand %p162, %p163
      %p165 = pneg %p164
      // Predicated region
      $region9: #{tpu_custom_call.1} parent=5 // pred_check
        _
      $region10: #{tpu_custom_call.1} parent=5 // pred_check_branch
        %167 = sbr.rel (%p164) target = $region12
      $region11: #{tpu_custom_call.1} parent=5 // pred_region
        %s168 = ssub.s32 %s18, 1
        // Predicated region
        $region13: #{tpu_custom_call.1} parent=11 // pred_check
          %p169 = pneg %p65
        $region14: #{tpu_custom_call.1} parent=11 // pred_check_branch
          %171 = sbr.rel (%p169) target = $region16
        $region15: #{tpu_custom_call.1} parent=11 // pred_region
          %s173 = ssub.s32 64, 64
          %174 = vsyncadd [#allocation6], %s173
          %s176 = sshll.u32 [#allocation5], 4
          %s177 = int_to_ptr.vmem [resolvable:$true] %s176
          %179 = dma.hbm_to_vmem [thread:$0]  %s1, 64, %s177, [#allocation6]
        $region16: #{tpu_custom_call.1} parent=11 // pred_fallthru
          _
        // Predicated region
        $region17: #{tpu_custom_call.1} parent=11 // pred_check
          %p180 = pneg %p86
        $region18: #{tpu_custom_call.1} parent=11 // pred_check_branch
          %182 = sbr.rel (%p180) target = $region20
        $region19: #{tpu_custom_call.1} parent=11 // pred_region
          _
        $region20: #{tpu_custom_call.1} parent=11 // pred_fallthru
          _
        // Predicated region
        $region21: #{tpu_custom_call.1} parent=11 // pred_check
          %p183 = pneg %p107
        $region22: #{tpu_custom_call.1} parent=11 // pred_check_branch
          %185 = sbr.rel (%p183) target = $region24
        $region23: #{tpu_custom_call.1} parent=11 // pred_region
          _
        $region24: #{tpu_custom_call.1} parent=11 // pred_fallthru
          _
        // Predicated region
        $region25: #{tpu_custom_call.1} parent=11 // pred_check
          %p186 = pneg %p128
        $region26: #{tpu_custom_call.1} parent=11 // pred_check_branch
          %188 = sbr.rel (%p186) target = $region28
        $region27: #{tpu_custom_call.1} parent=11 // pred_region
          _
        $region28: #{tpu_custom_call.1} parent=11 // pred_fallthru
          _
      $region12: #{tpu_custom_call.1} parent=5 // pred_fallthru
        _
      %p189 = scmp.lt.s32.totalorder %s18, 2
      // Predicated region
      $region29: #{tpu_custom_call.1} parent=5 // pred_check
        %p190 = pneg %p189
      $region30: #{tpu_custom_call.1} parent=5 // pred_check_branch
        %192 = sbr.rel (%p190) target = $region32
      $region31: #{tpu_custom_call.1} parent=5 // pred_region
        // Predicated region
        $region33: #{tpu_custom_call.1} parent=31 // pred_check
          %p193 = pneg %p38
        $region34: #{tpu_custom_call.1} parent=31 // pred_check_branch
          %195 = sbr.rel (%p193) target = $region36
        $region35: #{tpu_custom_call.1} parent=31 // pred_region
          %s196 = sand.u32 %s28, 1
          %s197 = scalar_lea.sflag [#allocation3], %s196
          %s198 = sand.u32 %s28, 1
          %s199 = smul.addr %s198, 12
          %s200 = scalar_lea.vmem [#allocation2], %s199
          %s202 = ssub.s32 192, 192
          %203 = vsyncadd %s197, %s202
          %s204 = smul.addr %s18, 3
          %s205 = smul.addr %s204, 64
          %s206 = scalar_lea.hbm %s0, %s205
          %s208 = sshll.u32 %s200, 4
          %s209 = int_to_ptr.vmem [resolvable:$true] %s208
          %211 = dma.hbm_to_vmem [thread:$0]  %s206, 192, %s209, %s197
        $region36: #{tpu_custom_call.1} parent=31 // pred_fallthru
          _
      $region32: #{tpu_custom_call.1} parent=5 // pred_fallthru
        _
      %p212 = scmp.le.s32.totalorder 1, %s18
      %p213 = scmp.lt.s32.totalorder %s18, 3
      %p214 = pnand %p212, %p213
      %p215 = pneg %p214
      // Predicated region
      $region37: #{tpu_custom_call.1} parent=5 // pred_check
        _
      $region38: #{tpu_custom_call.1} parent=5 // pred_check_branch
        %217 = sbr.rel (%p214) target = $region40
      $region39: #{tpu_custom_call.1} parent=5 // pred_region
        %s218 = ssub.s32 %s18, 1
        %s219 = sand.u32 %s31, 1
        %s220 = scalar_lea.sflag [#allocation3], %s219
        %s221 = sand.u32 %s31, 1
        %s222 = smul.addr %s221, 12
        %s223 = scalar_lea.vmem [#allocation2], %s222
        // Predicated region
        $region41: #{tpu_custom_call.1} parent=39 // pred_check
          %p224 = pneg %p44
        $region42: #{tpu_custom_call.1} parent=39 // pred_check_branch
          %226 = sbr.rel (%p224) target = $region44
        $region43: #{tpu_custom_call.1} parent=39 // pred_region
          %227 = dma.done %s220, 192
        $region44: #{tpu_custom_call.1} parent=39 // pred_fallthru
          _
        // Predicated region
        $region45: #{tpu_custom_call.1} parent=39 // pred_check
          %p228 = pneg %p65
        $region46: #{tpu_custom_call.1} parent=39 // pred_check_branch
          %230 = sbr.rel (%p228) target = $region48
        $region47: #{tpu_custom_call.1} parent=39 // pred_region
          %231 = dma.done [#allocation6], 64
        $region48: #{tpu_custom_call.1} parent=39 // pred_fallthru
          _
        %s232 = sand.u32 %s31, 1
        %s233 = scalar_lea.sflag [#allocation3], %s232
        %s234 = sand.u32 %s31, 1
        %s235 = smul.addr %s234, 12
        %s236 = scalar_lea.vmem [#allocation2], %s235
        %p237 = pneg %p44
        %p238 = pneg %p41
        %p239 = pneg %p65
        %p240 = pneg %p62
        %p241 = pneg %p86
        %p242 = pneg %p83
        %p243 = pneg %p107
        %p244 = pneg %p104
        %p245 = pneg %p128
        %p246 = pneg %p125
        %p247 = pneg %p154
        %p248 = pneg %p151
        %s249 = sand.u32 %s141, 1
        %s250 = scalar_lea.sflag [#allocation4], %s249
        %s251 = sand.u32 %s141, 1
        %s252 = smul.addr %s251, 12
        %s253 = scalar_lea.vmem [#allocation7], %s252
        %v254 = vld [vmem:[%s223] sm:$0xff]
        %v255 = vld [vmem:[%s223 + $0x8] sm:$0xf]
        %v256 = vld [vmem:[%s4] sm:$0x7]
        %v257 = vld [vmem:[#allocation5] sm:$0xf]
        %v258 = vld [vmem:[%s2] sm:$0xf]
        %v259 = vld [vmem:[%s3] sm:$0xf]
        %v262 = vcombine.high %v254, %v254
        %264 = vrot.lane.b32.xlu0 %v257, 124
        %v265 = vpop.permute.xlu0 %264
        %267 = vrot.lane.b32.xlu0 0.0, 18
        %v268 = vpop.permute.xlu0 %267
        %269 = vrot.lane.b32.xlu0 %v254, 18
        %v270 = vpop.permute.xlu0 %269
        %271 = vrot.lane.b32.xlu0 %v262, 18
        %v272 = vpop.permute.xlu0 %271
        %273 = vrot.lane.b32.xlu0 %v255, 18
        %v274 = vpop.permute.xlu0 %273
        %vm275 = vcmask 146432
        %v276 = vsel %vm275, %v268, %v270
        %v277 = vsel %vm275, %v270, %v272
        %v278 = vsel %vm275, %v272, %v274
        %vm279 = vcmask 31744
        %v280 = vsel %vm279, %v265, 0
        %vm282 = vcmask 1043456
        %v283 = vsel %vm282, %v276, 0
        %v285 = vsel %vm282, %v277, 0
        %v287 = vsel %vm282, %v278, 0
        %289 = vmatprep.subr.mxu0 %v285
        %290 = vmatpush1.msra.mxu0 %v283
        %291 = vmatprep.subr.mxu0 0.0
        %292 = vmatpush1.msra.mxu0 0.0
        %293 = vmatprep.subr.mxu0 0.0
        %294 = vmatpush1.msra.mxu0 0.0
        %295 = vmatprep.subr.mxu0 0.0
        %296 = vmatpush1.msra.mxu0 0.0
        %297 = vmatprep.subr.mxu0 0.0
        %298 = vmatpush1.msra.mxu0 0.0
        %299 = vmatprep.subr.mxu0 0.0
        %300 = vmatpush1.msra.mxu0 0.0
        %301 = vmatprep.subr.mxu0 0.0
        %302 = vmatpush1.msra.mxu0 0.0
        %303 = vmatprep.subr.mxu0 0.0
        %304 = vmatpush1.msra.mxu0 0.0
        %305 = vmatprep.subr.mxu0 0.0
        %306 = vmatpush1.msra.mxu0 0.0
        %307 = vmatprep.subr.mxu0 0.0
        %308 = vmatpush1.msra.mxu0 0.0
        %309 = vmatprep.subr.mxu0 0.0
        %310 = vmatpush1.msra.mxu0 0.0
        %311 = vmatprep.subr.mxu0 0.0
        %312 = vmatpush1.msra.mxu0 0.0
        %313 = vmatprep.subr.mxu0 0.0
        %314 = vmatpush1.msra.mxu0 0.0
        %315 = vmatprep.subr.mxu0 0.0
        %316 = vmatpush1.msra.mxu0 0.0
        %317 = vmatprep.subr.mxu0 0.0
        %318 = vmatpush1.msra.mxu0 0.0
        %319 = vmatprep.subr.mxu0 0.0
        %320 = vmatpush1.msra.mxu0 0.0
        %321 = vmatprep.subr.mxu0 0.0
        %322 = vmatpush1.msra.mxu0 0.0
        %323 = vmatprep.subr.mxu0 0.0
        %324 = vmatpush1.msra.mxu0 0.0
        %325 = vmatprep.subr.mxu0 0.0
        %326 = vmatpush1.msra.mxu0 0.0
        %327 = vmatprep.subr.mxu0 0.0
        %328 = vmatpush1.msra.mxu0 0.0
        %329 = vmatprep.subr.mxu0 0.0
        %330 = vmatpush1.msra.mxu0 0.0
        %331 = vmatprep.subr.mxu0 0.0
        %332 = vmatpush1.msra.mxu0 0.0
        %333 = vmatprep.subr.mxu0 0.0
        %334 = vmatpush1.msra.mxu0 0.0
        %335 = vmatprep.subr.mxu0 0.0
        %336 = vmatpush1.msra.mxu0 0.0
        %337 = vmatprep.subr.mxu0 0.0
        %338 = vmatpush1.msra.mxu0 0.0
        %339 = vmatprep.subr.mxu0 0.0
        %340 = vmatpush1.msra.mxu0 0.0
        %341 = vmatprep.subr.mxu0 0.0
        %342 = vmatpush1.msra.mxu0 0.0
        %343 = vmatprep.subr.mxu0 0.0
        %344 = vmatpush1.msra.mxu0 0.0
        %345 = vmatprep.subr.mxu0 0.0
        %346 = vmatpush1.msra.mxu0 0.0
        %347 = vmatprep.subr.mxu0 0.0
        %348 = vmatpush1.msra.mxu0 0.0
        %349 = vmatprep.subr.mxu0 0.0
        %350 = vmatpush1.msra.mxu0 0.0
        %351 = vmatprep.subr.mxu0 0.0
        %352 = vmatpush1.msra.mxu0 0.0
        %353 = vmatprep.mubr.f32.mxu0 0.0
        %354 = vmatmul.mubr.f32.gmra.mrb[0].mxu0 %v280
        %v355 = vpop.f32.mrb[0].mxu0
        %v356 = vadd.f32 0.0, %v355
        %v357 = vpop.f32.mrb[0].mxu0
        %v358 = vadd.f32 0.0, %v357
        %359 = vdwg.mxu0
        %360 = vmatprep.subr.mxu0 0.0
        %361 = vmatpush1.msra.mxu0 %v287
        %362 = vmatprep.subr.mxu0 0.0
        %363 = vmatpush1.msra.mxu0 0.0
        %364 = vmatprep.subr.mxu0 0.0
        %365 = vmatpush1.msra.mxu0 0.0
        %366 = vmatprep.subr.mxu0 0.0
        %367 = vmatpush1.msra.mxu0 0.0
        %368 = vmatprep.subr.mxu0 0.0
        %369 = vmatpush1.msra.mxu0 0.0
        %370 = vmatprep.subr.mxu0 0.0
        %371 = vmatpush1.msra.mxu0 0.0
        %372 = vmatprep.subr.mxu0 0.0
        %373 = vmatpush1.msra.mxu0 0.0
        %374 = vmatprep.subr.mxu0 0.0
        %375 = vmatpush1.msra.mxu0 0.0
        %376 = vmatprep.subr.mxu0 0.0
        %377 = vmatpush1.msra.mxu0 0.0
        %378 = vmatprep.subr.mxu0 0.0
        %379 = vmatpush1.msra.mxu0 0.0
        %380 = vmatprep.subr.mxu0 0.0
        %381 = vmatpush1.msra.mxu0 0.0
        %382 = vmatprep.subr.mxu0 0.0
        %383 = vmatpush1.msra.mxu0 0.0
        %384 = vmatprep.subr.mxu0 0.0
        %385 = vmatpush1.msra.mxu0 0.0
        %386 = vmatprep.subr.mxu0 0.0
        %387 = vmatpush1.msra.mxu0 0.0
        %388 = vmatprep.subr.mxu0 0.0
        %389 = vmatpush1.msra.mxu0 0.0
        %390 = vmatprep.subr.mxu0 0.0
        %391 = vmatpush1.msra.mxu0 0.0
        %392 = vmatprep.subr.mxu0 0.0
        %393 = vmatpush1.msra.mxu0 0.0
        %394 = vmatprep.subr.mxu0 0.0
        %395 = vmatpush1.msra.mxu0 0.0
        %396 = vmatprep.subr.mxu0 0.0
        %397 = vmatpush1.msra.mxu0 0.0
        %398 = vmatprep.subr.mxu0 0.0
        %399 = vmatpush1.msra.mxu0 0.0
        %400 = vmatprep.subr.mxu0 0.0
        %401 = vmatpush1.msra.mxu0 0.0
        %402 = vmatprep.subr.mxu0 0.0
        %403 = vmatpush1.msra.mxu0 0.0
        %404 = vmatprep.subr.mxu0 0.0
        %405 = vmatpush1.msra.mxu0 0.0
        %406 = vmatprep.subr.mxu0 0.0
        %407 = vmatpush1.msra.mxu0 0.0
        %408 = vmatprep.subr.mxu0 0.0
        %409 = vmatpush1.msra.mxu0 0.0
        %410 = vmatprep.subr.mxu0 0.0
        %411 = vmatpush1.msra.mxu0 0.0
        %412 = vmatprep.subr.mxu0 0.0
        %413 = vmatpush1.msra.mxu0 0.0
        %414 = vmatprep.subr.mxu0 0.0
        %415 = vmatpush1.msra.mxu0 0.0
        %416 = vmatprep.subr.mxu0 0.0
        %417 = vmatpush1.msra.mxu0 0.0
        %418 = vmatprep.subr.mxu0 0.0
        %419 = vmatpush1.msra.mxu0 0.0
        %420 = vmatprep.subr.mxu0 0.0
        %421 = vmatpush1.msra.mxu0 0.0
        %422 = vmatprep.subr.mxu0 0.0
        %423 = vmatpush1.msra.mxu0 0.0
        %424 = vmatprep.mubr.f32.mxu0 0.0
        %425 = vmatmul.mubr.f32.gmra.mrb[0].mxu0 %v280
        %v426 = vpop.f32.mrb[0].mxu0
        %v427 = vadd.f32 0.0, %v426
        %v428 = vpop.f32.mrb[0].mxu0
        %429 = vdwg.mxu0
        %430 = vrot.lane.b32.xlu0 0.0, 19
        %v431 = vpop.permute.xlu0 %430
        %432 = vrot.lane.b32.xlu0 %v254, 19
        %v433 = vpop.permute.xlu0 %432
        %434 = vrot.lane.b32.xlu0 %v262, 19
        %v435 = vpop.permute.xlu0 %434
        %436 = vrot.lane.b32.xlu0 %v255, 19
        %v437 = vpop.permute.xlu0 %436
        %vm438 = vcmask 154624
        %v439 = vsel %vm438, %v431, %v433
        %v440 = vsel %vm438, %v433, %v435
        %v441 = vsel %vm438, %v435, %v437
        %v442 = vsel %vm279, %v257, 0
        %v444 = vsel %vm282, %v439, 0
        %v446 = vsel %vm282, %v440, 0
        %v448 = vsel %vm282, %v441, 0
        %450 = vmatprep.subr.mxu0 %v446
        %451 = vmatpush1.msra.mxu0 %v444
        %452 = vmatprep.subr.mxu0 0.0
        %453 = vmatpush1.msra.mxu0 0.0
        %454 = vmatprep.subr.mxu0 0.0
        %455 = vmatpush1.msra.mxu0 0.0
        %456 = vmatprep.subr.mxu0 0.0
        %457 = vmatpush1.msra.mxu0 0.0
        %458 = vmatprep.subr.mxu0 0.0
        %459 = vmatpush1.msra.mxu0 0.0
        %460 = vmatprep.subr.mxu0 0.0
        %461 = vmatpush1.msra.mxu0 0.0
        %462 = vmatprep.subr.mxu0 0.0
        %463 = vmatpush1.msra.mxu0 0.0
        %464 = vmatprep.subr.mxu0 0.0
        %465 = vmatpush1.msra.mxu0 0.0
        %466 = vmatprep.subr.mxu0 0.0
        %467 = vmatpush1.msra.mxu0 0.0
        %468 = vmatprep.subr.mxu0 0.0
        %469 = vmatpush1.msra.mxu0 0.0
        %470 = vmatprep.subr.mxu0 0.0
        %471 = vmatpush1.msra.mxu0 0.0
        %472 = vmatprep.subr.mxu0 0.0
        %473 = vmatpush1.msra.mxu0 0.0
        %474 = vmatprep.subr.mxu0 0.0
        %475 = vmatpush1.msra.mxu0 0.0
        %476 = vmatprep.subr.mxu0 0.0
        %477 = vmatpush1.msra.mxu0 0.0
        %478 = vmatprep.subr.mxu0 0.0
        %479 = vmatpush1.msra.mxu0 0.0
        %480 = vmatprep.subr.mxu0 0.0
        %481 = vmatpush1.msra.mxu0 0.0
        %482 = vmatprep.subr.mxu0 0.0
        %483 = vmatpush1.msra.mxu0 0.0
        %484 = vmatprep.subr.mxu0 0.0
        %485 = vmatpush1.msra.mxu0 0.0
        %486 = vmatprep.subr.mxu0 0.0
        %487 = vmatpush1.msra.mxu0 0.0
        %488 = vmatprep.subr.mxu0 0.0
        %489 = vmatpush1.msra.mxu0 0.0
        %490 = vmatprep.subr.mxu0 0.0
        %491 = vmatpush1.msra.mxu0 0.0
        %492 = vmatprep.subr.mxu0 0.0
        %493 = vmatpush1.msra.mxu0 0.0
        %494 = vmatprep.subr.mxu0 0.0
        %495 = vmatpush1.msra.mxu0 0.0
        %496 = vmatprep.subr.mxu0 0.0
        %497 = vmatpush1.msra.mxu0 0.0
        %498 = vmatprep.subr.mxu0 0.0
        %499 = vmatpush1.msra.mxu0 0.0
        %500 = vmatprep.subr.mxu0 0.0
        %501 = vmatpush1.msra.mxu0 0.0
        %502 = vmatprep.subr.mxu0 0.0
        %503 = vmatpush1.msra.mxu0 0.0
        %504 = vmatprep.subr.mxu0 0.0
        %505 = vmatpush1.msra.mxu0 0.0
        %506 = vmatprep.subr.mxu0 0.0
        %507 = vmatpush1.msra.mxu0 0.0
        %508 = vmatprep.subr.mxu0 0.0
        %509 = vmatpush1.msra.mxu0 0.0
        %510 = vmatprep.subr.mxu0 0.0
        %511 = vmatpush1.msra.mxu0 0.0
        %512 = vmatprep.subr.mxu0 0.0
        %513 = vmatpush1.msra.mxu0 0.0
        %514 = vmatprep.mubr.f32.mxu0 0.0
        %515 = vmatmul.mubr.f32.gmra.mrb[0].mxu0 %v442
        %v516 = vpop.f32.mrb[0].mxu0
        %v517 = vadd.f32 %v356, %v516
        %v518 = vpop.f32.mrb[0].mxu0
        %v519 = vadd.f32 %v358, %v518
        %520 = vdwg.mxu0
        %521 = vmatprep.subr.mxu0 0.0
        %522 = vmatpush1.msra.mxu0 %v448
        %523 = vmatprep.subr.mxu0 0.0
        %524 = vmatpush1.msra.mxu0 0.0
        %525 = vmatprep.subr.mxu0 0.0
        %526 = vmatpush1.msra.mxu0 0.0
        %527 = vmatprep.subr.mxu0 0.0
        %528 = vmatpush1.msra.mxu0 0.0
        %529 = vmatprep.subr.mxu0 0.0
        %530 = vmatpush1.msra.mxu0 0.0
        %531 = vmatprep.subr.mxu0 0.0
        %532 = vmatpush1.msra.mxu0 0.0
        %533 = vmatprep.subr.mxu0 0.0
        %534 = vmatpush1.msra.mxu0 0.0
        %535 = vmatprep.subr.mxu0 0.0
        %536 = vmatpush1.msra.mxu0 0.0
        %537 = vmatprep.subr.mxu0 0.0
        %538 = vmatpush1.msra.mxu0 0.0
        %539 = vmatprep.subr.mxu0 0.0
        %540 = vmatpush1.msra.mxu0 0.0
        %541 = vmatprep.subr.mxu0 0.0
        %542 = vmatpush1.msra.mxu0 0.0
        %543 = vmatprep.subr.mxu0 0.0
        %544 = vmatpush1.msra.mxu0 0.0
        %545 = vmatprep.subr.mxu0 0.0
        %546 = vmatpush1.msra.mxu0 0.0
        %547 = vmatprep.subr.mxu0 0.0
        %548 = vmatpush1.msra.mxu0 0.0
        %549 = vmatprep.subr.mxu0 0.0
        %550 = vmatpush1.msra.mxu0 0.0
        %551 = vmatprep.subr.mxu0 0.0
        %552 = vmatpush1.msra.mxu0 0.0
        %553 = vmatprep.subr.mxu0 0.0
        %554 = vmatpush1.msra.mxu0 0.0
        %555 = vmatprep.subr.mxu0 0.0
        %556 = vmatpush1.msra.mxu0 0.0
        %557 = vmatprep.subr.mxu0 0.0
        %558 = vmatpush1.msra.mxu0 0.0
        %559 = vmatprep.subr.mxu0 0.0
        %560 = vmatpush1.msra.mxu0 0.0
        %561 = vmatprep.subr.mxu0 0.0
        %562 = vmatpush1.msra.mxu0 0.0
        %563 = vmatprep.subr.mxu0 0.0
        %564 = vmatpush1.msra.mxu0 0.0
        %565 = vmatprep.subr.mxu0 0.0
        %566 = vmatpush1.msra.mxu0 0.0
        %567 = vmatprep.subr.mxu0 0.0
        %568 = vmatpush1.msra.mxu0 0.0
        %569 = vmatprep.subr.mxu0 0.0
        %570 = vmatpush1.msra.mxu0 0.0
        %571 = vmatprep.subr.mxu0 0.0
        %572 = vmatpush1.msra.mxu0 0.0
        %573 = vmatprep.subr.mxu0 0.0
        %574 = vmatpush1.msra.mxu0 0.0
        %575 = vmatprep.subr.mxu0 0.0
        %576 = vmatpush1.msra.mxu0 0.0
        %577 = vmatprep.subr.mxu0 0.0
        %578 = vmatpush1.msra.mxu0 0.0
        %579 = vmatprep.subr.mxu0 0.0
        %580 = vmatpush1.msra.mxu0 0.0
        %581 = vmatprep.subr.mxu0 0.0
        %582 = vmatpush1.msra.mxu0 0.0
        %583 = vmatprep.subr.mxu0 0.0
        %584 = vmatpush1.msra.mxu0 0.0
        %585 = vmatprep.mubr.f32.mxu0 0.0
        %586 = vmatmul.mubr.f32.gmra.mrb[0].mxu0 %v442
        %v587 = vpop.f32.mrb[0].mxu0
        %v588 = vadd.f32 %v427, %v587
        %v589 = vpop.f32.mrb[0].mxu0
        %590 = vdwg.mxu0
        %591 = vrot.lane.b32.xlu0 %v257, 120
        %v592 = vpop.permute.xlu0 %591
        %593 = vrot.lane.b32.xlu0 0.0, 17
        %v594 = vpop.permute.xlu0 %593
        %595 = vrot.lane.b32.xlu0 %v254, 17
        %v596 = vpop.permute.xlu0 %595
        %597 = vrot.lane.b32.xlu0 %v262, 17
        %v598 = vpop.permute.xlu0 %597
        %599 = vrot.lane.b32.xlu0 %v255, 17
        %v600 = vpop.permute.xlu0 %599
        %vm601 = vcmask 138240
        %v602 = vsel %vm601, %v594, %v596
        %v603 = vsel %vm601, %v596, %v598
        %v604 = vsel %vm601, %v598, %v600
        %v605 = vsel %vm279, %v592, 0
        %v607 = vsel %vm282, %v602, 0
        %v609 = vsel %vm282, %v603, 0
        %v611 = vsel %vm282, %v604, 0
        %613 = vmatprep.subr.mxu0 %v609
        %614 = vmatpush1.msra.mxu0 %v607
        %615 = vmatprep.subr.mxu0 0.0
        %616 = vmatpush1.msra.mxu0 0.0
        %617 = vmatprep.subr.mxu0 0.0
        %618 = vmatpush1.msra.mxu0 0.0
        %619 = vmatprep.subr.mxu0 0.0
        %620 = vmatpush1.msra.mxu0 0.0
        %621 = vmatprep.subr.mxu0 0.0
        %622 = vmatpush1.msra.mxu0 0.0
        %623 = vmatprep.subr.mxu0 0.0
        %624 = vmatpush1.msra.mxu0 0.0
        %625 = vmatprep.subr.mxu0 0.0
        %626 = vmatpush1.msra.mxu0 0.0
        %627 = vmatprep.subr.mxu0 0.0
        %628 = vmatpush1.msra.mxu0 0.0
        %629 = vmatprep.subr.mxu0 0.0
        %630 = vmatpush1.msra.mxu0 0.0
        %631 = vmatprep.subr.mxu0 0.0
        %632 = vmatpush1.msra.mxu0 0.0
        %633 = vmatprep.subr.mxu0 0.0
        %634 = vmatpush1.msra.mxu0 0.0
        %635 = vmatprep.subr.mxu0 0.0
        %636 = vmatpush1.msra.mxu0 0.0
        %637 = vmatprep.subr.mxu0 0.0
        %638 = vmatpush1.msra.mxu0 0.0
        %639 = vmatprep.subr.mxu0 0.0
        %640 = vmatpush1.msra.mxu0 0.0
        %641 = vmatprep.subr.mxu0 0.0
        %642 = vmatpush1.msra.mxu0 0.0
        %643 = vmatprep.subr.mxu0 0.0
        %644 = vmatpush1.msra.mxu0 0.0
        %645 = vmatprep.subr.mxu0 0.0
        %646 = vmatpush1.msra.mxu0 0.0
        %647 = vmatprep.subr.mxu0 0.0
        %648 = vmatpush1.msra.mxu0 0.0
        %649 = vmatprep.subr.mxu0 0.0
        %650 = vmatpush1.msra.mxu0 0.0
        %651 = vmatprep.subr.mxu0 0.0
        %652 = vmatpush1.msra.mxu0 0.0
        %653 = vmatprep.subr.mxu0 0.0
        %654 = vmatpush1.msra.mxu0 0.0
        %655 = vmatprep.subr.mxu0 0.0
        %656 = vmatpush1.msra.mxu0 0.0
        %657 = vmatprep.subr.mxu0 0.0
        %658 = vmatpush1.msra.mxu0 0.0
        %659 = vmatprep.subr.mxu0 0.0
        %660 = vmatpush1.msra.mxu0 0.0
        %661 = vmatprep.subr.mxu0 0.0
        %662 = vmatpush1.msra.mxu0 0.0
        %663 = vmatprep.subr.mxu0 0.0
        %664 = vmatpush1.msra.mxu0 0.0
        %665 = vmatprep.subr.mxu0 0.0
        %666 = vmatpush1.msra.mxu0 0.0
        %667 = vmatprep.subr.mxu0 0.0
        %668 = vmatpush1.msra.mxu0 0.0
        %669 = vmatprep.subr.mxu0 0.0
        %670 = vmatpush1.msra.mxu0 0.0
        %671 = vmatprep.subr.mxu0 0.0
        %672 = vmatpush1.msra.mxu0 0.0
        %673 = vmatprep.subr.mxu0 0.0
        %674 = vmatpush1.msra.mxu0 0.0
        %675 = vmatprep.subr.mxu0 0.0
        %676 = vmatpush1.msra.mxu0 0.0
        %677 = vmatprep.mubr.f32.mxu0 0.0
        %678 = vmatmul.mubr.f32.gmra.mrb[0].mxu0 %v605
        %v679 = vpop.f32.mrb[0].mxu0
        %v680 = vadd.f32 0.0, %v679
        %v681 = vpop.f32.mrb[0].mxu0
        %v682 = vadd.f32 0.0, %v681
        %683 = vdwg.mxu0
        %684 = vmatprep.subr.mxu0 0.0
        %685 = vmatpush1.msra.mxu0 %v611
        %686 = vmatprep.subr.mxu0 0.0
        %687 = vmatpush1.msra.mxu0 0.0
        %688 = vmatprep.subr.mxu0 0.0
        %689 = vmatpush1.msra.mxu0 0.0
        %690 = vmatprep.subr.mxu0 0.0
        %691 = vmatpush1.msra.mxu0 0.0
        %692 = vmatprep.subr.mxu0 0.0
        %693 = vmatpush1.msra.mxu0 0.0
        %694 = vmatprep.subr.mxu0 0.0
        %695 = vmatpush1.msra.mxu0 0.0
        %696 = vmatprep.subr.mxu0 0.0
        %697 = vmatpush1.msra.mxu0 0.0
        %698 = vmatprep.subr.mxu0 0.0
        %699 = vmatpush1.msra.mxu0 0.0
        %700 = vmatprep.subr.mxu0 0.0
        %701 = vmatpush1.msra.mxu0 0.0
        %702 = vmatprep.subr.mxu0 0.0
        %703 = vmatpush1.msra.mxu0 0.0
        %704 = vmatprep.subr.mxu0 0.0
        %705 = vmatpush1.msra.mxu0 0.0
        %706 = vmatprep.subr.mxu0 0.0
        %707 = vmatpush1.msra.mxu0 0.0
        %708 = vmatprep.subr.mxu0 0.0
        %709 = vmatpush1.msra.mxu0 0.0
        %710 = vmatprep.subr.mxu0 0.0
        %711 = vmatpush1.msra.mxu0 0.0
        %712 = vmatprep.subr.mxu0 0.0
        %713 = vmatpush1.msra.mxu0 0.0
        %714 = vmatprep.subr.mxu0 0.0
        %715 = vmatpush1.msra.mxu0 0.0
        %716 = vmatprep.subr.mxu0 0.0
        %717 = vmatpush1.msra.mxu0 0.0
        %718 = vmatprep.subr.mxu0 0.0
        %719 = vmatpush1.msra.mxu0 0.0
        %720 = vmatprep.subr.mxu0 0.0
        %721 = vmatpush1.msra.mxu0 0.0
        %722 = vmatprep.subr.mxu0 0.0
        %723 = vmatpush1.msra.mxu0 0.0
        %724 = vmatprep.subr.mxu0 0.0
        %725 = vmatpush1.msra.mxu0 0.0
        %726 = vmatprep.subr.mxu0 0.0
        %727 = vmatpush1.msra.mxu0 0.0
        %728 = vmatprep.subr.mxu0 0.0
        %729 = vmatpush1.msra.mxu0 0.0
        %730 = vmatprep.subr.mxu0 0.0
        %731 = vmatpush1.msra.mxu0 0.0
        %732 = vmatprep.subr.mxu0 0.0
        %733 = vmatpush1.msra.mxu0 0.0
        %734 = vmatprep.subr.mxu0 0.0
        %735 = vmatpush1.msra.mxu0 0.0
        %736 = vmatprep.subr.mxu0 0.0
        %737 = vmatpush1.msra.mxu0 0.0
        %738 = vmatprep.subr.mxu0 0.0
        %739 = vmatpush1.msra.mxu0 0.0
        %740 = vmatprep.subr.mxu0 0.0
        %741 = vmatpush1.msra.mxu0 0.0
        %742 = vmatprep.subr.mxu0 0.0
        %743 = vmatpush1.msra.mxu0 0.0
        %744 = vmatprep.subr.mxu0 0.0
        %745 = vmatpush1.msra.mxu0 0.0
        %746 = vmatprep.subr.mxu0 0.0
        %747 = vmatpush1.msra.mxu0 0.0
        %748 = vmatprep.mubr.f32.mxu0 0.0
        %749 = vmatmul.mubr.f32.gmra.mrb[0].mxu0 %v605
        %v750 = vpop.f32.mrb[0].mxu0
        %v751 = vadd.f32 0.0, %v750
        %v752 = vpop.f32.mrb[0].mxu0
        %753 = vdwg.mxu0
        %v754 = vadd.f32 %v517, %v680
        %v755 = vadd.f32 %v519, %v682
        %v756 = vadd.f32 %v588, %v751
        %757 = vrot.lane.b32.xlu0 %v257, 116
        %v758 = vpop.permute.xlu0 %757
        %759 = vrot.lane.b32.xlu0 0.0, 1
        %v760 = vpop.permute.xlu0 %759
        %761 = vrot.lane.b32.xlu0 %v254, 1
        %v762 = vpop.permute.xlu0 %761
        %763 = vrot.lane.b32.xlu0 %v262, 1
        %v764 = vpop.permute.xlu0 %763
        %765 = vrot.lane.b32.xlu0 %v255, 1
        %v766 = vpop.permute.xlu0 %765
        %vm767 = vcmask 7168
        %v768 = vsel %vm767, %v760, %v762
        %v769 = vsel %vm767, %v762, %v764
        %v770 = vsel %vm767, %v764, %v766
        %v771 = vsel %vm279, %v758, 0
        %v773 = vsel %vm282, %v768, 0
        %v775 = vsel %vm282, %v769, 0
        %v777 = vsel %vm282, %v770, 0
        %779 = vmatprep.subr.mxu0 %v775
        %780 = vmatpush1.msra.mxu0 %v773
        %781 = vmatprep.subr.mxu0 0.0
        %782 = vmatpush1.msra.mxu0 0.0
        %783 = vmatprep.subr.mxu0 0.0
        %784 = vmatpush1.msra.mxu0 0.0
        %785 = vmatprep.subr.mxu0 0.0
        %786 = vmatpush1.msra.mxu0 0.0
        %787 = vmatprep.subr.mxu0 0.0
        %788 = vmatpush1.msra.mxu0 0.0
        %789 = vmatprep.subr.mxu0 0.0
        %790 = vmatpush1.msra.mxu0 0.0
        %791 = vmatprep.subr.mxu0 0.0
        %792 = vmatpush1.msra.mxu0 0.0
        %793 = vmatprep.subr.mxu0 0.0
        %794 = vmatpush1.msra.mxu0 0.0
        %795 = vmatprep.subr.mxu0 0.0
        %796 = vmatpush1.msra.mxu0 0.0
        %797 = vmatprep.subr.mxu0 0.0
        %798 = vmatpush1.msra.mxu0 0.0
        %799 = vmatprep.subr.mxu0 0.0
        %800 = vmatpush1.msra.mxu0 0.0
        %801 = vmatprep.subr.mxu0 0.0
        %802 = vmatpush1.msra.mxu0 0.0
        %803 = vmatprep.subr.mxu0 0.0
        %804 = vmatpush1.msra.mxu0 0.0
        %805 = vmatprep.subr.mxu0 0.0
        %806 = vmatpush1.msra.mxu0 0.0
        %807 = vmatprep.subr.mxu0 0.0
        %808 = vmatpush1.msra.mxu0 0.0
        %809 = vmatprep.subr.mxu0 0.0
        %810 = vmatpush1.msra.mxu0 0.0
        %811 = vmatprep.subr.mxu0 0.0
        %812 = vmatpush1.msra.mxu0 0.0
        %813 = vmatprep.subr.mxu0 0.0
        %814 = vmatpush1.msra.mxu0 0.0
        %815 = vmatprep.subr.mxu0 0.0
        %816 = vmatpush1.msra.mxu0 0.0
        %817 = vmatprep.subr.mxu0 0.0
        %818 = vmatpush1.msra.mxu0 0.0
        %819 = vmatprep.subr.mxu0 0.0
        %820 = vmatpush1.msra.mxu0 0.0
        %821 = vmatprep.subr.mxu0 0.0
        %822 = vmatpush1.msra.mxu0 0.0
        %823 = vmatprep.subr.mxu0 0.0
        %824 = vmatpush1.msra.mxu0 0.0
        %825 = vmatprep.subr.mxu0 0.0
        %826 = vmatpush1.msra.mxu0 0.0
        %827 = vmatprep.subr.mxu0 0.0
        %828 = vmatpush1.msra.mxu0 0.0
        %829 = vmatprep.subr.mxu0 0.0
        %830 = vmatpush1.msra.mxu0 0.0
        %831 = vmatprep.subr.mxu0 0.0
        %832 = vmatpush1.msra.mxu0 0.0
        %833 = vmatprep.subr.mxu0 0.0
        %834 = vmatpush1.msra.mxu0 0.0
        %835 = vmatprep.subr.mxu0 0.0
        %836 = vmatpush1.msra.mxu0 0.0
        %837 = vmatprep.subr.mxu0 0.0
        %838 = vmatpush1.msra.mxu0 0.0
        %839 = vmatprep.subr.mxu0 0.0
        %840 = vmatpush1.msra.mxu0 0.0
        %841 = vmatprep.subr.mxu0 0.0
        %842 = vmatpush1.msra.mxu0 0.0
        %843 = vmatprep.mubr.f32.mxu0 0.0
        %844 = vmatmul.mubr.f32.gmra.mrb[0].mxu0 %v771
        %v845 = vpop.f32.mrb[0].mxu0
        %v846 = vadd.f32 0.0, %v845
        %v847 = vpop.f32.mrb[0].mxu0
        %v848 = vadd.f32 0.0, %v847
        %849 = vdwg.mxu0
        %850 = vmatprep.subr.mxu0 0.0
        %851 = vmatpush1.msra.mxu0 %v777
        %852 = vmatprep.subr.mxu0 0.0
        %853 = vmatpush1.msra.mxu0 0.0
        %854 = vmatprep.subr.mxu0 0.0
        %855 = vmatpush1.msra.mxu0 0.0
        %856 = vmatprep.subr.mxu0 0.0
        %857 = vmatpush1.msra.mxu0 0.0
        %858 = vmatprep.subr.mxu0 0.0
        %859 = vmatpush1.msra.mxu0 0.0
        %860 = vmatprep.subr.mxu0 0.0
        %861 = vmatpush1.msra.mxu0 0.0
        %862 = vmatprep.subr.mxu0 0.0
        %863 = vmatpush1.msra.mxu0 0.0
        %864 = vmatprep.subr.mxu0 0.0
        %865 = vmatpush1.msra.mxu0 0.0
        %866 = vmatprep.subr.mxu0 0.0
        %867 = vmatpush1.msra.mxu0 0.0
        %868 = vmatprep.subr.mxu0 0.0
        %869 = vmatpush1.msra.mxu0 0.0
        %870 = vmatprep.subr.mxu0 0.0
        %871 = vmatpush1.msra.mxu0 0.0
        %872 = vmatprep.subr.mxu0 0.0
        %873 = vmatpush1.msra.mxu0 0.0
        %874 = vmatprep.subr.mxu0 0.0
        %875 = vmatpush1.msra.mxu0 0.0
        %876 = vmatprep.subr.mxu0 0.0
        %877 = vmatpush1.msra.mxu0 0.0
        %878 = vmatprep.subr.mxu0 0.0
        %879 = vmatpush1.msra.mxu0 0.0
        %880 = vmatprep.subr.mxu0 0.0
        %881 = vmatpush1.msra.mxu0 0.0
        %882 = vmatprep.subr.mxu0 0.0
        %883 = vmatpush1.msra.mxu0 0.0
        %884 = vmatprep.subr.mxu0 0.0
        %885 = vmatpush1.msra.mxu0 0.0
        %886 = vmatprep.subr.mxu0 0.0
        %887 = vmatpush1.msra.mxu0 0.0
        %888 = vmatprep.subr.mxu0 0.0
        %889 = vmatpush1.msra.mxu0 0.0
        %890 = vmatprep.subr.mxu0 0.0
        %891 = vmatpush1.msra.mxu0 0.0
        %892 = vmatprep.subr.mxu0 0.0
        %893 = vmatpush1.msra.mxu0 0.0
        %894 = vmatprep.subr.mxu0 0.0
        %895 = vmatpush1.msra.mxu0 0.0
        %896 = vmatprep.subr.mxu0 0.0
        %897 = vmatpush1.msra.mxu0 0.0
        %898 = vmatprep.subr.mxu0 0.0
        %899 = vmatpush1.msra.mxu0 0.0
        %900 = vmatprep.subr.mxu0 0.0
        %901 = vmatpush1.msra.mxu0 0.0
        %902 = vmatprep.subr.mxu0 0.0
        %903 = vmatpush1.msra.mxu0 0.0
        %904 = vmatprep.subr.mxu0 0.0
        %905 = vmatpush1.msra.mxu0 0.0
        %906 = vmatprep.subr.mxu0 0.0
        %907 = vmatpush1.msra.mxu0 0.0
        %908 = vmatprep.subr.mxu0 0.0
        %909 = vmatpush1.msra.mxu0 0.0
        %910 = vmatprep.subr.mxu0 0.0
        %911 = vmatpush1.msra.mxu0 0.0
        %912 = vmatprep.subr.mxu0 0.0
        %913 = vmatpush1.msra.mxu0 0.0
        %914 = vmatprep.mubr.f32.mxu0 0.0
        %915 = vmatmul.mubr.f32.gmra.mrb[0].mxu0 %v771
        %v916 = vpop.f32.mrb[0].mxu0
        %v917 = vadd.f32 0.0, %v916
        %v918 = vpop.f32.mrb[0].mxu0
        %919 = vdwg.mxu0
        %v920 = vadd.f32 %v754, %v846
        %v921 = vadd.f32 %v755, %v848
        %v922 = vadd.f32 %v756, %v917
        %923 = vrot.lane.b32.xlu0 %v257, 112
        %v924 = vpop.permute.xlu0 %923
        %v925 = vsel %vm279, %v924, 0
        %v927 = vsel %vm282, %v254, 0
        %v929 = vsel %vm282, %v262, 0
        %v931 = vsel %vm282, %v255, 0
        %933 = vmatprep.subr.mxu0 %v929
        %934 = vmatpush1.msra.mxu0 %v927
        %935 = vmatprep.subr.mxu0 0.0
        %936 = vmatpush1.msra.mxu0 0.0
        %937 = vmatprep.subr.mxu0 0.0
        %938 = vmatpush1.msra.mxu0 0.0
        %939 = vmatprep.subr.mxu0 0.0
        %940 = vmatpush1.msra.mxu0 0.0
        %941 = vmatprep.subr.mxu0 0.0
        %942 = vmatpush1.msra.mxu0 0.0
        %943 = vmatprep.subr.mxu0 0.0
        %944 = vmatpush1.msra.mxu0 0.0
        %945 = vmatprep.subr.mxu0 0.0
        %946 = vmatpush1.msra.mxu0 0.0
        %947 = vmatprep.subr.mxu0 0.0
        %948 = vmatpush1.msra.mxu0 0.0
        %949 = vmatprep.subr.mxu0 0.0
        %950 = vmatpush1.msra.mxu0 0.0
        %951 = vmatprep.subr.mxu0 0.0
        %952 = vmatpush1.msra.mxu0 0.0
        %953 = vmatprep.subr.mxu0 0.0
        %954 = vmatpush1.msra.mxu0 0.0
        %955 = vmatprep.subr.mxu0 0.0
        %956 = vmatpush1.msra.mxu0 0.0
        %957 = vmatprep.subr.mxu0 0.0
        %958 = vmatpush1.msra.mxu0 0.0
        %959 = vmatprep.subr.mxu0 0.0
        %960 = vmatpush1.msra.mxu0 0.0
        %961 = vmatprep.subr.mxu0 0.0
        %962 = vmatpush1.msra.mxu0 0.0
        %963 = vmatprep.subr.mxu0 0.0
        %964 = vmatpush1.msra.mxu0 0.0
        %965 = vmatprep.subr.mxu0 0.0
        %966 = vmatpush1.msra.mxu0 0.0
        %967 = vmatprep.subr.mxu0 0.0
        %968 = vmatpush1.msra.mxu0 0.0
        %969 = vmatprep.subr.mxu0 0.0
        %970 = vmatpush1.msra.mxu0 0.0
        %971 = vmatprep.subr.mxu0 0.0
        %972 = vmatpush1.msra.mxu0 0.0
        %973 = vmatprep.subr.mxu0 0.0
        %974 = vmatpush1.msra.mxu0 0.0
        %975 = vmatprep.subr.mxu0 0.0
        %976 = vmatpush1.msra.mxu0 0.0
        %977 = vmatprep.subr.mxu0 0.0
        %978 = vmatpush1.msra.mxu0 0.0
        %979 = vmatprep.subr.mxu0 0.0
        %980 = vmatpush1.msra.mxu0 0.0
        %981 = vmatprep.subr.mxu0 0.0
        %982 = vmatpush1.msra.mxu0 0.0
        %983 = vmatprep.subr.mxu0 0.0
        %984 = vmatpush1.msra.mxu0 0.0
        %985 = vmatprep.subr.mxu0 0.0
        %986 = vmatpush1.msra.mxu0 0.0
        %987 = vmatprep.subr.mxu0 0.0
        %988 = vmatpush1.msra.mxu0 0.0
        %989 = vmatprep.subr.mxu0 0.0
        %990 = vmatpush1.msra.mxu0 0.0
        %991 = vmatprep.subr.mxu0 0.0
        %992 = vmatpush1.msra.mxu0 0.0
        %993 = vmatprep.subr.mxu0 0.0
        %994 = vmatpush1.msra.mxu0 0.0
        %995 = vmatprep.subr.mxu0 0.0
        %996 = vmatpush1.msra.mxu0 0.0
        %997 = vmatprep.mubr.f32.mxu0 0.0
        %998 = vmatmul.mubr.f32.gmra.mrb[0].mxu0 %v925
        %v999 = vpop.f32.mrb[0].mxu0
        %v1000 = vadd.f32 0.0, %v999
        %v1001 = vpop.f32.mrb[0].mxu0
        %v1002 = vadd.f32 0.0, %v1001
        %1003 = vdwg.mxu0
        %1004 = vmatprep.subr.mxu0 0.0
        %1005 = vmatpush1.msra.mxu0 %v931
        %1006 = vmatprep.subr.mxu0 0.0
        %1007 = vmatpush1.msra.mxu0 0.0
        %1008 = vmatprep.subr.mxu0 0.0
        %1009 = vmatpush1.msra.mxu0 0.0
        %1010 = vmatprep.subr.mxu0 0.0
        %1011 = vmatpush1.msra.mxu0 0.0
        %1012 = vmatprep.subr.mxu0 0.0
        %1013 = vmatpush1.msra.mxu0 0.0
        %1014 = vmatprep.subr.mxu0 0.0
        %1015 = vmatpush1.msra.mxu0 0.0
        %1016 = vmatprep.subr.mxu0 0.0
        %1017 = vmatpush1.msra.mxu0 0.0
        %1018 = vmatprep.subr.mxu0 0.0
        %1019 = vmatpush1.msra.mxu0 0.0
        %1020 = vmatprep.subr.mxu0 0.0
        %1021 = vmatpush1.msra.mxu0 0.0
        %1022 = vmatprep.subr.mxu0 0.0
        %1023 = vmatpush1.msra.mxu0 0.0
        %1024 = vmatprep.subr.mxu0 0.0
        %1025 = vmatpush1.msra.mxu0 0.0
        %1026 = vmatprep.subr.mxu0 0.0
        %1027 = vmatpush1.msra.mxu0 0.0
        %1028 = vmatprep.subr.mxu0 0.0
        %1029 = vmatpush1.msra.mxu0 0.0
        %1030 = vmatprep.subr.mxu0 0.0
        %1031 = vmatpush1.msra.mxu0 0.0
        %1032 = vmatprep.subr.mxu0 0.0
        %1033 = vmatpush1.msra.mxu0 0.0
        %1034 = vmatprep.subr.mxu0 0.0
        %1035 = vmatpush1.msra.mxu0 0.0
        %1036 = vmatprep.subr.mxu0 0.0
        %1037 = vmatpush1.msra.mxu0 0.0
        %1038 = vmatprep.subr.mxu0 0.0
        %1039 = vmatpush1.msra.mxu0 0.0
        %1040 = vmatprep.subr.mxu0 0.0
        %1041 = vmatpush1.msra.mxu0 0.0
        %1042 = vmatprep.subr.mxu0 0.0
        %1043 = vmatpush1.msra.mxu0 0.0
        %1044 = vmatprep.subr.mxu0 0.0
        %1045 = vmatpush1.msra.mxu0 0.0
        %1046 = vmatprep.subr.mxu0 0.0
        %1047 = vmatpush1.msra.mxu0 0.0
        %1048 = vmatprep.subr.mxu0 0.0
        %1049 = vmatpush1.msra.mxu0 0.0
        %1050 = vmatprep.subr.mxu0 0.0
        %1051 = vmatpush1.msra.mxu0 0.0
        %1052 = vmatprep.subr.mxu0 0.0
        %1053 = vmatpush1.msra.mxu0 0.0
        %1054 = vmatprep.subr.mxu0 0.0
        %1055 = vmatpush1.msra.mxu0 0.0
        %1056 = vmatprep.subr.mxu0 0.0
        %1057 = vmatpush1.msra.mxu0 0.0
        %1058 = vmatprep.subr.mxu0 0.0
        %1059 = vmatpush1.msra.mxu0 0.0
        %1060 = vmatprep.subr.mxu0 0.0
        %1061 = vmatpush1.msra.mxu0 0.0
        %1062 = vmatprep.subr.mxu0 0.0
        %1063 = vmatpush1.msra.mxu0 0.0
        %1064 = vmatprep.subr.mxu0 0.0
        %1065 = vmatpush1.msra.mxu0 0.0
        %1066 = vmatprep.subr.mxu0 0.0
        %1067 = vmatpush1.msra.mxu0 0.0
        %1068 = vmatprep.mubr.f32.mxu0 0.0
        %1069 = vmatmul.mubr.f32.gmra.mrb[0].mxu0 %v925
        %v1070 = vpop.f32.mrb[0].mxu0
        %v1071 = vadd.f32 0.0, %v1070
        %v1072 = vpop.f32.mrb[0].mxu0
        %1073 = vdwg.mxu0
        %v1074 = vadd.f32 %v920, %v1000
        %v1075 = vadd.f32 %v921, %v1002
        %v1076 = vadd.f32 %v922, %v1071
        %1077 = vrot.lane.b32.xlu0 %v257, 108
        %v1078 = vpop.permute.xlu0 %1077
        %1079 = vrot.lane.b32.xlu0 %v254, 127
        %v1080 = vpop.permute.xlu0 %1079
        %1081 = vrot.lane.b32.xlu0 %v262, 127
        %v1082 = vpop.permute.xlu0 %1081
        %1083 = vrot.lane.b32.xlu0 %v255, 127
        %v1084 = vpop.permute.xlu0 %1083
        %1085 = vrot.lane.b32.xlu0 0.0, 127
        %v1086 = vpop.permute.xlu0 %1085
        %vm1087 = vcmask 1039360
        %v1088 = vsel %vm1087, %v1080, %v1082
        %v1089 = vsel %vm1087, %v1082, %v1084
        %v1090 = vsel %vm1087, %v1084, %v1086
        %v1091 = vsel %vm279, %v1078, 0
        %v1093 = vsel %vm282, %v1088, 0
        %v1095 = vsel %vm282, %v1089, 0
        %v1097 = vsel %vm282, %v1090, 0
        %1099 = vmatprep.subr.mxu0 %v1095
        %1100 = vmatpush1.msra.mxu0 %v1093
        %1101 = vmatprep.subr.mxu0 0.0
        %1102 = vmatpush1.msra.mxu0 0.0
        %1103 = vmatprep.subr.mxu0 0.0
        %1104 = vmatpush1.msra.mxu0 0.0
        %1105 = vmatprep.subr.mxu0 0.0
        %1106 = vmatpush1.msra.mxu0 0.0
        %1107 = vmatprep.subr.mxu0 0.0
        %1108 = vmatpush1.msra.mxu0 0.0
        %1109 = vmatprep.subr.mxu0 0.0
        %1110 = vmatpush1.msra.mxu0 0.0
        %1111 = vmatprep.subr.mxu0 0.0
        %1112 = vmatpush1.msra.mxu0 0.0
        %1113 = vmatprep.subr.mxu0 0.0
        %1114 = vmatpush1.msra.mxu0 0.0
        %1115 = vmatprep.subr.mxu0 0.0
        %1116 = vmatpush1.msra.mxu0 0.0
        %1117 = vmatprep.subr.mxu0 0.0
        %1118 = vmatpush1.msra.mxu0 0.0
        %1119 = vmatprep.subr.mxu0 0.0
        %1120 = vmatpush1.msra.mxu0 0.0
        %1121 = vmatprep.subr.mxu0 0.0
        %1122 = vmatpush1.msra.mxu0 0.0
        %1123 = vmatprep.subr.mxu0 0.0
        %1124 = vmatpush1.msra.mxu0 0.0
        %1125 = vmatprep.subr.mxu0 0.0
        %1126 = vmatpush1.msra.mxu0 0.0
        %1127 = vmatprep.subr.mxu0 0.0
        %1128 = vmatpush1.msra.mxu0 0.0
        %1129 = vmatprep.subr.mxu0 0.0
        %1130 = vmatpush1.msra.mxu0 0.0
        %1131 = vmatprep.subr.mxu0 0.0
        %1132 = vmatpush1.msra.mxu0 0.0
        %1133 = vmatprep.subr.mxu0 0.0
        %1134 = vmatpush1.msra.mxu0 0.0
        %1135 = vmatprep.subr.mxu0 0.0
        %1136 = vmatpush1.msra.mxu0 0.0
        %1137 = vmatprep.subr.mxu0 0.0
        %1138 = vmatpush1.msra.mxu0 0.0
        %1139 = vmatprep.subr.mxu0 0.0
        %1140 = vmatpush1.msra.mxu0 0.0
        %1141 = vmatprep.subr.mxu0 0.0
        %1142 = vmatpush1.msra.mxu0 0.0
        %1143 = vmatprep.subr.mxu0 0.0
        %1144 = vmatpush1.msra.mxu0 0.0
        %1145 = vmatprep.subr.mxu0 0.0
        %1146 = vmatpush1.msra.mxu0 0.0
        %1147 = vmatprep.subr.mxu0 0.0
        %1148 = vmatpush1.msra.mxu0 0.0
        %1149 = vmatprep.subr.mxu0 0.0
        %1150 = vmatpush1.msra.mxu0 0.0
        %1151 = vmatprep.subr.mxu0 0.0
        %1152 = vmatpush1.msra.mxu0 0.0
        %1153 = vmatprep.subr.mxu0 0.0
        %1154 = vmatpush1.msra.mxu0 0.0
        %1155 = vmatprep.subr.mxu0 0.0
        %1156 = vmatpush1.msra.mxu0 0.0
        %1157 = vmatprep.subr.mxu0 0.0
        %1158 = vmatpush1.msra.mxu0 0.0
        %1159 = vmatprep.subr.mxu0 0.0
        %1160 = vmatpush1.msra.mxu0 0.0
        %1161 = vmatprep.subr.mxu0 0.0
        %1162 = vmatpush1.msra.mxu0 0.0
        %1163 = vmatprep.mubr.f32.mxu0 0.0
        %1164 = vmatmul.mubr.f32.gmra.mrb[0].mxu0 %v1091
        %v1165 = vpop.f32.mrb[0].mxu0
        %v1166 = vadd.f32 0.0, %v1165
        %v1167 = vpop.f32.mrb[0].mxu0
        %v1168 = vadd.f32 0.0, %v1167
        %1169 = vdwg.mxu0
        %1170 = vmatprep.subr.mxu0 0.0
        %1171 = vmatpush1.msra.mxu0 %v1097
        %1172 = vmatprep.subr.mxu0 0.0
        %1173 = vmatpush1.msra.mxu0 0.0
        %1174 = vmatprep.subr.mxu0 0.0
        %1175 = vmatpush1.msra.mxu0 0.0
        %1176 = vmatprep.subr.mxu0 0.0
        %1177 = vmatpush1.msra.mxu0 0.0
        %1178 = vmatprep.subr.mxu0 0.0
        %1179 = vmatpush1.msra.mxu0 0.0
        %1180 = vmatprep.subr.mxu0 0.0
        %1181 = vmatpush1.msra.mxu0 0.0
        %1182 = vmatprep.subr.mxu0 0.0
        %1183 = vmatpush1.msra.mxu0 0.0
        %1184 = vmatprep.subr.mxu0 0.0
        %1185 = vmatpush1.msra.mxu0 0.0
        %1186 = vmatprep.subr.mxu0 0.0
        %1187 = vmatpush1.msra.mxu0 0.0
        %1188 = vmatprep.subr.mxu0 0.0
        %1189 = vmatpush1.msra.mxu0 0.0
        %1190 = vmatprep.subr.mxu0 0.0
        %1191 = vmatpush1.msra.mxu0 0.0
        %1192 = vmatprep.subr.mxu0 0.0
        %1193 = vmatpush1.msra.mxu0 0.0
        %1194 = vmatprep.subr.mxu0 0.0
        %1195 = vmatpush1.msra.mxu0 0.0
        %1196 = vmatprep.subr.mxu0 0.0
        %1197 = vmatpush1.msra.mxu0 0.0
        %1198 = vmatprep.subr.mxu0 0.0
        %1199 = vmatpush1.msra.mxu0 0.0
        %1200 = vmatprep.subr.mxu0 0.0
        %1201 = vmatpush1.msra.mxu0 0.0
        %1202 = vmatprep.subr.mxu0 0.0
        %1203 = vmatpush1.msra.mxu0 0.0
        %1204 = vmatprep.subr.mxu0 0.0
        %1205 = vmatpush1.msra.mxu0 0.0
        %1206 = vmatprep.subr.mxu0 0.0
        %1207 = vmatpush1.msra.mxu0 0.0
        %1208 = vmatprep.subr.mxu0 0.0
        %1209 = vmatpush1.msra.mxu0 0.0
        %1210 = vmatprep.subr.mxu0 0.0
        %1211 = vmatpush1.msra.mxu0 0.0
        %1212 = vmatprep.subr.mxu0 0.0
        %1213 = vmatpush1.msra.mxu0 0.0
        %1214 = vmatprep.subr.mxu0 0.0
        %1215 = vmatpush1.msra.mxu0 0.0
        %1216 = vmatprep.subr.mxu0 0.0
        %1217 = vmatpush1.msra.mxu0 0.0
        %1218 = vmatprep.subr.mxu0 0.0
        %1219 = vmatpush1.msra.mxu0 0.0
        %1220 = vmatprep.subr.mxu0 0.0
        %1221 = vmatpush1.msra.mxu0 0.0
        %1222 = vmatprep.subr.mxu0 0.0
        %1223 = vmatpush1.msra.mxu0 0.0
        %1224 = vmatprep.subr.mxu0 0.0
        %1225 = vmatpush1.msra.mxu0 0.0
        %1226 = vmatprep.subr.mxu0 0.0
        %1227 = vmatpush1.msra.mxu0 0.0
        %1228 = vmatprep.subr.mxu0 0.0
        %1229 = vmatpush1.msra.mxu0 0.0
        %1230 = vmatprep.subr.mxu0 0.0
        %1231 = vmatpush1.msra.mxu0 0.0
        %1232 = vmatprep.subr.mxu0 0.0
        %1233 = vmatpush1.msra.mxu0 0.0
        %1234 = vmatprep.mubr.f32.mxu0 0.0
        %1235 = vmatmul.mubr.f32.gmra.mrb[0].mxu0 %v1091
        %v1236 = vpop.f32.mrb[0].mxu0
        %v1237 = vadd.f32 0.0, %v1236
        %v1238 = vpop.f32.mrb[0].mxu0
        %1239 = vdwg.mxu0
        %v1240 = vadd.f32 %v1074, %v1166
        %v1241 = vadd.f32 %v1075, %v1168
        %v1242 = vadd.f32 %v1076, %v1237
        %1243 = vrot.lane.b32.xlu0 %v257, 104
        %v1244 = vpop.permute.xlu0 %1243
        %1245 = vrot.lane.b32.xlu0 %v254, 111
        %v1246 = vpop.permute.xlu0 %1245
        %1247 = vrot.lane.b32.xlu0 %v262, 111
        %v1248 = vpop.permute.xlu0 %1247
        %1249 = vrot.lane.b32.xlu0 %v255, 111
        %v1250 = vpop.permute.xlu0 %1249
        %1251 = vrot.lane.b32.xlu0 0.0, 111
        %v1252 = vpop.permute.xlu0 %1251
        %vm1253 = vcmask 908288
        %v1254 = vsel %vm1253, %v1246, %v1248
        %v1255 = vsel %vm1253, %v1248, %v1250
        %v1256 = vsel %vm1253, %v1250, %v1252
        %v1257 = vsel %vm279, %v1244, 0
        %v1259 = vsel %vm282, %v1254, 0
        %v1261 = vsel %vm282, %v1255, 0
        %v1263 = vsel %vm282, %v1256, 0
        %1265 = vmatprep.subr.mxu0 %v1261
        %1266 = vmatpush1.msra.mxu0 %v1259
        %1267 = vmatprep.subr.mxu0 0.0
        %1268 = vmatpush1.msra.mxu0 0.0
        %1269 = vmatprep.subr.mxu0 0.0
        %1270 = vmatpush1.msra.mxu0 0.0
        %1271 = vmatprep.subr.mxu0 0.0
        %1272 = vmatpush1.msra.mxu0 0.0
        %1273 = vmatprep.subr.mxu0 0.0
        %1274 = vmatpush1.msra.mxu0 0.0
        %1275 = vmatprep.subr.mxu0 0.0
        %1276 = vmatpush1.msra.mxu0 0.0
        %1277 = vmatprep.subr.mxu0 0.0
        %1278 = vmatpush1.msra.mxu0 0.0
        %1279 = vmatprep.subr.mxu0 0.0
        %1280 = vmatpush1.msra.mxu0 0.0
        %1281 = vmatprep.subr.mxu0 0.0
        %1282 = vmatpush1.msra.mxu0 0.0
        %1283 = vmatprep.subr.mxu0 0.0
        %1284 = vmatpush1.msra.mxu0 0.0
        %1285 = vmatprep.subr.mxu0 0.0
        %1286 = vmatpush1.msra.mxu0 0.0
        %1287 = vmatprep.subr.mxu0 0.0
        %1288 = vmatpush1.msra.mxu0 0.0
        %1289 = vmatprep.subr.mxu0 0.0
        %1290 = vmatpush1.msra.mxu0 0.0
        %1291 = vmatprep.subr.mxu0 0.0
        %1292 = vmatpush1.msra.mxu0 0.0
        %1293 = vmatprep.subr.mxu0 0.0
        %1294 = vmatpush1.msra.mxu0 0.0
        %1295 = vmatprep.subr.mxu0 0.0
        %1296 = vmatpush1.msra.mxu0 0.0
        %1297 = vmatprep.subr.mxu0 0.0
        %1298 = vmatpush1.msra.mxu0 0.0
        %1299 = vmatprep.subr.mxu0 0.0
        %1300 = vmatpush1.msra.mxu0 0.0
        %1301 = vmatprep.subr.mxu0 0.0
        %1302 = vmatpush1.msra.mxu0 0.0
        %1303 = vmatprep.subr.mxu0 0.0
        %1304 = vmatpush1.msra.mxu0 0.0
        %1305 = vmatprep.subr.mxu0 0.0
        %1306 = vmatpush1.msra.mxu0 0.0
        %1307 = vmatprep.subr.mxu0 0.0
        %1308 = vmatpush1.msra.mxu0 0.0
        %1309 = vmatprep.subr.mxu0 0.0
        %1310 = vmatpush1.msra.mxu0 0.0
        %1311 = vmatprep.subr.mxu0 0.0
        %1312 = vmatpush1.msra.mxu0 0.0
        %1313 = vmatprep.subr.mxu0 0.0
        %1314 = vmatpush1.msra.mxu0 0.0
        %1315 = vmatprep.subr.mxu0 0.0
        %1316 = vmatpush1.msra.mxu0 0.0
        %1317 = vmatprep.subr.mxu0 0.0
        %1318 = vmatpush1.msra.mxu0 0.0
        %1319 = vmatprep.subr.mxu0 0.0
        %1320 = vmatpush1.msra.mxu0 0.0
        %1321 = vmatprep.subr.mxu0 0.0
        %1322 = vmatpush1.msra.mxu0 0.0
        %1323 = vmatprep.subr.mxu0 0.0
        %1324 = vmatpush1.msra.mxu0 0.0
        %1325 = vmatprep.subr.mxu0 0.0
        %1326 = vmatpush1.msra.mxu0 0.0
        %1327 = vmatprep.subr.mxu0 0.0
        %1328 = vmatpush1.msra.mxu0 0.0
        %1329 = vmatprep.mubr.f32.mxu0 0.0
        %1330 = vmatmul.mubr.f32.gmra.mrb[0].mxu0 %v1257
        %v1331 = vpop.f32.mrb[0].mxu0
        %v1332 = vadd.f32 0.0, %v1331
        %v1333 = vpop.f32.mrb[0].mxu0
        %v1334 = vadd.f32 0.0, %v1333
        %1335 = vdwg.mxu0
        %1336 = vmatprep.subr.mxu0 0.0
        %1337 = vmatpush1.msra.mxu0 %v1263
        %1338 = vmatprep.subr.mxu0 0.0
        %1339 = vmatpush1.msra.mxu0 0.0
        %1340 = vmatprep.subr.mxu0 0.0
        %1341 = vmatpush1.msra.mxu0 0.0
        %1342 = vmatprep.subr.mxu0 0.0
        %1343 = vmatpush1.msra.mxu0 0.0
        %1344 = vmatprep.subr.mxu0 0.0
        %1345 = vmatpush1.msra.mxu0 0.0
        %1346 = vmatprep.subr.mxu0 0.0
        %1347 = vmatpush1.msra.mxu0 0.0
        %1348 = vmatprep.subr.mxu0 0.0
        %1349 = vmatpush1.msra.mxu0 0.0
        %1350 = vmatprep.subr.mxu0 0.0
        %1351 = vmatpush1.msra.mxu0 0.0
        %1352 = vmatprep.subr.mxu0 0.0
        %1353 = vmatpush1.msra.mxu0 0.0
        %1354 = vmatprep.subr.mxu0 0.0
        %1355 = vmatpush1.msra.mxu0 0.0
        %1356 = vmatprep.subr.mxu0 0.0
        %1357 = vmatpush1.msra.mxu0 0.0
        %1358 = vmatprep.subr.mxu0 0.0
        %1359 = vmatpush1.msra.mxu0 0.0
        %1360 = vmatprep.subr.mxu0 0.0
        %1361 = vmatpush1.msra.mxu0 0.0
        %1362 = vmatprep.subr.mxu0 0.0
        %1363 = vmatpush1.msra.mxu0 0.0
        %1364 = vmatprep.subr.mxu0 0.0
        %1365 = vmatpush1.msra.mxu0 0.0
        %1366 = vmatprep.subr.mxu0 0.0
        %1367 = vmatpush1.msra.mxu0 0.0
        %1368 = vmatprep.subr.mxu0 0.0
        %1369 = vmatpush1.msra.mxu0 0.0
        %1370 = vmatprep.subr.mxu0 0.0
        %1371 = vmatpush1.msra.mxu0 0.0
        %1372 = vmatprep.subr.mxu0 0.0
        %1373 = vmatpush1.msra.mxu0 0.0
        %1374 = vmatprep.subr.mxu0 0.0
        %1375 = vmatpush1.msra.mxu0 0.0
        %1376 = vmatprep.subr.mxu0 0.0
        %1377 = vmatpush1.msra.mxu0 0.0
        %1378 = vmatprep.subr.mxu0 0.0
        %1379 = vmatpush1.msra.mxu0 0.0
        %1380 = vmatprep.subr.mxu0 0.0
        %1381 = vmatpush1.msra.mxu0 0.0
        %1382 = vmatprep.subr.mxu0 0.0
        %1383 = vmatpush1.msra.mxu0 0.0
        %1384 = vmatprep.subr.mxu0 0.0
        %1385 = vmatpush1.msra.mxu0 0.0
        %1386 = vmatprep.subr.mxu0 0.0
        %1387 = vmatpush1.msra.mxu0 0.0
        %1388 = vmatprep.subr.mxu0 0.0
        %1389 = vmatpush1.msra.mxu0 0.0
        %1390 = vmatprep.subr.mxu0 0.0
        %1391 = vmatpush1.msra.mxu0 0.0
        %1392 = vmatprep.subr.mxu0 0.0
        %1393 = vmatpush1.msra.mxu0 0.0
        %1394 = vmatprep.subr.mxu0 0.0
        %1395 = vmatpush1.msra.mxu0 0.0
        %1396 = vmatprep.subr.mxu0 0.0
        %1397 = vmatpush1.msra.mxu0 0.0
        %1398 = vmatprep.subr.mxu0 0.0
        %1399 = vmatpush1.msra.mxu0 0.0
        %1400 = vmatprep.mubr.f32.mxu0 0.0
        %1401 = vmatmul.mubr.f32.gmra.mrb[0].mxu0 %v1257
        %v1402 = vpop.f32.mrb[0].mxu0
        %v1403 = vadd.f32 0.0, %v1402
        %v1404 = vpop.f32.mrb[0].mxu0
        %1405 = vdwg.mxu0
        %v1406 = vadd.f32 %v1240, %v1332
        %v1407 = vadd.f32 %v1241, %v1334
        %v1408 = vadd.f32 %v1242, %v1403
        %1409 = vrot.lane.b32.xlu0 %v257, 100
        %v1410 = vpop.permute.xlu0 %1409
        %1411 = vrot.lane.b32.xlu0 %v254, 110
        %v1412 = vpop.permute.xlu0 %1411
        %1413 = vrot.lane.b32.xlu0 %v262, 110
        %v1414 = vpop.permute.xlu0 %1413
        %1415 = vrot.lane.b32.xlu0 %v255, 110
        %v1416 = vpop.permute.xlu0 %1415
        %1417 = vrot.lane.b32.xlu0 0.0, 110
        %v1418 = vpop.permute.xlu0 %1417
        %vm1419 = vcmask 900096
        %v1420 = vsel %vm1419, %v1412, %v1414
        %v1421 = vsel %vm1419, %v1414, %v1416
        %v1422 = vsel %vm1419, %v1416, %v1418
        %v1423 = vsel %vm279, %v1410, 0
        %v1425 = vsel %vm282, %v1420, 0
        %v1427 = vsel %vm282, %v1421, 0
        %v1429 = vsel %vm282, %v1422, 0
        %1431 = vmatprep.subr.mxu0 %v1427
        %1432 = vmatpush1.msra.mxu0 %v1425
        %1433 = vmatprep.subr.mxu0 0.0
        %1434 = vmatpush1.msra.mxu0 0.0
        %1435 = vmatprep.subr.mxu0 0.0
        %1436 = vmatpush1.msra.mxu0 0.0
        %1437 = vmatprep.subr.mxu0 0.0
        %1438 = vmatpush1.msra.mxu0 0.0
        %1439 = vmatprep.subr.mxu0 0.0
        %1440 = vmatpush1.msra.mxu0 0.0
        %1441 = vmatprep.subr.mxu0 0.0
        %1442 = vmatpush1.msra.mxu0 0.0
        %1443 = vmatprep.subr.mxu0 0.0
        %1444 = vmatpush1.msra.mxu0 0.0
        %1445 = vmatprep.subr.mxu0 0.0
        %1446 = vmatpush1.msra.mxu0 0.0
        %1447 = vmatprep.subr.mxu0 0.0
        %1448 = vmatpush1.msra.mxu0 0.0
        %1449 = vmatprep.subr.mxu0 0.0
        %1450 = vmatpush1.msra.mxu0 0.0
        %1451 = vmatprep.subr.mxu0 0.0
        %1452 = vmatpush1.msra.mxu0 0.0
        %1453 = vmatprep.subr.mxu0 0.0
        %1454 = vmatpush1.msra.mxu0 0.0
        %1455 = vmatprep.subr.mxu0 0.0
        %1456 = vmatpush1.msra.mxu0 0.0
        %1457 = vmatprep.subr.mxu0 0.0
        %1458 = vmatpush1.msra.mxu0 0.0
        %1459 = vmatprep.subr.mxu0 0.0
        %1460 = vmatpush1.msra.mxu0 0.0
        %1461 = vmatprep.subr.mxu0 0.0
        %1462 = vmatpush1.msra.mxu0 0.0
        %1463 = vmatprep.subr.mxu0 0.0
        %1464 = vmatpush1.msra.mxu0 0.0
        %1465 = vmatprep.subr.mxu0 0.0
        %1466 = vmatpush1.msra.mxu0 0.0
        %1467 = vmatprep.subr.mxu0 0.0
        %1468 = vmatpush1.msra.mxu0 0.0
        %1469 = vmatprep.subr.mxu0 0.0
        %1470 = vmatpush1.msra.mxu0 0.0
        %1471 = vmatprep.subr.mxu0 0.0
        %1472 = vmatpush1.msra.mxu0 0.0
        %1473 = vmatprep.subr.mxu0 0.0
        %1474 = vmatpush1.msra.mxu0 0.0
        %1475 = vmatprep.subr.mxu0 0.0
        %1476 = vmatpush1.msra.mxu0 0.0
        %1477 = vmatprep.subr.mxu0 0.0
        %1478 = vmatpush1.msra.mxu0 0.0
        %1479 = vmatprep.subr.mxu0 0.0
        %1480 = vmatpush1.msra.mxu0 0.0
        %1481 = vmatprep.subr.mxu0 0.0
        %1482 = vmatpush1.msra.mxu0 0.0
        %1483 = vmatprep.subr.mxu0 0.0
        %1484 = vmatpush1.msra.mxu0 0.0
        %1485 = vmatprep.subr.mxu0 0.0
        %1486 = vmatpush1.msra.mxu0 0.0
        %1487 = vmatprep.subr.mxu0 0.0
        %1488 = vmatpush1.msra.mxu0 0.0
        %1489 = vmatprep.subr.mxu0 0.0
        %1490 = vmatpush1.msra.mxu0 0.0
        %1491 = vmatprep.subr.mxu0 0.0
        %1492 = vmatpush1.msra.mxu0 0.0
        %1493 = vmatprep.subr.mxu0 0.0
        %1494 = vmatpush1.msra.mxu0 0.0
        %1495 = vmatprep.mubr.f32.mxu0 0.0
        %1496 = vmatmul.mubr.f32.gmra.mrb[0].mxu0 %v1423
        %v1497 = vpop.f32.mrb[0].mxu0
        %v1498 = vadd.f32 0.0, %v1497
        %v1499 = vpop.f32.mrb[0].mxu0
        %v1500 = vadd.f32 0.0, %v1499
        %1501 = vdwg.mxu0
        %1502 = vmatprep.subr.mxu0 0.0
        %1503 = vmatpush1.msra.mxu0 %v1429
        %1504 = vmatprep.subr.mxu0 0.0
        %1505 = vmatpush1.msra.mxu0 0.0
        %1506 = vmatprep.subr.mxu0 0.0
        %1507 = vmatpush1.msra.mxu0 0.0
        %1508 = vmatprep.subr.mxu0 0.0
        %1509 = vmatpush1.msra.mxu0 0.0
        %1510 = vmatprep.subr.mxu0 0.0
        %1511 = vmatpush1.msra.mxu0 0.0
        %1512 = vmatprep.subr.mxu0 0.0
        %1513 = vmatpush1.msra.mxu0 0.0
        %1514 = vmatprep.subr.mxu0 0.0
        %1515 = vmatpush1.msra.mxu0 0.0
        %1516 = vmatprep.subr.mxu0 0.0
        %1517 = vmatpush1.msra.mxu0 0.0
        %1518 = vmatprep.subr.mxu0 0.0
        %1519 = vmatpush1.msra.mxu0 0.0
        %1520 = vmatprep.subr.mxu0 0.0
        %1521 = vmatpush1.msra.mxu0 0.0
        %1522 = vmatprep.subr.mxu0 0.0
        %1523 = vmatpush1.msra.mxu0 0.0
        %1524 = vmatprep.subr.mxu0 0.0
        %1525 = vmatpush1.msra.mxu0 0.0
        %1526 = vmatprep.subr.mxu0 0.0
        %1527 = vmatpush1.msra.mxu0 0.0
        %1528 = vmatprep.subr.mxu0 0.0
        %1529 = vmatpush1.msra.mxu0 0.0
        %1530 = vmatprep.subr.mxu0 0.0
        %1531 = vmatpush1.msra.mxu0 0.0
        %1532 = vmatprep.subr.mxu0 0.0
        %1533 = vmatpush1.msra.mxu0 0.0
        %1534 = vmatprep.subr.mxu0 0.0
        %1535 = vmatpush1.msra.mxu0 0.0
        %1536 = vmatprep.subr.mxu0 0.0
        %1537 = vmatpush1.msra.mxu0 0.0
        %1538 = vmatprep.subr.mxu0 0.0
        %1539 = vmatpush1.msra.mxu0 0.0
        %1540 = vmatprep.subr.mxu0 0.0
        %1541 = vmatpush1.msra.mxu0 0.0
        %1542 = vmatprep.subr.mxu0 0.0
        %1543 = vmatpush1.msra.mxu0 0.0
        %1544 = vmatprep.subr.mxu0 0.0
        %1545 = vmatpush1.msra.mxu0 0.0
        %1546 = vmatprep.subr.mxu0 0.0
        %1547 = vmatpush1.msra.mxu0 0.0
        %1548 = vmatprep.subr.mxu0 0.0
        %1549 = vmatpush1.msra.mxu0 0.0
        %1550 = vmatprep.subr.mxu0 0.0
        %1551 = vmatpush1.msra.mxu0 0.0
        %1552 = vmatprep.subr.mxu0 0.0
        %1553 = vmatpush1.msra.mxu0 0.0
        %1554 = vmatprep.subr.mxu0 0.0
        %1555 = vmatpush1.msra.mxu0 0.0
        %1556 = vmatprep.subr.mxu0 0.0
        %1557 = vmatpush1.msra.mxu0 0.0
        %1558 = vmatprep.subr.mxu0 0.0
        %1559 = vmatpush1.msra.mxu0 0.0
        %1560 = vmatprep.subr.mxu0 0.0
        %1561 = vmatpush1.msra.mxu0 0.0
        %1562 = vmatprep.subr.mxu0 0.0
        %1563 = vmatpush1.msra.mxu0 0.0
        %1564 = vmatprep.subr.mxu0 0.0
        %1565 = vmatpush1.msra.mxu0 0.0
        %1566 = vmatprep.mubr.f32.mxu0 0.0
        %1567 = vmatmul.mubr.f32.gmra.mrb[0].mxu0 %v1423
        %v1568 = vpop.f32.mrb[0].mxu0
        %v1569 = vadd.f32 0.0, %v1568
        %v1570 = vpop.f32.mrb[0].mxu0
        %1571 = vdwg.mxu0
        %v1572 = vadd.f32 %v1406, %v1498
        %v1573 = vadd.f32 %v1407, %v1500
        %v1574 = vadd.f32 %v1408, %v1569
        %1575 = vrot.lane.b32.xlu0 %v257, 96
        %v1576 = vpop.permute.xlu0 %1575
        %1577 = vrot.lane.b32.xlu0 %v254, 109
        %v1578 = vpop.permute.xlu0 %1577
        %1579 = vrot.lane.b32.xlu0 %v262, 109
        %v1580 = vpop.permute.xlu0 %1579
        %1581 = vrot.lane.b32.xlu0 %v255, 109
        %v1582 = vpop.permute.xlu0 %1581
        %1583 = vrot.lane.b32.xlu0 0.0, 109
        %v1584 = vpop.permute.xlu0 %1583
        %vm1585 = vcmask 891904
        %v1586 = vsel %vm1585, %v1578, %v1580
        %v1587 = vsel %vm1585, %v1580, %v1582
        %v1588 = vsel %vm1585, %v1582, %v1584
        %v1589 = vsel %vm279, %v1576, 0
        %v1591 = vsel %vm282, %v1586, 0
        %v1593 = vsel %vm282, %v1587, 0
        %v1595 = vsel %vm282, %v1588, 0
        %1597 = vmatprep.subr.mxu0 %v1593
        %1598 = vmatpush1.msra.mxu0 %v1591
        %1599 = vmatprep.subr.mxu0 0.0
        %1600 = vmatpush1.msra.mxu0 0.0
        %1601 = vmatprep.subr.mxu0 0.0
        %1602 = vmatpush1.msra.mxu0 0.0
        %1603 = vmatprep.subr.mxu0 0.0
        %1604 = vmatpush1.msra.mxu0 0.0
        %1605 = vmatprep.subr.mxu0 0.0
        %1606 = vmatpush1.msra.mxu0 0.0
        %1607 = vmatprep.subr.mxu0 0.0
        %1608 = vmatpush1.msra.mxu0 0.0
        %1609 = vmatprep.subr.mxu0 0.0
        %1610 = vmatpush1.msra.mxu0 0.0
        %1611 = vmatprep.subr.mxu0 0.0
        %1612 = vmatpush1.msra.mxu0 0.0
        %1613 = vmatprep.subr.mxu0 0.0
        %1614 = vmatpush1.msra.mxu0 0.0
        %1615 = vmatprep.subr.mxu0 0.0
        %1616 = vmatpush1.msra.mxu0 0.0
        %1617 = vmatprep.subr.mxu0 0.0
        %1618 = vmatpush1.msra.mxu0 0.0
        %1619 = vmatprep.subr.mxu0 0.0
        %1620 = vmatpush1.msra.mxu0 0.0
        %1621 = vmatprep.subr.mxu0 0.0
        %1622 = vmatpush1.msra.mxu0 0.0
        %1623 = vmatprep.subr.mxu0 0.0
        %1624 = vmatpush1.msra.mxu0 0.0
        %1625 = vmatprep.subr.mxu0 0.0
        %1626 = vmatpush1.msra.mxu0 0.0
        %1627 = vmatprep.subr.mxu0 0.0
        %1628 = vmatpush1.msra.mxu0 0.0
        %1629 = vmatprep.subr.mxu0 0.0
        %1630 = vmatpush1.msra.mxu0 0.0
        %1631 = vmatprep.subr.mxu0 0.0
        %1632 = vmatpush1.msra.mxu0 0.0
        %1633 = vmatprep.subr.mxu0 0.0
        %1634 = vmatpush1.msra.mxu0 0.0
        %1635 = vmatprep.subr.mxu0 0.0
        %1636 = vmatpush1.msra.mxu0 0.0
        %1637 = vmatprep.subr.mxu0 0.0
        %1638 = vmatpush1.msra.mxu0 0.0
        %1639 = vmatprep.subr.mxu0 0.0
        %1640 = vmatpush1.msra.mxu0 0.0
        %1641 = vmatprep.subr.mxu0 0.0
        %1642 = vmatpush1.msra.mxu0 0.0
        %1643 = vmatprep.subr.mxu0 0.0
        %1644 = vmatpush1.msra.mxu0 0.0
        %1645 = vmatprep.subr.mxu0 0.0
        %1646 = vmatpush1.msra.mxu0 0.0
        %1647 = vmatprep.subr.mxu0 0.0
        %1648 = vmatpush1.msra.mxu0 0.0
        %1649 = vmatprep.subr.mxu0 0.0
        %1650 = vmatpush1.msra.mxu0 0.0
        %1651 = vmatprep.subr.mxu0 0.0
        %1652 = vmatpush1.msra.mxu0 0.0
        %1653 = vmatprep.subr.mxu0 0.0
        %1654 = vmatpush1.msra.mxu0 0.0
        %1655 = vmatprep.subr.mxu0 0.0
        %1656 = vmatpush1.msra.mxu0 0.0
        %1657 = vmatprep.subr.mxu0 0.0
        %1658 = vmatpush1.msra.mxu0 0.0
        %1659 = vmatprep.subr.mxu0 0.0
        %1660 = vmatpush1.msra.mxu0 0.0
        %1661 = vmatprep.mubr.f32.mxu0 0.0
        %1662 = vmatmul.mubr.f32.gmra.mrb[0].mxu0 %v1589
        %v1663 = vpop.f32.mrb[0].mxu0
        %v1664 = vadd.f32 0.0, %v1663
        %v1665 = vpop.f32.mrb[0].mxu0
        %v1666 = vadd.f32 0.0, %v1665
        %1667 = vdwg.mxu0
        %1668 = vmatprep.subr.mxu0 0.0
        %1669 = vmatpush1.msra.mxu0 %v1595
        %1670 = vmatprep.subr.mxu0 0.0
        %1671 = vmatpush1.msra.mxu0 0.0
        %1672 = vmatprep.subr.mxu0 0.0
        %1673 = vmatpush1.msra.mxu0 0.0
        %1674 = vmatprep.subr.mxu0 0.0
        %1675 = vmatpush1.msra.mxu0 0.0
        %1676 = vmatprep.subr.mxu0 0.0
        %1677 = vmatpush1.msra.mxu0 0.0
        %1678 = vmatprep.subr.mxu0 0.0
        %1679 = vmatpush1.msra.mxu0 0.0
        %1680 = vmatprep.subr.mxu0 0.0
        %1681 = vmatpush1.msra.mxu0 0.0
        %1682 = vmatprep.subr.mxu0 0.0
        %1683 = vmatpush1.msra.mxu0 0.0
        %1684 = vmatprep.subr.mxu0 0.0
        %1685 = vmatpush1.msra.mxu0 0.0
        %1686 = vmatprep.subr.mxu0 0.0
        %1687 = vmatpush1.msra.mxu0 0.0
        %1688 = vmatprep.subr.mxu0 0.0
        %1689 = vmatpush1.msra.mxu0 0.0
        %1690 = vmatprep.subr.mxu0 0.0
        %1691 = vmatpush1.msra.mxu0 0.0
        %1692 = vmatprep.subr.mxu0 0.0
        %1693 = vmatpush1.msra.mxu0 0.0
        %1694 = vmatprep.subr.mxu0 0.0
        %1695 = vmatpush1.msra.mxu0 0.0
        %1696 = vmatprep.subr.mxu0 0.0
        %1697 = vmatpush1.msra.mxu0 0.0
        %1698 = vmatprep.subr.mxu0 0.0
        %1699 = vmatpush1.msra.mxu0 0.0
        %1700 = vmatprep.subr.mxu0 0.0
        %1701 = vmatpush1.msra.mxu0 0.0
        %1702 = vmatprep.subr.mxu0 0.0
        %1703 = vmatpush1.msra.mxu0 0.0
        %1704 = vmatprep.subr.mxu0 0.0
        %1705 = vmatpush1.msra.mxu0 0.0
        %1706 = vmatprep.subr.mxu0 0.0
        %1707 = vmatpush1.msra.mxu0 0.0
        %1708 = vmatprep.subr.mxu0 0.0
        %1709 = vmatpush1.msra.mxu0 0.0
        %1710 = vmatprep.subr.mxu0 0.0
        %1711 = vmatpush1.msra.mxu0 0.0
        %1712 = vmatprep.subr.mxu0 0.0
        %1713 = vmatpush1.msra.mxu0 0.0
        %1714 = vmatprep.subr.mxu0 0.0
        %1715 = vmatpush1.msra.mxu0 0.0
        %1716 = vmatprep.subr.mxu0 0.0
        %1717 = vmatpush1.msra.mxu0 0.0
        %1718 = vmatprep.subr.mxu0 0.0
        %1719 = vmatpush1.msra.mxu0 0.0
        %1720 = vmatprep.subr.mxu0 0.0
        %1721 = vmatpush1.msra.mxu0 0.0
        %1722 = vmatprep.subr.mxu0 0.0
        %1723 = vmatpush1.msra.mxu0 0.0
        %1724 = vmatprep.subr.mxu0 0.0
        %1725 = vmatpush1.msra.mxu0 0.0
        %1726 = vmatprep.subr.mxu0 0.0
        %1727 = vmatpush1.msra.mxu0 0.0
        %1728 = vmatprep.subr.mxu0 0.0
        %1729 = vmatpush1.msra.mxu0 0.0
        %1730 = vmatprep.subr.mxu0 0.0
        %1731 = vmatpush1.msra.mxu0 0.0
        %1732 = vmatprep.mubr.f32.mxu0 0.0
        %1733 = vmatmul.mubr.f32.gmra.mrb[0].mxu0 %v1589
        %v1734 = vpop.f32.mrb[0].mxu0
        %v1735 = vadd.f32 0.0, %v1734
        %v1736 = vpop.f32.mrb[0].mxu0
        %1737 = vdwg.mxu0
        %v1738 = vadd.f32 %v1572, %v1664
        %v1739 = vadd.f32 %v1573, %v1666
        %v1740 = vadd.f32 %v1574, %v1735
        %v1742 = vlaneseq
        %v1743 = vshrl.u32 %v1742, 7
        %v1744 = vsub.s32 0, %v1743
        %v1745 = vrot.slane %v256, %v1744
        %v1746 = vlaneseq
        %v1747 = vshrl.u32 %v1746, 7
        %v1748 = vsub.s32 1, %v1747
        %v1749 = vrot.slane %v256, %v1748
        %v1750 = vlaneseq
        %v1751 = vshrl.u32 %v1750, 7
        %v1752 = vsub.s32 2, %v1751
        %v1753 = vrot.slane %v256, %v1752
        %v1757 = vmul.f32 %v1738, %v1745
        %v1758 = vmul.f32 %v1739, %v1749
        %v1759 = vmul.f32 %v1740, %v1753
        %v1760 = vsel %vm282, %v1757, 0.0
        %v1761 = vsel %vm282, %v1758, 0.0
        %v1762 = vadd.f32 %v1760, %v1761
        %v1763 = vsel %vm282, %v1759, 0.0
        %v1764 = vadd.f32 %v1762, %v1763
        %1765 = vadd.xlane.f32.xlu0 %v1764
        %v1766 = vpop.xlane.xlu0 %1765
        %v1767 = vmul.f32 %v1757, %v1757
        %v1768 = vmul.f32 %v1758, %v1758
        %v1769 = vmul.f32 %v1759, %v1759
        %v1770 = vsel %vm282, %v1767, 0.0
        %v1771 = vsel %vm282, %v1768, 0.0
        %v1772 = vadd.f32 %v1770, %v1771
        %v1773 = vsel %vm282, %v1769, 0.0
        %v1774 = vadd.f32 %v1772, %v1773
        %1775 = vadd.xlane.f32.xlu0 %v1774
        %v1776 = vpop.xlane.xlu0 %1775
        %v1777 = vmul.f32 %v1766, 0.00390625
        %v1778 = vmul.f32 %v1776, 0.00390625
        %v1779 = vmul.f32 %v1777, %v1777
        %v1780 = vsub.f32 %v1778, %v1779
        %v1781 = vsub.f32 %v1738, %v1777
        %v1782 = vsub.f32 %v1739, %v1777
        %v1783 = vsub.f32 %v1740, %v1777
        %v1784 = vadd.f32 %v1780, 1e-05
        %v1785 = vrsqrt.pop %v1784
        %v1786 = vmul.f32 %v1781, %v1785
        %v1787 = vmul.f32 %v1782, %v1785
        %v1788 = vmul.f32 %v1783, %v1785
        %1790 = vset.pattern.permute.xlu0 0
        %1791 = vperm.xlu0 %1790, %v259
        %v1792 = vpop.permute.xlu0 %1791
        %v1794 = vmul.f32 %v1786, %v1792
        %v1795 = vmul.f32 %v1787, %v1792
        %v1796 = vmul.f32 %v1788, %v1792
        %1797 = vset.pattern.permute.xlu0 1
        %1798 = vperm.xlu0 %1797, %v259
        %v1799 = vpop.permute.xlu0 %1798
        %v1801 = vadd.f32 %v1794, %v1799
        %v1802 = vadd.f32 %v1795, %v1799
        %v1803 = vadd.f32 %v1796, %v1799
        %v1804 = vmax.f32 %v1801, 0.0
        %v1805 = vmax.f32 %v1802, 0.0
        %v1806 = vmax.f32 %v1803, 0.0
        %v1807 = vmul.f32 %v1804, %v1745
        %v1808 = vmul.f32 %v1805, %v1749
        %v1809 = vmul.f32 %v1806, %v1753
        %1811 = vrot.lane.b32.xlu0 %v258, 124
        %v1812 = vpop.permute.xlu0 %1811
        %1816 = vrot.lane.b32.xlu0 %v1807, 18
        %v1817 = vpop.permute.xlu0 %1816
        %1818 = vrot.lane.b32.xlu0 %v1808, 18
        %v1819 = vpop.permute.xlu0 %1818
        %1820 = vrot.lane.b32.xlu0 %v1809, 18
        %v1821 = vpop.permute.xlu0 %1820
        %v1822 = vsel %vm275, %v268, %v1817
        %v1823 = vsel %vm275, %v1817, %v1819
        %v1824 = vsel %vm275, %v1819, %v1821
        %v1825 = vsel %vm279, %v1812, 0
        %v1827 = vsel %vm282, %v1822, 0
        %v1829 = vsel %vm282, %v1823, 0
        %v1831 = vsel %vm282, %v1824, 0
        %1833 = vmatprep.subr.mxu0 %v1829
        %1834 = vmatpush1.msra.mxu0 %v1827
        %1835 = vmatprep.subr.mxu0 0.0
        %1836 = vmatpush1.msra.mxu0 0.0
        %1837 = vmatprep.subr.mxu0 0.0
        %1838 = vmatpush1.msra.mxu0 0.0
        %1839 = vmatprep.subr.mxu0 0.0
        %1840 = vmatpush1.msra.mxu0 0.0
        %1841 = vmatprep.subr.mxu0 0.0
        %1842 = vmatpush1.msra.mxu0 0.0
        %1843 = vmatprep.subr.mxu0 0.0
        %1844 = vmatpush1.msra.mxu0 0.0
        %1845 = vmatprep.subr.mxu0 0.0
        %1846 = vmatpush1.msra.mxu0 0.0
        %1847 = vmatprep.subr.mxu0 0.0
        %1848 = vmatpush1.msra.mxu0 0.0
        %1849 = vmatprep.subr.mxu0 0.0
        %1850 = vmatpush1.msra.mxu0 0.0
        %1851 = vmatprep.subr.mxu0 0.0
        %1852 = vmatpush1.msra.mxu0 0.0
        %1853 = vmatprep.subr.mxu0 0.0
        %1854 = vmatpush1.msra.mxu0 0.0
        %1855 = vmatprep.subr.mxu0 0.0
        %1856 = vmatpush1.msra.mxu0 0.0
        %1857 = vmatprep.subr.mxu0 0.0
        %1858 = vmatpush1.msra.mxu0 0.0
        %1859 = vmatprep.subr.mxu0 0.0
        %1860 = vmatpush1.msra.mxu0 0.0
        %1861 = vmatprep.subr.mxu0 0.0
        %1862 = vmatpush1.msra.mxu0 0.0
        %1863 = vmatprep.subr.mxu0 0.0
        %1864 = vmatpush1.msra.mxu0 0.0
        %1865 = vmatprep.subr.mxu0 0.0
        %1866 = vmatpush1.msra.mxu0 0.0
        %1867 = vmatprep.subr.mxu0 0.0
        %1868 = vmatpush1.msra.mxu0 0.0
        %1869 = vmatprep.subr.mxu0 0.0
        %1870 = vmatpush1.msra.mxu0 0.0
        %1871 = vmatprep.subr.mxu0 0.0
        %1872 = vmatpush1.msra.mxu0 0.0
        %1873 = vmatprep.subr.mxu0 0.0
        %1874 = vmatpush1.msra.mxu0 0.0
        %1875 = vmatprep.subr.mxu0 0.0
        %1876 = vmatpush1.msra.mxu0 0.0
        %1877 = vmatprep.subr.mxu0 0.0
        %1878 = vmatpush1.msra.mxu0 0.0
        %1879 = vmatprep.subr.mxu0 0.0
        %1880 = vmatpush1.msra.mxu0 0.0
        %1881 = vmatprep.subr.mxu0 0.0
        %1882 = vmatpush1.msra.mxu0 0.0
        %1883 = vmatprep.subr.mxu0 0.0
        %1884 = vmatpush1.msra.mxu0 0.0
        %1885 = vmatprep.subr.mxu0 0.0
        %1886 = vmatpush1.msra.mxu0 0.0
        %1887 = vmatprep.subr.mxu0 0.0
        %1888 = vmatpush1.msra.mxu0 0.0
        %1889 = vmatprep.subr.mxu0 0.0
        %1890 = vmatpush1.msra.mxu0 0.0
        %1891 = vmatprep.subr.mxu0 0.0
        %1892 = vmatpush1.msra.mxu0 0.0
        %1893 = vmatprep.subr.mxu0 0.0
        %1894 = vmatpush1.msra.mxu0 0.0
        %1895 = vmatprep.subr.mxu0 0.0
        %1896 = vmatpush1.msra.mxu0 0.0
        %1897 = vmatprep.mubr.f32.mxu0 0.0
        %1898 = vmatmul.mubr.f32.gmra.mrb[0].mxu0 %v1825
        %v1899 = vpop.f32.mrb[0].mxu0
        %v1900 = vadd.f32 0.0, %v1899
        %v1901 = vpop.f32.mrb[0].mxu0
        %v1902 = vadd.f32 0.0, %v1901
        %1903 = vdwg.mxu0
        %1904 = vmatprep.subr.mxu0 0.0
        %1905 = vmatpush1.msra.mxu0 %v1831
        %1906 = vmatprep.subr.mxu0 0.0
        %1907 = vmatpush1.msra.mxu0 0.0
        %1908 = vmatprep.subr.mxu0 0.0
        %1909 = vmatpush1.msra.mxu0 0.0
        %1910 = vmatprep.subr.mxu0 0.0
        %1911 = vmatpush1.msra.mxu0 0.0
        %1912 = vmatprep.subr.mxu0 0.0
        %1913 = vmatpush1.msra.mxu0 0.0
        %1914 = vmatprep.subr.mxu0 0.0
        %1915 = vmatpush1.msra.mxu0 0.0
        %1916 = vmatprep.subr.mxu0 0.0
        %1917 = vmatpush1.msra.mxu0 0.0
        %1918 = vmatprep.subr.mxu0 0.0
        %1919 = vmatpush1.msra.mxu0 0.0
        %1920 = vmatprep.subr.mxu0 0.0
        %1921 = vmatpush1.msra.mxu0 0.0
        %1922 = vmatprep.subr.mxu0 0.0
        %1923 = vmatpush1.msra.mxu0 0.0
        %1924 = vmatprep.subr.mxu0 0.0
        %1925 = vmatpush1.msra.mxu0 0.0
        %1926 = vmatprep.subr.mxu0 0.0
        %1927 = vmatpush1.msra.mxu0 0.0
        %1928 = vmatprep.subr.mxu0 0.0
        %1929 = vmatpush1.msra.mxu0 0.0
        %1930 = vmatprep.subr.mxu0 0.0
        %1931 = vmatpush1.msra.mxu0 0.0
        %1932 = vmatprep.subr.mxu0 0.0
        %1933 = vmatpush1.msra.mxu0 0.0
        %1934 = vmatprep.subr.mxu0 0.0
        %1935 = vmatpush1.msra.mxu0 0.0
        %1936 = vmatprep.subr.mxu0 0.0
        %1937 = vmatpush1.msra.mxu0 0.0
        %1938 = vmatprep.subr.mxu0 0.0
        %1939 = vmatpush1.msra.mxu0 0.0
        %1940 = vmatprep.subr.mxu0 0.0
        %1941 = vmatpush1.msra.mxu0 0.0
        %1942 = vmatprep.subr.mxu0 0.0
        %1943 = vmatpush1.msra.mxu0 0.0
        %1944 = vmatprep.subr.mxu0 0.0
        %1945 = vmatpush1.msra.mxu0 0.0
        %1946 = vmatprep.subr.mxu0 0.0
        %1947 = vmatpush1.msra.mxu0 0.0
        %1948 = vmatprep.subr.mxu0 0.0
        %1949 = vmatpush1.msra.mxu0 0.0
        %1950 = vmatprep.subr.mxu0 0.0
        %1951 = vmatpush1.msra.mxu0 0.0
        %1952 = vmatprep.subr.mxu0 0.0
        %1953 = vmatpush1.msra.mxu0 0.0
        %1954 = vmatprep.subr.mxu0 0.0
        %1955 = vmatpush1.msra.mxu0 0.0
        %1956 = vmatprep.subr.mxu0 0.0
        %1957 = vmatpush1.msra.mxu0 0.0
        %1958 = vmatprep.subr.mxu0 0.0
        %1959 = vmatpush1.msra.mxu0 0.0
        %1960 = vmatprep.subr.mxu0 0.0
        %1961 = vmatpush1.msra.mxu0 0.0
        %1962 = vmatprep.subr.mxu0 0.0
        %1963 = vmatpush1.msra.mxu0 0.0
        %1964 = vmatprep.subr.mxu0 0.0
        %1965 = vmatpush1.msra.mxu0 0.0
        %1966 = vmatprep.subr.mxu0 0.0
        %1967 = vmatpush1.msra.mxu0 0.0
        %1968 = vmatprep.mubr.f32.mxu0 0.0
        %1969 = vmatmul.mubr.f32.gmra.mrb[0].mxu0 %v1825
        %v1970 = vpop.f32.mrb[0].mxu0
        %v1971 = vadd.f32 0.0, %v1970
        %v1972 = vpop.f32.mrb[0].mxu0
        %1973 = vdwg.mxu0
        %1974 = vrot.lane.b32.xlu0 %v1807, 19
        %v1975 = vpop.permute.xlu0 %1974
        %1976 = vrot.lane.b32.xlu0 %v1808, 19
        %v1977 = vpop.permute.xlu0 %1976
        %1978 = vrot.lane.b32.xlu0 %v1809, 19
        %v1979 = vpop.permute.xlu0 %1978
        %v1980 = vsel %vm438, %v431, %v1975
        %v1981 = vsel %vm438, %v1975, %v1977
        %v1982 = vsel %vm438, %v1977, %v1979
        %v1983 = vsel %vm279, %v258, 0
        %v1985 = vsel %vm282, %v1980, 0
        %v1987 = vsel %vm282, %v1981, 0
        %v1989 = vsel %vm282, %v1982, 0
        %1991 = vmatprep.subr.mxu0 %v1987
        %1992 = vmatpush1.msra.mxu0 %v1985
        %1993 = vmatprep.subr.mxu0 0.0
        %1994 = vmatpush1.msra.mxu0 0.0
        %1995 = vmatprep.subr.mxu0 0.0
        %1996 = vmatpush1.msra.mxu0 0.0
        %1997 = vmatprep.subr.mxu0 0.0
        %1998 = vmatpush1.msra.mxu0 0.0
        %1999 = vmatprep.subr.mxu0 0.0
        %2000 = vmatpush1.msra.mxu0 0.0
        %2001 = vmatprep.subr.mxu0 0.0
        %2002 = vmatpush1.msra.mxu0 0.0
        %2003 = vmatprep.subr.mxu0 0.0
        %2004 = vmatpush1.msra.mxu0 0.0
        %2005 = vmatprep.subr.mxu0 0.0
        %2006 = vmatpush1.msra.mxu0 0.0
        %2007 = vmatprep.subr.mxu0 0.0
        %2008 = vmatpush1.msra.mxu0 0.0
        %2009 = vmatprep.subr.mxu0 0.0
        %2010 = vmatpush1.msra.mxu0 0.0
        %2011 = vmatprep.subr.mxu0 0.0
        %2012 = vmatpush1.msra.mxu0 0.0
        %2013 = vmatprep.subr.mxu0 0.0
        %2014 = vmatpush1.msra.mxu0 0.0
        %2015 = vmatprep.subr.mxu0 0.0
        %2016 = vmatpush1.msra.mxu0 0.0
        %2017 = vmatprep.subr.mxu0 0.0
        %2018 = vmatpush1.msra.mxu0 0.0
        %2019 = vmatprep.subr.mxu0 0.0
        %2020 = vmatpush1.msra.mxu0 0.0
        %2021 = vmatprep.subr.mxu0 0.0
        %2022 = vmatpush1.msra.mxu0 0.0
        %2023 = vmatprep.subr.mxu0 0.0
        %2024 = vmatpush1.msra.mxu0 0.0
        %2025 = vmatprep.subr.mxu0 0.0
        %2026 = vmatpush1.msra.mxu0 0.0
        %2027 = vmatprep.subr.mxu0 0.0
        %2028 = vmatpush1.msra.mxu0 0.0
        %2029 = vmatprep.subr.mxu0 0.0
        %2030 = vmatpush1.msra.mxu0 0.0
        %2031 = vmatprep.subr.mxu0 0.0
        %2032 = vmatpush1.msra.mxu0 0.0
        %2033 = vmatprep.subr.mxu0 0.0
        %2034 = vmatpush1.msra.mxu0 0.0
        %2035 = vmatprep.subr.mxu0 0.0
        %2036 = vmatpush1.msra.mxu0 0.0
        %2037 = vmatprep.subr.mxu0 0.0
        %2038 = vmatpush1.msra.mxu0 0.0
        %2039 = vmatprep.subr.mxu0 0.0
        %2040 = vmatpush1.msra.mxu0 0.0
        %2041 = vmatprep.subr.mxu0 0.0
        %2042 = vmatpush1.msra.mxu0 0.0
        %2043 = vmatprep.subr.mxu0 0.0
        %2044 = vmatpush1.msra.mxu0 0.0
        %2045 = vmatprep.subr.mxu0 0.0
        %2046 = vmatpush1.msra.mxu0 0.0
        %2047 = vmatprep.subr.mxu0 0.0
        %2048 = vmatpush1.msra.mxu0 0.0
        %2049 = vmatprep.subr.mxu0 0.0
        %2050 = vmatpush1.msra.mxu0 0.0
        %2051 = vmatprep.subr.mxu0 0.0
        %2052 = vmatpush1.msra.mxu0 0.0
        %2053 = vmatprep.subr.mxu0 0.0
        %2054 = vmatpush1.msra.mxu0 0.0
        %2055 = vmatprep.mubr.f32.mxu0 0.0
        %2056 = vmatmul.mubr.f32.gmra.mrb[0].mxu0 %v1983
        %v2057 = vpop.f32.mrb[0].mxu0
        %v2058 = vadd.f32 %v1900, %v2057
        %v2059 = vpop.f32.mrb[0].mxu0
        %v2060 = vadd.f32 %v1902, %v2059
        %2061 = vdwg.mxu0
        %2062 = vmatprep.subr.mxu0 0.0
        %2063 = vmatpush1.msra.mxu0 %v1989
        %2064 = vmatprep.subr.mxu0 0.0
        %2065 = vmatpush1.msra.mxu0 0.0
        %2066 = vmatprep.subr.mxu0 0.0
        %2067 = vmatpush1.msra.mxu0 0.0
        %2068 = vmatprep.subr.mxu0 0.0
        %2069 = vmatpush1.msra.mxu0 0.0
        %2070 = vmatprep.subr.mxu0 0.0
        %2071 = vmatpush1.msra.mxu0 0.0
        %2072 = vmatprep.subr.mxu0 0.0
        %2073 = vmatpush1.msra.mxu0 0.0
        %2074 = vmatprep.subr.mxu0 0.0
        %2075 = vmatpush1.msra.mxu0 0.0
        %2076 = vmatprep.subr.mxu0 0.0
        %2077 = vmatpush1.msra.mxu0 0.0
        %2078 = vmatprep.subr.mxu0 0.0
        %2079 = vmatpush1.msra.mxu0 0.0
        %2080 = vmatprep.subr.mxu0 0.0
        %2081 = vmatpush1.msra.mxu0 0.0
        %2082 = vmatprep.subr.mxu0 0.0
        %2083 = vmatpush1.msra.mxu0 0.0
        %2084 = vmatprep.subr.mxu0 0.0
        %2085 = vmatpush1.msra.mxu0 0.0
        %2086 = vmatprep.subr.mxu0 0.0
        %2087 = vmatpush1.msra.mxu0 0.0
        %2088 = vmatprep.subr.mxu0 0.0
        %2089 = vmatpush1.msra.mxu0 0.0
        %2090 = vmatprep.subr.mxu0 0.0
        %2091 = vmatpush1.msra.mxu0 0.0
        %2092 = vmatprep.subr.mxu0 0.0
        %2093 = vmatpush1.msra.mxu0 0.0
        %2094 = vmatprep.subr.mxu0 0.0
        %2095 = vmatpush1.msra.mxu0 0.0
        %2096 = vmatprep.subr.mxu0 0.0
        %2097 = vmatpush1.msra.mxu0 0.0
        %2098 = vmatprep.subr.mxu0 0.0
        %2099 = vmatpush1.msra.mxu0 0.0
        %2100 = vmatprep.subr.mxu0 0.0
        %2101 = vmatpush1.msra.mxu0 0.0
        %2102 = vmatprep.subr.mxu0 0.0
        %2103 = vmatpush1.msra.mxu0 0.0
        %2104 = vmatprep.subr.mxu0 0.0
        %2105 = vmatpush1.msra.mxu0 0.0
        %2106 = vmatprep.subr.mxu0 0.0
        %2107 = vmatpush1.msra.mxu0 0.0
        %2108 = vmatprep.subr.mxu0 0.0
        %2109 = vmatpush1.msra.mxu0 0.0
        %2110 = vmatprep.subr.mxu0 0.0
        %2111 = vmatpush1.msra.mxu0 0.0
        %2112 = vmatprep.subr.mxu0 0.0
        %2113 = vmatpush1.msra.mxu0 0.0
        %2114 = vmatprep.subr.mxu0 0.0
        %2115 = vmatpush1.msra.mxu0 0.0
        %2116 = vmatprep.subr.mxu0 0.0
        %2117 = vmatpush1.msra.mxu0 0.0
        %2118 = vmatprep.subr.mxu0 0.0
        %2119 = vmatpush1.msra.mxu0 0.0
        %2120 = vmatprep.subr.mxu0 0.0
        %2121 = vmatpush1.msra.mxu0 0.0
        %2122 = vmatprep.subr.mxu0 0.0
        %2123 = vmatpush1.msra.mxu0 0.0
        %2124 = vmatprep.subr.mxu0 0.0
        %2125 = vmatpush1.msra.mxu0 0.0
        %2126 = vmatprep.mubr.f32.mxu0 0.0
        %2127 = vmatmul.mubr.f32.gmra.mrb[0].mxu0 %v1983
        %v2128 = vpop.f32.mrb[0].mxu0
        %v2129 = vadd.f32 %v1971, %v2128
        %v2130 = vpop.f32.mrb[0].mxu0
        %2131 = vdwg.mxu0
        %2132 = vrot.lane.b32.xlu0 %v258, 120
        %v2133 = vpop.permute.xlu0 %2132
        %2134 = vrot.lane.b32.xlu0 %v1807, 17
        %v2135 = vpop.permute.xlu0 %2134
        %2136 = vrot.lane.b32.xlu0 %v1808, 17
        %v2137 = vpop.permute.xlu0 %2136
        %2138 = vrot.lane.b32.xlu0 %v1809, 17
        %v2139 = vpop.permute.xlu0 %2138
        %v2140 = vsel %vm601, %v594, %v2135
        %v2141 = vsel %vm601, %v2135, %v2137
        %v2142 = vsel %vm601, %v2137, %v2139
        %v2143 = vsel %vm279, %v2133, 0
        %v2145 = vsel %vm282, %v2140, 0
        %v2147 = vsel %vm282, %v2141, 0
        %v2149 = vsel %vm282, %v2142, 0
        %2151 = vmatprep.subr.mxu0 %v2147
        %2152 = vmatpush1.msra.mxu0 %v2145
        %2153 = vmatprep.subr.mxu0 0.0
        %2154 = vmatpush1.msra.mxu0 0.0
        %2155 = vmatprep.subr.mxu0 0.0
        %2156 = vmatpush1.msra.mxu0 0.0
        %2157 = vmatprep.subr.mxu0 0.0
        %2158 = vmatpush1.msra.mxu0 0.0
        %2159 = vmatprep.subr.mxu0 0.0
        %2160 = vmatpush1.msra.mxu0 0.0
        %2161 = vmatprep.subr.mxu0 0.0
        %2162 = vmatpush1.msra.mxu0 0.0
        %2163 = vmatprep.subr.mxu0 0.0
        %2164 = vmatpush1.msra.mxu0 0.0
        %2165 = vmatprep.subr.mxu0 0.0
        %2166 = vmatpush1.msra.mxu0 0.0
        %2167 = vmatprep.subr.mxu0 0.0
        %2168 = vmatpush1.msra.mxu0 0.0
        %2169 = vmatprep.subr.mxu0 0.0
        %2170 = vmatpush1.msra.mxu0 0.0
        %2171 = vmatprep.subr.mxu0 0.0
        %2172 = vmatpush1.msra.mxu0 0.0
        %2173 = vmatprep.subr.mxu0 0.0
        %2174 = vmatpush1.msra.mxu0 0.0
        %2175 = vmatprep.subr.mxu0 0.0
        %2176 = vmatpush1.msra.mxu0 0.0
        %2177 = vmatprep.subr.mxu0 0.0
        %2178 = vmatpush1.msra.mxu0 0.0
        %2179 = vmatprep.subr.mxu0 0.0
        %2180 = vmatpush1.msra.mxu0 0.0
        %2181 = vmatprep.subr.mxu0 0.0
        %2182 = vmatpush1.msra.mxu0 0.0
        %2183 = vmatprep.subr.mxu0 0.0
        %2184 = vmatpush1.msra.mxu0 0.0
        %2185 = vmatprep.subr.mxu0 0.0
        %2186 = vmatpush1.msra.mxu0 0.0
        %2187 = vmatprep.subr.mxu0 0.0
        %2188 = vmatpush1.msra.mxu0 0.0
        %2189 = vmatprep.subr.mxu0 0.0
        %2190 = vmatpush1.msra.mxu0 0.0
        %2191 = vmatprep.subr.mxu0 0.0
        %2192 = vmatpush1.msra.mxu0 0.0
        %2193 = vmatprep.subr.mxu0 0.0
        %2194 = vmatpush1.msra.mxu0 0.0
        %2195 = vmatprep.subr.mxu0 0.0
        %2196 = vmatpush1.msra.mxu0 0.0
        %2197 = vmatprep.subr.mxu0 0.0
        %2198 = vmatpush1.msra.mxu0 0.0
        %2199 = vmatprep.subr.mxu0 0.0
        %2200 = vmatpush1.msra.mxu0 0.0
        %2201 = vmatprep.subr.mxu0 0.0
        %2202 = vmatpush1.msra.mxu0 0.0
        %2203 = vmatprep.subr.mxu0 0.0
        %2204 = vmatpush1.msra.mxu0 0.0
        %2205 = vmatprep.subr.mxu0 0.0
        %2206 = vmatpush1.msra.mxu0 0.0
        %2207 = vmatprep.subr.mxu0 0.0
        %2208 = vmatpush1.msra.mxu0 0.0
        %2209 = vmatprep.subr.mxu0 0.0
        %2210 = vmatpush1.msra.mxu0 0.0
        %2211 = vmatprep.subr.mxu0 0.0
        %2212 = vmatpush1.msra.mxu0 0.0
        %2213 = vmatprep.subr.mxu0 0.0
        %2214 = vmatpush1.msra.mxu0 0.0
        %2215 = vmatprep.mubr.f32.mxu0 0.0
        %2216 = vmatmul.mubr.f32.gmra.mrb[0].mxu0 %v2143
        %v2217 = vpop.f32.mrb[0].mxu0
        %v2218 = vadd.f32 0.0, %v2217
        %v2219 = vpop.f32.mrb[0].mxu0
        %v2220 = vadd.f32 0.0, %v2219
        %2221 = vdwg.mxu0
        %2222 = vmatprep.subr.mxu0 0.0
        %2223 = vmatpush1.msra.mxu0 %v2149
        %2224 = vmatprep.subr.mxu0 0.0
        %2225 = vmatpush1.msra.mxu0 0.0
        %2226 = vmatprep.subr.mxu0 0.0
        %2227 = vmatpush1.msra.mxu0 0.0
        %2228 = vmatprep.subr.mxu0 0.0
        %2229 = vmatpush1.msra.mxu0 0.0
        %2230 = vmatprep.subr.mxu0 0.0
        %2231 = vmatpush1.msra.mxu0 0.0
        %2232 = vmatprep.subr.mxu0 0.0
        %2233 = vmatpush1.msra.mxu0 0.0
        %2234 = vmatprep.subr.mxu0 0.0
        %2235 = vmatpush1.msra.mxu0 0.0
        %2236 = vmatprep.subr.mxu0 0.0
        %2237 = vmatpush1.msra.mxu0 0.0
        %2238 = vmatprep.subr.mxu0 0.0
        %2239 = vmatpush1.msra.mxu0 0.0
        %2240 = vmatprep.subr.mxu0 0.0
        %2241 = vmatpush1.msra.mxu0 0.0
        %2242 = vmatprep.subr.mxu0 0.0
        %2243 = vmatpush1.msra.mxu0 0.0
        %2244 = vmatprep.subr.mxu0 0.0
        %2245 = vmatpush1.msra.mxu0 0.0
        %2246 = vmatprep.subr.mxu0 0.0
        %2247 = vmatpush1.msra.mxu0 0.0
        %2248 = vmatprep.subr.mxu0 0.0
        %2249 = vmatpush1.msra.mxu0 0.0
        %2250 = vmatprep.subr.mxu0 0.0
        %2251 = vmatpush1.msra.mxu0 0.0
        %2252 = vmatprep.subr.mxu0 0.0
        %2253 = vmatpush1.msra.mxu0 0.0
        %2254 = vmatprep.subr.mxu0 0.0
        %2255 = vmatpush1.msra.mxu0 0.0
        %2256 = vmatprep.subr.mxu0 0.0
        %2257 = vmatpush1.msra.mxu0 0.0
        %2258 = vmatprep.subr.mxu0 0.0
        %2259 = vmatpush1.msra.mxu0 0.0
        %2260 = vmatprep.subr.mxu0 0.0
        %2261 = vmatpush1.msra.mxu0 0.0
        %2262 = vmatprep.subr.mxu0 0.0
        %2263 = vmatpush1.msra.mxu0 0.0
        %2264 = vmatprep.subr.mxu0 0.0
        %2265 = vmatpush1.msra.mxu0 0.0
        %2266 = vmatprep.subr.mxu0 0.0
        %2267 = vmatpush1.msra.mxu0 0.0
        %2268 = vmatprep.subr.mxu0 0.0
        %2269 = vmatpush1.msra.mxu0 0.0
        %2270 = vmatprep.subr.mxu0 0.0
        %2271 = vmatpush1.msra.mxu0 0.0
        %2272 = vmatprep.subr.mxu0 0.0
        %2273 = vmatpush1.msra.mxu0 0.0
        %2274 = vmatprep.subr.mxu0 0.0
        %2275 = vmatpush1.msra.mxu0 0.0
        %2276 = vmatprep.subr.mxu0 0.0
        %2277 = vmatpush1.msra.mxu0 0.0
        %2278 = vmatprep.subr.mxu0 0.0
        %2279 = vmatpush1.msra.mxu0 0.0
        %2280 = vmatprep.subr.mxu0 0.0
        %2281 = vmatpush1.msra.mxu0 0.0
        %2282 = vmatprep.subr.mxu0 0.0
        %2283 = vmatpush1.msra.mxu0 0.0
        %2284 = vmatprep.subr.mxu0 0.0
        %2285 = vmatpush1.msra.mxu0 0.0
        %2286 = vmatprep.mubr.f32.mxu0 0.0
        %2287 = vmatmul.mubr.f32.gmra.mrb[0].mxu0 %v2143
        %v2288 = vpop.f32.mrb[0].mxu0
        %v2289 = vadd.f32 0.0, %v2288
        %v2290 = vpop.f32.mrb[0].mxu0
        %2291 = vdwg.mxu0
        %v2292 = vadd.f32 %v2058, %v2218
        %v2293 = vadd.f32 %v2060, %v2220
        %v2294 = vadd.f32 %v2129, %v2289
        %2295 = vrot.lane.b32.xlu0 %v258, 116
        %v2296 = vpop.permute.xlu0 %2295
        %2297 = vrot.lane.b32.xlu0 %v1807, 1
        %v2298 = vpop.permute.xlu0 %2297
        %2299 = vrot.lane.b32.xlu0 %v1808, 1
        %v2300 = vpop.permute.xlu0 %2299
        %2301 = vrot.lane.b32.xlu0 %v1809, 1
        %v2302 = vpop.permute.xlu0 %2301
        %v2303 = vsel %vm767, %v760, %v2298
        %v2304 = vsel %vm767, %v2298, %v2300
        %v2305 = vsel %vm767, %v2300, %v2302
        %v2306 = vsel %vm279, %v2296, 0
        %v2308 = vsel %vm282, %v2303, 0
        %v2310 = vsel %vm282, %v2304, 0
        %v2312 = vsel %vm282, %v2305, 0
        %2314 = vmatprep.subr.mxu0 %v2310
        %2315 = vmatpush1.msra.mxu0 %v2308
        %2316 = vmatprep.subr.mxu0 0.0
        %2317 = vmatpush1.msra.mxu0 0.0
        %2318 = vmatprep.subr.mxu0 0.0
        %2319 = vmatpush1.msra.mxu0 0.0
        %2320 = vmatprep.subr.mxu0 0.0
        %2321 = vmatpush1.msra.mxu0 0.0
        %2322 = vmatprep.subr.mxu0 0.0
        %2323 = vmatpush1.msra.mxu0 0.0
        %2324 = vmatprep.subr.mxu0 0.0
        %2325 = vmatpush1.msra.mxu0 0.0
        %2326 = vmatprep.subr.mxu0 0.0
        %2327 = vmatpush1.msra.mxu0 0.0
        %2328 = vmatprep.subr.mxu0 0.0
        %2329 = vmatpush1.msra.mxu0 0.0
        %2330 = vmatprep.subr.mxu0 0.0
        %2331 = vmatpush1.msra.mxu0 0.0
        %2332 = vmatprep.subr.mxu0 0.0
        %2333 = vmatpush1.msra.mxu0 0.0
        %2334 = vmatprep.subr.mxu0 0.0
        %2335 = vmatpush1.msra.mxu0 0.0
        %2336 = vmatprep.subr.mxu0 0.0
        %2337 = vmatpush1.msra.mxu0 0.0
        %2338 = vmatprep.subr.mxu0 0.0
        %2339 = vmatpush1.msra.mxu0 0.0
        %2340 = vmatprep.subr.mxu0 0.0
        %2341 = vmatpush1.msra.mxu0 0.0
        %2342 = vmatprep.subr.mxu0 0.0
        %2343 = vmatpush1.msra.mxu0 0.0
        %2344 = vmatprep.subr.mxu0 0.0
        %2345 = vmatpush1.msra.mxu0 0.0
        %2346 = vmatprep.subr.mxu0 0.0
        %2347 = vmatpush1.msra.mxu0 0.0
        %2348 = vmatprep.subr.mxu0 0.0
        %2349 = vmatpush1.msra.mxu0 0.0
        %2350 = vmatprep.subr.mxu0 0.0
        %2351 = vmatpush1.msra.mxu0 0.0
        %2352 = vmatprep.subr.mxu0 0.0
        %2353 = vmatpush1.msra.mxu0 0.0
        %2354 = vmatprep.subr.mxu0 0.0
        %2355 = vmatpush1.msra.mxu0 0.0
        %2356 = vmatprep.subr.mxu0 0.0
        %2357 = vmatpush1.msra.mxu0 0.0
        %2358 = vmatprep.subr.mxu0 0.0
        %2359 = vmatpush1.msra.mxu0 0.0
        %2360 = vmatprep.subr.mxu0 0.0
        %2361 = vmatpush1.msra.mxu0 0.0
        %2362 = vmatprep.subr.mxu0 0.0
        %2363 = vmatpush1.msra.mxu0 0.0
        %2364 = vmatprep.subr.mxu0 0.0
        %2365 = vmatpush1.msra.mxu0 0.0
        %2366 = vmatprep.subr.mxu0 0.0
        %2367 = vmatpush1.msra.mxu0 0.0
        %2368 = vmatprep.subr.mxu0 0.0
        %2369 = vmatpush1.msra.mxu0 0.0
        %2370 = vmatprep.subr.mxu0 0.0
        %2371 = vmatpush1.msra.mxu0 0.0
        %2372 = vmatprep.subr.mxu0 0.0
        %2373 = vmatpush1.msra.mxu0 0.0
        %2374 = vmatprep.subr.mxu0 0.0
        %2375 = vmatpush1.msra.mxu0 0.0
        %2376 = vmatprep.subr.mxu0 0.0
        %2377 = vmatpush1.msra.mxu0 0.0
        %2378 = vmatprep.mubr.f32.mxu0 0.0
        %2379 = vmatmul.mubr.f32.gmra.mrb[0].mxu0 %v2306
        %v2380 = vpop.f32.mrb[0].mxu0
        %v2381 = vadd.f32 0.0, %v2380
        %v2382 = vpop.f32.mrb[0].mxu0
        %v2383 = vadd.f32 0.0, %v2382
        %2384 = vdwg.mxu0
        %2385 = vmatprep.subr.mxu0 0.0
        %2386 = vmatpush1.msra.mxu0 %v2312
        %2387 = vmatprep.subr.mxu0 0.0
        %2388 = vmatpush1.msra.mxu0 0.0
        %2389 = vmatprep.subr.mxu0 0.0
        %2390 = vmatpush1.msra.mxu0 0.0
        %2391 = vmatprep.subr.mxu0 0.0
        %2392 = vmatpush1.msra.mxu0 0.0
        %2393 = vmatprep.subr.mxu0 0.0
        %2394 = vmatpush1.msra.mxu0 0.0
        %2395 = vmatprep.subr.mxu0 0.0
        %2396 = vmatpush1.msra.mxu0 0.0
        %2397 = vmatprep.subr.mxu0 0.0
        %2398 = vmatpush1.msra.mxu0 0.0
        %2399 = vmatprep.subr.mxu0 0.0
        %2400 = vmatpush1.msra.mxu0 0.0
        %2401 = vmatprep.subr.mxu0 0.0
        %2402 = vmatpush1.msra.mxu0 0.0
        %2403 = vmatprep.subr.mxu0 0.0
        %2404 = vmatpush1.msra.mxu0 0.0
        %2405 = vmatprep.subr.mxu0 0.0
        %2406 = vmatpush1.msra.mxu0 0.0
        %2407 = vmatprep.subr.mxu0 0.0
        %2408 = vmatpush1.msra.mxu0 0.0
        %2409 = vmatprep.subr.mxu0 0.0
        %2410 = vmatpush1.msra.mxu0 0.0
        %2411 = vmatprep.subr.mxu0 0.0
        %2412 = vmatpush1.msra.mxu0 0.0
        %2413 = vmatprep.subr.mxu0 0.0
        %2414 = vmatpush1.msra.mxu0 0.0
        %2415 = vmatprep.subr.mxu0 0.0
        %2416 = vmatpush1.msra.mxu0 0.0
        %2417 = vmatprep.subr.mxu0 0.0
        %2418 = vmatpush1.msra.mxu0 0.0
        %2419 = vmatprep.subr.mxu0 0.0
        %2420 = vmatpush1.msra.mxu0 0.0
        %2421 = vmatprep.subr.mxu0 0.0
        %2422 = vmatpush1.msra.mxu0 0.0
        %2423 = vmatprep.subr.mxu0 0.0
        %2424 = vmatpush1.msra.mxu0 0.0
        %2425 = vmatprep.subr.mxu0 0.0
        %2426 = vmatpush1.msra.mxu0 0.0
        %2427 = vmatprep.subr.mxu0 0.0
        %2428 = vmatpush1.msra.mxu0 0.0
        %2429 = vmatprep.subr.mxu0 0.0
        %2430 = vmatpush1.msra.mxu0 0.0
        %2431 = vmatprep.subr.mxu0 0.0
        %2432 = vmatpush1.msra.mxu0 0.0
        %2433 = vmatprep.subr.mxu0 0.0
        %2434 = vmatpush1.msra.mxu0 0.0
        %2435 = vmatprep.subr.mxu0 0.0
        %2436 = vmatpush1.msra.mxu0 0.0
        %2437 = vmatprep.subr.mxu0 0.0
        %2438 = vmatpush1.msra.mxu0 0.0
        %2439 = vmatprep.subr.mxu0 0.0
        %2440 = vmatpush1.msra.mxu0 0.0
        %2441 = vmatprep.subr.mxu0 0.0
        %2442 = vmatpush1.msra.mxu0 0.0
        %2443 = vmatprep.subr.mxu0 0.0
        %2444 = vmatpush1.msra.mxu0 0.0
        %2445 = vmatprep.subr.mxu0 0.0
        %2446 = vmatpush1.msra.mxu0 0.0
        %2447 = vmatprep.subr.mxu0 0.0
        %2448 = vmatpush1.msra.mxu0 0.0
        %2449 = vmatprep.mubr.f32.mxu0 0.0
        %2450 = vmatmul.mubr.f32.gmra.mrb[0].mxu0 %v2306
        %v2451 = vpop.f32.mrb[0].mxu0
        %v2452 = vadd.f32 0.0, %v2451
        %v2453 = vpop.f32.mrb[0].mxu0
        %2454 = vdwg.mxu0
        %v2455 = vadd.f32 %v2292, %v2381
        %v2456 = vadd.f32 %v2293, %v2383
        %v2457 = vadd.f32 %v2294, %v2452
        %2458 = vrot.lane.b32.xlu0 %v258, 112
        %v2459 = vpop.permute.xlu0 %2458
        %v2460 = vsel %vm279, %v2459, 0
        %v2462 = vsel %vm282, %v1807, 0
        %v2464 = vsel %vm282, %v1808, 0
        %v2466 = vsel %vm282, %v1809, 0
        %2468 = vmatprep.subr.mxu0 %v2464
        %2469 = vmatpush1.msra.mxu0 %v2462
        %2470 = vmatprep.subr.mxu0 0.0
        %2471 = vmatpush1.msra.mxu0 0.0
        %2472 = vmatprep.subr.mxu0 0.0
        %2473 = vmatpush1.msra.mxu0 0.0
        %2474 = vmatprep.subr.mxu0 0.0
        %2475 = vmatpush1.msra.mxu0 0.0
        %2476 = vmatprep.subr.mxu0 0.0
        %2477 = vmatpush1.msra.mxu0 0.0
        %2478 = vmatprep.subr.mxu0 0.0
        %2479 = vmatpush1.msra.mxu0 0.0
        %2480 = vmatprep.subr.mxu0 0.0
        %2481 = vmatpush1.msra.mxu0 0.0
        %2482 = vmatprep.subr.mxu0 0.0
        %2483 = vmatpush1.msra.mxu0 0.0
        %2484 = vmatprep.subr.mxu0 0.0
        %2485 = vmatpush1.msra.mxu0 0.0
        %2486 = vmatprep.subr.mxu0 0.0
        %2487 = vmatpush1.msra.mxu0 0.0
        %2488 = vmatprep.subr.mxu0 0.0
        %2489 = vmatpush1.msra.mxu0 0.0
        %2490 = vmatprep.subr.mxu0 0.0
        %2491 = vmatpush1.msra.mxu0 0.0
        %2492 = vmatprep.subr.mxu0 0.0
        %2493 = vmatpush1.msra.mxu0 0.0
        %2494 = vmatprep.subr.mxu0 0.0
        %2495 = vmatpush1.msra.mxu0 0.0
        %2496 = vmatprep.subr.mxu0 0.0
        %2497 = vmatpush1.msra.mxu0 0.0
        %2498 = vmatprep.subr.mxu0 0.0
        %2499 = vmatpush1.msra.mxu0 0.0
        %2500 = vmatprep.subr.mxu0 0.0
        %2501 = vmatpush1.msra.mxu0 0.0
        %2502 = vmatprep.subr.mxu0 0.0
        %2503 = vmatpush1.msra.mxu0 0.0
        %2504 = vmatprep.subr.mxu0 0.0
        %2505 = vmatpush1.msra.mxu0 0.0
        %2506 = vmatprep.subr.mxu0 0.0
        %2507 = vmatpush1.msra.mxu0 0.0
        %2508 = vmatprep.subr.mxu0 0.0
        %2509 = vmatpush1.msra.mxu0 0.0
        %2510 = vmatprep.subr.mxu0 0.0
        %2511 = vmatpush1.msra.mxu0 0.0
        %2512 = vmatprep.subr.mxu0 0.0
        %2513 = vmatpush1.msra.mxu0 0.0
        %2514 = vmatprep.subr.mxu0 0.0
        %2515 = vmatpush1.msra.mxu0 0.0
        %2516 = vmatprep.subr.mxu0 0.0
        %2517 = vmatpush1.msra.mxu0 0.0
        %2518 = vmatprep.subr.mxu0 0.0
        %2519 = vmatpush1.msra.mxu0 0.0
        %2520 = vmatprep.subr.mxu0 0.0
        %2521 = vmatpush1.msra.mxu0 0.0
        %2522 = vmatprep.subr.mxu0 0.0
        %2523 = vmatpush1.msra.mxu0 0.0
        %2524 = vmatprep.subr.mxu0 0.0
        %2525 = vmatpush1.msra.mxu0 0.0
        %2526 = vmatprep.subr.mxu0 0.0
        %2527 = vmatpush1.msra.mxu0 0.0
        %2528 = vmatprep.subr.mxu0 0.0
        %2529 = vmatpush1.msra.mxu0 0.0
        %2530 = vmatprep.subr.mxu0 0.0
        %2531 = vmatpush1.msra.mxu0 0.0
        %2532 = vmatprep.mubr.f32.mxu0 0.0
        %2533 = vmatmul.mubr.f32.gmra.mrb[0].mxu0 %v2460
        %v2534 = vpop.f32.mrb[0].mxu0
        %v2535 = vadd.f32 0.0, %v2534
        %v2536 = vpop.f32.mrb[0].mxu0
        %v2537 = vadd.f32 0.0, %v2536
        %2538 = vdwg.mxu0
        %2539 = vmatprep.subr.mxu0 0.0
        %2540 = vmatpush1.msra.mxu0 %v2466
        %2541 = vmatprep.subr.mxu0 0.0
        %2542 = vmatpush1.msra.mxu0 0.0
        %2543 = vmatprep.subr.mxu0 0.0
        %2544 = vmatpush1.msra.mxu0 0.0
        %2545 = vmatprep.subr.mxu0 0.0
        %2546 = vmatpush1.msra.mxu0 0.0
        %2547 = vmatprep.subr.mxu0 0.0
        %2548 = vmatpush1.msra.mxu0 0.0
        %2549 = vmatprep.subr.mxu0 0.0
        %2550 = vmatpush1.msra.mxu0 0.0
        %2551 = vmatprep.subr.mxu0 0.0
        %2552 = vmatpush1.msra.mxu0 0.0
        %2553 = vmatprep.subr.mxu0 0.0
        %2554 = vmatpush1.msra.mxu0 0.0
        %2555 = vmatprep.subr.mxu0 0.0
        %2556 = vmatpush1.msra.mxu0 0.0
        %2557 = vmatprep.subr.mxu0 0.0
        %2558 = vmatpush1.msra.mxu0 0.0
        %2559 = vmatprep.subr.mxu0 0.0
        %2560 = vmatpush1.msra.mxu0 0.0
        %2561 = vmatprep.subr.mxu0 0.0
        %2562 = vmatpush1.msra.mxu0 0.0
        %2563 = vmatprep.subr.mxu0 0.0
        %2564 = vmatpush1.msra.mxu0 0.0
        %2565 = vmatprep.subr.mxu0 0.0
        %2566 = vmatpush1.msra.mxu0 0.0
        %2567 = vmatprep.subr.mxu0 0.0
        %2568 = vmatpush1.msra.mxu0 0.0
        %2569 = vmatprep.subr.mxu0 0.0
        %2570 = vmatpush1.msra.mxu0 0.0
        %2571 = vmatprep.subr.mxu0 0.0
        %2572 = vmatpush1.msra.mxu0 0.0
        %2573 = vmatprep.subr.mxu0 0.0
        %2574 = vmatpush1.msra.mxu0 0.0
        %2575 = vmatprep.subr.mxu0 0.0
        %2576 = vmatpush1.msra.mxu0 0.0
        %2577 = vmatprep.subr.mxu0 0.0
        %2578 = vmatpush1.msra.mxu0 0.0
        %2579 = vmatprep.subr.mxu0 0.0
        %2580 = vmatpush1.msra.mxu0 0.0
        %2581 = vmatprep.subr.mxu0 0.0
        %2582 = vmatpush1.msra.mxu0 0.0
        %2583 = vmatprep.subr.mxu0 0.0
        %2584 = vmatpush1.msra.mxu0 0.0
        %2585 = vmatprep.subr.mxu0 0.0
        %2586 = vmatpush1.msra.mxu0 0.0
        %2587 = vmatprep.subr.mxu0 0.0
        %2588 = vmatpush1.msra.mxu0 0.0
        %2589 = vmatprep.subr.mxu0 0.0
        %2590 = vmatpush1.msra.mxu0 0.0
        %2591 = vmatprep.subr.mxu0 0.0
        %2592 = vmatpush1.msra.mxu0 0.0
        %2593 = vmatprep.subr.mxu0 0.0
        %2594 = vmatpush1.msra.mxu0 0.0
        %2595 = vmatprep.subr.mxu0 0.0
        %2596 = vmatpush1.msra.mxu0 0.0
        %2597 = vmatprep.subr.mxu0 0.0
        %2598 = vmatpush1.msra.mxu0 0.0
        %2599 = vmatprep.subr.mxu0 0.0
        %2600 = vmatpush1.msra.mxu0 0.0
        %2601 = vmatprep.subr.mxu0 0.0
        %2602 = vmatpush1.msra.mxu0 0.0
        %2603 = vmatprep.mubr.f32.mxu0 0.0
        %2604 = vmatmul.mubr.f32.gmra.mrb[0].mxu0 %v2460
        %v2605 = vpop.f32.mrb[0].mxu0
        %v2606 = vadd.f32 0.0, %v2605
        %v2607 = vpop.f32.mrb[0].mxu0
        %2608 = vdwg.mxu0
        %v2609 = vadd.f32 %v2455, %v2535
        %v2610 = vadd.f32 %v2456, %v2537
        %v2611 = vadd.f32 %v2457, %v2606
        %2612 = vrot.lane.b32.xlu0 %v258, 108
        %v2613 = vpop.permute.xlu0 %2612
        %2614 = vrot.lane.b32.xlu0 %v1807, 127
        %v2615 = vpop.permute.xlu0 %2614
        %2616 = vrot.lane.b32.xlu0 %v1808, 127
        %v2617 = vpop.permute.xlu0 %2616
        %2618 = vrot.lane.b32.xlu0 %v1809, 127
        %v2619 = vpop.permute.xlu0 %2618
        %v2620 = vsel %vm1087, %v2615, %v2617
        %v2621 = vsel %vm1087, %v2617, %v2619
        %v2622 = vsel %vm1087, %v2619, %v1086
        %v2623 = vsel %vm279, %v2613, 0
        %v2625 = vsel %vm282, %v2620, 0
        %v2627 = vsel %vm282, %v2621, 0
        %v2629 = vsel %vm282, %v2622, 0
        %2631 = vmatprep.subr.mxu0 %v2627
        %2632 = vmatpush1.msra.mxu0 %v2625
        %2633 = vmatprep.subr.mxu0 0.0
        %2634 = vmatpush1.msra.mxu0 0.0
        %2635 = vmatprep.subr.mxu0 0.0
        %2636 = vmatpush1.msra.mxu0 0.0
        %2637 = vmatprep.subr.mxu0 0.0
        %2638 = vmatpush1.msra.mxu0 0.0
        %2639 = vmatprep.subr.mxu0 0.0
        %2640 = vmatpush1.msra.mxu0 0.0
        %2641 = vmatprep.subr.mxu0 0.0
        %2642 = vmatpush1.msra.mxu0 0.0
        %2643 = vmatprep.subr.mxu0 0.0
        %2644 = vmatpush1.msra.mxu0 0.0
        %2645 = vmatprep.subr.mxu0 0.0
        %2646 = vmatpush1.msra.mxu0 0.0
        %2647 = vmatprep.subr.mxu0 0.0
        %2648 = vmatpush1.msra.mxu0 0.0
        %2649 = vmatprep.subr.mxu0 0.0
        %2650 = vmatpush1.msra.mxu0 0.0
        %2651 = vmatprep.subr.mxu0 0.0
        %2652 = vmatpush1.msra.mxu0 0.0
        %2653 = vmatprep.subr.mxu0 0.0
        %2654 = vmatpush1.msra.mxu0 0.0
        %2655 = vmatprep.subr.mxu0 0.0
        %2656 = vmatpush1.msra.mxu0 0.0
        %2657 = vmatprep.subr.mxu0 0.0
        %2658 = vmatpush1.msra.mxu0 0.0
        %2659 = vmatprep.subr.mxu0 0.0
        %2660 = vmatpush1.msra.mxu0 0.0
        %2661 = vmatprep.subr.mxu0 0.0
        %2662 = vmatpush1.msra.mxu0 0.0
        %2663 = vmatprep.subr.mxu0 0.0
        %2664 = vmatpush1.msra.mxu0 0.0
        %2665 = vmatprep.subr.mxu0 0.0
        %2666 = vmatpush1.msra.mxu0 0.0
        %2667 = vmatprep.subr.mxu0 0.0
        %2668 = vmatpush1.msra.mxu0 0.0
        %2669 = vmatprep.subr.mxu0 0.0
        %2670 = vmatpush1.msra.mxu0 0.0
        %2671 = vmatprep.subr.mxu0 0.0
        %2672 = vmatpush1.msra.mxu0 0.0
        %2673 = vmatprep.subr.mxu0 0.0
        %2674 = vmatpush1.msra.mxu0 0.0
        %2675 = vmatprep.subr.mxu0 0.0
        %2676 = vmatpush1.msra.mxu0 0.0
        %2677 = vmatprep.subr.mxu0 0.0
        %2678 = vmatpush1.msra.mxu0 0.0
        %2679 = vmatprep.subr.mxu0 0.0
        %2680 = vmatpush1.msra.mxu0 0.0
        %2681 = vmatprep.subr.mxu0 0.0
        %2682 = vmatpush1.msra.mxu0 0.0
        %2683 = vmatprep.subr.mxu0 0.0
        %2684 = vmatpush1.msra.mxu0 0.0
        %2685 = vmatprep.subr.mxu0 0.0
        %2686 = vmatpush1.msra.mxu0 0.0
        %2687 = vmatprep.subr.mxu0 0.0
        %2688 = vmatpush1.msra.mxu0 0.0
        %2689 = vmatprep.subr.mxu0 0.0
        %2690 = vmatpush1.msra.mxu0 0.0
        %2691 = vmatprep.subr.mxu0 0.0
        %2692 = vmatpush1.msra.mxu0 0.0
        %2693 = vmatprep.subr.mxu0 0.0
        %2694 = vmatpush1.msra.mxu0 0.0
        %2695 = vmatprep.mubr.f32.mxu0 0.0
        %2696 = vmatmul.mubr.f32.gmra.mrb[0].mxu0 %v2623
        %v2697 = vpop.f32.mrb[0].mxu0
        %v2698 = vadd.f32 0.0, %v2697
        %v2699 = vpop.f32.mrb[0].mxu0
        %v2700 = vadd.f32 0.0, %v2699
        %2701 = vdwg.mxu0
        %2702 = vmatprep.subr.mxu0 0.0
        %2703 = vmatpush1.msra.mxu0 %v2629
        %2704 = vmatprep.subr.mxu0 0.0
        %2705 = vmatpush1.msra.mxu0 0.0
        %2706 = vmatprep.subr.mxu0 0.0
        %2707 = vmatpush1.msra.mxu0 0.0
        %2708 = vmatprep.subr.mxu0 0.0
        %2709 = vmatpush1.msra.mxu0 0.0
        %2710 = vmatprep.subr.mxu0 0.0
        %2711 = vmatpush1.msra.mxu0 0.0
        %2712 = vmatprep.subr.mxu0 0.0
        %2713 = vmatpush1.msra.mxu0 0.0
        %2714 = vmatprep.subr.mxu0 0.0
        %2715 = vmatpush1.msra.mxu0 0.0
        %2716 = vmatprep.subr.mxu0 0.0
        %2717 = vmatpush1.msra.mxu0 0.0
        %2718 = vmatprep.subr.mxu0 0.0
        %2719 = vmatpush1.msra.mxu0 0.0
        %2720 = vmatprep.subr.mxu0 0.0
        %2721 = vmatpush1.msra.mxu0 0.0
        %2722 = vmatprep.subr.mxu0 0.0
        %2723 = vmatpush1.msra.mxu0 0.0
        %2724 = vmatprep.subr.mxu0 0.0
        %2725 = vmatpush1.msra.mxu0 0.0
        %2726 = vmatprep.subr.mxu0 0.0
        %2727 = vmatpush1.msra.mxu0 0.0
        %2728 = vmatprep.subr.mxu0 0.0
        %2729 = vmatpush1.msra.mxu0 0.0
        %2730 = vmatprep.subr.mxu0 0.0
        %2731 = vmatpush1.msra.mxu0 0.0
        %2732 = vmatprep.subr.mxu0 0.0
        %2733 = vmatpush1.msra.mxu0 0.0
        %2734 = vmatprep.subr.mxu0 0.0
        %2735 = vmatpush1.msra.mxu0 0.0
        %2736 = vmatprep.subr.mxu0 0.0
        %2737 = vmatpush1.msra.mxu0 0.0
        %2738 = vmatprep.subr.mxu0 0.0
        %2739 = vmatpush1.msra.mxu0 0.0
        %2740 = vmatprep.subr.mxu0 0.0
        %2741 = vmatpush1.msra.mxu0 0.0
        %2742 = vmatprep.subr.mxu0 0.0
        %2743 = vmatpush1.msra.mxu0 0.0
        %2744 = vmatprep.subr.mxu0 0.0
        %2745 = vmatpush1.msra.mxu0 0.0
        %2746 = vmatprep.subr.mxu0 0.0
        %2747 = vmatpush1.msra.mxu0 0.0
        %2748 = vmatprep.subr.mxu0 0.0
        %2749 = vmatpush1.msra.mxu0 0.0
        %2750 = vmatprep.subr.mxu0 0.0
        %2751 = vmatpush1.msra.mxu0 0.0
        %2752 = vmatprep.subr.mxu0 0.0
        %2753 = vmatpush1.msra.mxu0 0.0
        %2754 = vmatprep.subr.mxu0 0.0
        %2755 = vmatpush1.msra.mxu0 0.0
        %2756 = vmatprep.subr.mxu0 0.0
        %2757 = vmatpush1.msra.mxu0 0.0
        %2758 = vmatprep.subr.mxu0 0.0
        %2759 = vmatpush1.msra.mxu0 0.0
        %2760 = vmatprep.subr.mxu0 0.0
        %2761 = vmatpush1.msra.mxu0 0.0
        %2762 = vmatprep.subr.mxu0 0.0
        %2763 = vmatpush1.msra.mxu0 0.0
        %2764 = vmatprep.subr.mxu0 0.0
        %2765 = vmatpush1.msra.mxu0 0.0
        %2766 = vmatprep.mubr.f32.mxu0 0.0
        %2767 = vmatmul.mubr.f32.gmra.mrb[0].mxu0 %v2623
        %v2768 = vpop.f32.mrb[0].mxu0
        %v2769 = vadd.f32 0.0, %v2768
        %v2770 = vpop.f32.mrb[0].mxu0
        %2771 = vdwg.mxu0
        %v2772 = vadd.f32 %v2609, %v2698
        %v2773 = vadd.f32 %v2610, %v2700
        %v2774 = vadd.f32 %v2611, %v2769
        %2775 = vrot.lane.b32.xlu0 %v258, 104
        %v2776 = vpop.permute.xlu0 %2775
        %2777 = vrot.lane.b32.xlu0 %v1807, 111
        %v2778 = vpop.permute.xlu0 %2777
        %2779 = vrot.lane.b32.xlu0 %v1808, 111
        %v2780 = vpop.permute.xlu0 %2779
        %2781 = vrot.lane.b32.xlu0 %v1809, 111
        %v2782 = vpop.permute.xlu0 %2781
        %v2783 = vsel %vm1253, %v2778, %v2780
        %v2784 = vsel %vm1253, %v2780, %v2782
        %v2785 = vsel %vm1253, %v2782, %v1252
        %v2786 = vsel %vm279, %v2776, 0
        %v2788 = vsel %vm282, %v2783, 0
        %v2790 = vsel %vm282, %v2784, 0
        %v2792 = vsel %vm282, %v2785, 0
        %2794 = vmatprep.subr.mxu0 %v2790
        %2795 = vmatpush1.msra.mxu0 %v2788
        %2796 = vmatprep.subr.mxu0 0.0
        %2797 = vmatpush1.msra.mxu0 0.0
        %2798 = vmatprep.subr.mxu0 0.0
        %2799 = vmatpush1.msra.mxu0 0.0
        %2800 = vmatprep.subr.mxu0 0.0
        %2801 = vmatpush1.msra.mxu0 0.0
        %2802 = vmatprep.subr.mxu0 0.0
        %2803 = vmatpush1.msra.mxu0 0.0
        %2804 = vmatprep.subr.mxu0 0.0
        %2805 = vmatpush1.msra.mxu0 0.0
        %2806 = vmatprep.subr.mxu0 0.0
        %2807 = vmatpush1.msra.mxu0 0.0
        %2808 = vmatprep.subr.mxu0 0.0
        %2809 = vmatpush1.msra.mxu0 0.0
        %2810 = vmatprep.subr.mxu0 0.0
        %2811 = vmatpush1.msra.mxu0 0.0
        %2812 = vmatprep.subr.mxu0 0.0
        %2813 = vmatpush1.msra.mxu0 0.0
        %2814 = vmatprep.subr.mxu0 0.0
        %2815 = vmatpush1.msra.mxu0 0.0
        %2816 = vmatprep.subr.mxu0 0.0
        %2817 = vmatpush1.msra.mxu0 0.0
        %2818 = vmatprep.subr.mxu0 0.0
        %2819 = vmatpush1.msra.mxu0 0.0
        %2820 = vmatprep.subr.mxu0 0.0
        %2821 = vmatpush1.msra.mxu0 0.0
        %2822 = vmatprep.subr.mxu0 0.0
        %2823 = vmatpush1.msra.mxu0 0.0
        %2824 = vmatprep.subr.mxu0 0.0
        %2825 = vmatpush1.msra.mxu0 0.0
        %2826 = vmatprep.subr.mxu0 0.0
        %2827 = vmatpush1.msra.mxu0 0.0
        %2828 = vmatprep.subr.mxu0 0.0
        %2829 = vmatpush1.msra.mxu0 0.0
        %2830 = vmatprep.subr.mxu0 0.0
        %2831 = vmatpush1.msra.mxu0 0.0
        %2832 = vmatprep.subr.mxu0 0.0
        %2833 = vmatpush1.msra.mxu0 0.0
        %2834 = vmatprep.subr.mxu0 0.0
        %2835 = vmatpush1.msra.mxu0 0.0
        %2836 = vmatprep.subr.mxu0 0.0
        %2837 = vmatpush1.msra.mxu0 0.0
        %2838 = vmatprep.subr.mxu0 0.0
        %2839 = vmatpush1.msra.mxu0 0.0
        %2840 = vmatprep.subr.mxu0 0.0
        %2841 = vmatpush1.msra.mxu0 0.0
        %2842 = vmatprep.subr.mxu0 0.0
        %2843 = vmatpush1.msra.mxu0 0.0
        %2844 = vmatprep.subr.mxu0 0.0
        %2845 = vmatpush1.msra.mxu0 0.0
        %2846 = vmatprep.subr.mxu0 0.0
        %2847 = vmatpush1.msra.mxu0 0.0
        %2848 = vmatprep.subr.mxu0 0.0
        %2849 = vmatpush1.msra.mxu0 0.0
        %2850 = vmatprep.subr.mxu0 0.0
        %2851 = vmatpush1.msra.mxu0 0.0
        %2852 = vmatprep.subr.mxu0 0.0
        %2853 = vmatpush1.msra.mxu0 0.0
        %2854 = vmatprep.subr.mxu0 0.0
        %2855 = vmatpush1.msra.mxu0 0.0
        %2856 = vmatprep.subr.mxu0 0.0
        %2857 = vmatpush1.msra.mxu0 0.0
        %2858 = vmatprep.mubr.f32.mxu0 0.0
        %2859 = vmatmul.mubr.f32.gmra.mrb[0].mxu0 %v2786
        %v2860 = vpop.f32.mrb[0].mxu0
        %v2861 = vadd.f32 0.0, %v2860
        %v2862 = vpop.f32.mrb[0].mxu0
        %v2863 = vadd.f32 0.0, %v2862
        %2864 = vdwg.mxu0
        %2865 = vmatprep.subr.mxu0 0.0
        %2866 = vmatpush1.msra.mxu0 %v2792
        %2867 = vmatprep.subr.mxu0 0.0
        %2868 = vmatpush1.msra.mxu0 0.0
        %2869 = vmatprep.subr.mxu0 0.0
        %2870 = vmatpush1.msra.mxu0 0.0
        %2871 = vmatprep.subr.mxu0 0.0
        %2872 = vmatpush1.msra.mxu0 0.0
        %2873 = vmatprep.subr.mxu0 0.0
        %2874 = vmatpush1.msra.mxu0 0.0
        %2875 = vmatprep.subr.mxu0 0.0
        %2876 = vmatpush1.msra.mxu0 0.0
        %2877 = vmatprep.subr.mxu0 0.0
        %2878 = vmatpush1.msra.mxu0 0.0
        %2879 = vmatprep.subr.mxu0 0.0
        %2880 = vmatpush1.msra.mxu0 0.0
        %2881 = vmatprep.subr.mxu0 0.0
        %2882 = vmatpush1.msra.mxu0 0.0
        %2883 = vmatprep.subr.mxu0 0.0
        %2884 = vmatpush1.msra.mxu0 0.0
        %2885 = vmatprep.subr.mxu0 0.0
        %2886 = vmatpush1.msra.mxu0 0.0
        %2887 = vmatprep.subr.mxu0 0.0
        %2888 = vmatpush1.msra.mxu0 0.0
        %2889 = vmatprep.subr.mxu0 0.0
        %2890 = vmatpush1.msra.mxu0 0.0
        %2891 = vmatprep.subr.mxu0 0.0
        %2892 = vmatpush1.msra.mxu0 0.0
        %2893 = vmatprep.subr.mxu0 0.0
        %2894 = vmatpush1.msra.mxu0 0.0
        %2895 = vmatprep.subr.mxu0 0.0
        %2896 = vmatpush1.msra.mxu0 0.0
        %2897 = vmatprep.subr.mxu0 0.0
        %2898 = vmatpush1.msra.mxu0 0.0
        %2899 = vmatprep.subr.mxu0 0.0
        %2900 = vmatpush1.msra.mxu0 0.0
        %2901 = vmatprep.subr.mxu0 0.0
        %2902 = vmatpush1.msra.mxu0 0.0
        %2903 = vmatprep.subr.mxu0 0.0
        %2904 = vmatpush1.msra.mxu0 0.0
        %2905 = vmatprep.subr.mxu0 0.0
        %2906 = vmatpush1.msra.mxu0 0.0
        %2907 = vmatprep.subr.mxu0 0.0
        %2908 = vmatpush1.msra.mxu0 0.0
        %2909 = vmatprep.subr.mxu0 0.0
        %2910 = vmatpush1.msra.mxu0 0.0
        %2911 = vmatprep.subr.mxu0 0.0
        %2912 = vmatpush1.msra.mxu0 0.0
        %2913 = vmatprep.subr.mxu0 0.0
        %2914 = vmatpush1.msra.mxu0 0.0
        %2915 = vmatprep.subr.mxu0 0.0
        %2916 = vmatpush1.msra.mxu0 0.0
        %2917 = vmatprep.subr.mxu0 0.0
        %2918 = vmatpush1.msra.mxu0 0.0
        %2919 = vmatprep.subr.mxu0 0.0
        %2920 = vmatpush1.msra.mxu0 0.0
        %2921 = vmatprep.subr.mxu0 0.0
        %2922 = vmatpush1.msra.mxu0 0.0
        %2923 = vmatprep.subr.mxu0 0.0
        %2924 = vmatpush1.msra.mxu0 0.0
        %2925 = vmatprep.subr.mxu0 0.0
        %2926 = vmatpush1.msra.mxu0 0.0
        %2927 = vmatprep.subr.mxu0 0.0
        %2928 = vmatpush1.msra.mxu0 0.0
        %2929 = vmatprep.mubr.f32.mxu0 0.0
        %2930 = vmatmul.mubr.f32.gmra.mrb[0].mxu0 %v2786
        %v2931 = vpop.f32.mrb[0].mxu0
        %v2932 = vadd.f32 0.0, %v2931
        %v2933 = vpop.f32.mrb[0].mxu0
        %2934 = vdwg.mxu0
        %v2935 = vadd.f32 %v2772, %v2861
        %v2936 = vadd.f32 %v2773, %v2863
        %v2937 = vadd.f32 %v2774, %v2932
        %2938 = vrot.lane.b32.xlu0 %v258, 100
        %v2939 = vpop.permute.xlu0 %2938
        %2940 = vrot.lane.b32.xlu0 %v1807, 110
        %v2941 = vpop.permute.xlu0 %2940
        %2942 = vrot.lane.b32.xlu0 %v1808, 110
        %v2943 = vpop.permute.xlu0 %2942
        %2944 = vrot.lane.b32.xlu0 %v1809, 110
        %v2945 = vpop.permute.xlu0 %2944
        %v2946 = vsel %vm1419, %v2941, %v2943
        %v2947 = vsel %vm1419, %v2943, %v2945
        %v2948 = vsel %vm1419, %v2945, %v1418
        %v2949 = vsel %vm279, %v2939, 0
        %v2951 = vsel %vm282, %v2946, 0
        %v2953 = vsel %vm282, %v2947, 0
        %v2955 = vsel %vm282, %v2948, 0
        %2957 = vmatprep.subr.mxu0 %v2953
        %2958 = vmatpush1.msra.mxu0 %v2951
        %2959 = vmatprep.subr.mxu0 0.0
        %2960 = vmatpush1.msra.mxu0 0.0
        %2961 = vmatprep.subr.mxu0 0.0
        %2962 = vmatpush1.msra.mxu0 0.0
        %2963 = vmatprep.subr.mxu0 0.0
        %2964 = vmatpush1.msra.mxu0 0.0
        %2965 = vmatprep.subr.mxu0 0.0
        %2966 = vmatpush1.msra.mxu0 0.0
        %2967 = vmatprep.subr.mxu0 0.0
        %2968 = vmatpush1.msra.mxu0 0.0
        %2969 = vmatprep.subr.mxu0 0.0
        %2970 = vmatpush1.msra.mxu0 0.0
        %2971 = vmatprep.subr.mxu0 0.0
        %2972 = vmatpush1.msra.mxu0 0.0
        %2973 = vmatprep.subr.mxu0 0.0
        %2974 = vmatpush1.msra.mxu0 0.0
        %2975 = vmatprep.subr.mxu0 0.0
        %2976 = vmatpush1.msra.mxu0 0.0
        %2977 = vmatprep.subr.mxu0 0.0
        %2978 = vmatpush1.msra.mxu0 0.0
        %2979 = vmatprep.subr.mxu0 0.0
        %2980 = vmatpush1.msra.mxu0 0.0
        %2981 = vmatprep.subr.mxu0 0.0
        %2982 = vmatpush1.msra.mxu0 0.0
        %2983 = vmatprep.subr.mxu0 0.0
        %2984 = vmatpush1.msra.mxu0 0.0
        %2985 = vmatprep.subr.mxu0 0.0
        %2986 = vmatpush1.msra.mxu0 0.0
        %2987 = vmatprep.subr.mxu0 0.0
        %2988 = vmatpush1.msra.mxu0 0.0
        %2989 = vmatprep.subr.mxu0 0.0
        %2990 = vmatpush1.msra.mxu0 0.0
        %2991 = vmatprep.subr.mxu0 0.0
        %2992 = vmatpush1.msra.mxu0 0.0
        %2993 = vmatprep.subr.mxu0 0.0
        %2994 = vmatpush1.msra.mxu0 0.0
        %2995 = vmatprep.subr.mxu0 0.0
        %2996 = vmatpush1.msra.mxu0 0.0
        %2997 = vmatprep.subr.mxu0 0.0
        %2998 = vmatpush1.msra.mxu0 0.0
        %2999 = vmatprep.subr.mxu0 0.0
        %3000 = vmatpush1.msra.mxu0 0.0
        %3001 = vmatprep.subr.mxu0 0.0
        %3002 = vmatpush1.msra.mxu0 0.0
        %3003 = vmatprep.subr.mxu0 0.0
        %3004 = vmatpush1.msra.mxu0 0.0
        %3005 = vmatprep.subr.mxu0 0.0
        %3006 = vmatpush1.msra.mxu0 0.0
        %3007 = vmatprep.subr.mxu0 0.0
        %3008 = vmatpush1.msra.mxu0 0.0
        %3009 = vmatprep.subr.mxu0 0.0
        %3010 = vmatpush1.msra.mxu0 0.0
        %3011 = vmatprep.subr.mxu0 0.0
        %3012 = vmatpush1.msra.mxu0 0.0
        %3013 = vmatprep.subr.mxu0 0.0
        %3014 = vmatpush1.msra.mxu0 0.0
        %3015 = vmatprep.subr.mxu0 0.0
        %3016 = vmatpush1.msra.mxu0 0.0
        %3017 = vmatprep.subr.mxu0 0.0
        %3018 = vmatpush1.msra.mxu0 0.0
        %3019 = vmatprep.subr.mxu0 0.0
        %3020 = vmatpush1.msra.mxu0 0.0
        %3021 = vmatprep.mubr.f32.mxu0 0.0
        %3022 = vmatmul.mubr.f32.gmra.mrb[0].mxu0 %v2949
        %v3023 = vpop.f32.mrb[0].mxu0
        %v3024 = vadd.f32 0.0, %v3023
        %v3025 = vpop.f32.mrb[0].mxu0
        %v3026 = vadd.f32 0.0, %v3025
        %3027 = vdwg.mxu0
        %3028 = vmatprep.subr.mxu0 0.0
        %3029 = vmatpush1.msra.mxu0 %v2955
        %3030 = vmatprep.subr.mxu0 0.0
        %3031 = vmatpush1.msra.mxu0 0.0
        %3032 = vmatprep.subr.mxu0 0.0
        %3033 = vmatpush1.msra.mxu0 0.0
        %3034 = vmatprep.subr.mxu0 0.0
        %3035 = vmatpush1.msra.mxu0 0.0
        %3036 = vmatprep.subr.mxu0 0.0
        %3037 = vmatpush1.msra.mxu0 0.0
        %3038 = vmatprep.subr.mxu0 0.0
        %3039 = vmatpush1.msra.mxu0 0.0
        %3040 = vmatprep.subr.mxu0 0.0
        %3041 = vmatpush1.msra.mxu0 0.0
        %3042 = vmatprep.subr.mxu0 0.0
        %3043 = vmatpush1.msra.mxu0 0.0
        %3044 = vmatprep.subr.mxu0 0.0
        %3045 = vmatpush1.msra.mxu0 0.0
        %3046 = vmatprep.subr.mxu0 0.0
        %3047 = vmatpush1.msra.mxu0 0.0
        %3048 = vmatprep.subr.mxu0 0.0
        %3049 = vmatpush1.msra.mxu0 0.0
        %3050 = vmatprep.subr.mxu0 0.0
        %3051 = vmatpush1.msra.mxu0 0.0
        %3052 = vmatprep.subr.mxu0 0.0
        %3053 = vmatpush1.msra.mxu0 0.0
        %3054 = vmatprep.subr.mxu0 0.0
        %3055 = vmatpush1.msra.mxu0 0.0
        %3056 = vmatprep.subr.mxu0 0.0
        %3057 = vmatpush1.msra.mxu0 0.0
        %3058 = vmatprep.subr.mxu0 0.0
        %3059 = vmatpush1.msra.mxu0 0.0
        %3060 = vmatprep.subr.mxu0 0.0
        %3061 = vmatpush1.msra.mxu0 0.0
        %3062 = vmatprep.subr.mxu0 0.0
        %3063 = vmatpush1.msra.mxu0 0.0
        %3064 = vmatprep.subr.mxu0 0.0
        %3065 = vmatpush1.msra.mxu0 0.0
        %3066 = vmatprep.subr.mxu0 0.0
        %3067 = vmatpush1.msra.mxu0 0.0
        %3068 = vmatprep.subr.mxu0 0.0
        %3069 = vmatpush1.msra.mxu0 0.0
        %3070 = vmatprep.subr.mxu0 0.0
        %3071 = vmatpush1.msra.mxu0 0.0
        %3072 = vmatprep.subr.mxu0 0.0
        %3073 = vmatpush1.msra.mxu0 0.0
        %3074 = vmatprep.subr.mxu0 0.0
        %3075 = vmatpush1.msra.mxu0 0.0
        %3076 = vmatprep.subr.mxu0 0.0
        %3077 = vmatpush1.msra.mxu0 0.0
        %3078 = vmatprep.subr.mxu0 0.0
        %3079 = vmatpush1.msra.mxu0 0.0
        %3080 = vmatprep.subr.mxu0 0.0
        %3081 = vmatpush1.msra.mxu0 0.0
        %3082 = vmatprep.subr.mxu0 0.0
        %3083 = vmatpush1.msra.mxu0 0.0
        %3084 = vmatprep.subr.mxu0 0.0
        %3085 = vmatpush1.msra.mxu0 0.0
        %3086 = vmatprep.subr.mxu0 0.0
        %3087 = vmatpush1.msra.mxu0 0.0
        %3088 = vmatprep.subr.mxu0 0.0
        %3089 = vmatpush1.msra.mxu0 0.0
        %3090 = vmatprep.subr.mxu0 0.0
        %3091 = vmatpush1.msra.mxu0 0.0
        %3092 = vmatprep.mubr.f32.mxu0 0.0
        %3093 = vmatmul.mubr.f32.gmra.mrb[0].mxu0 %v2949
        %v3094 = vpop.f32.mrb[0].mxu0
        %v3095 = vadd.f32 0.0, %v3094
        %v3096 = vpop.f32.mrb[0].mxu0
        %3097 = vdwg.mxu0
        %v3098 = vadd.f32 %v2935, %v3024
        %v3099 = vadd.f32 %v2936, %v3026
        %v3100 = vadd.f32 %v2937, %v3095
        %3101 = vrot.lane.b32.xlu0 %v258, 96
        %v3102 = vpop.permute.xlu0 %3101
        %3103 = vrot.lane.b32.xlu0 %v1807, 109
        %v3104 = vpop.permute.xlu0 %3103
        %3105 = vrot.lane.b32.xlu0 %v1808, 109
        %v3106 = vpop.permute.xlu0 %3105
        %3107 = vrot.lane.b32.xlu0 %v1809, 109
        %v3108 = vpop.permute.xlu0 %3107
        %v3109 = vsel %vm1585, %v3104, %v3106
        %v3110 = vsel %vm1585, %v3106, %v3108
        %v3111 = vsel %vm1585, %v3108, %v1584
        %v3112 = vsel %vm279, %v3102, 0
        %v3114 = vsel %vm282, %v3109, 0
        %v3116 = vsel %vm282, %v3110, 0
        %v3118 = vsel %vm282, %v3111, 0
        %3120 = vmatprep.subr.mxu0 %v3116
        %3121 = vmatpush1.msra.mxu0 %v3114
        %3122 = vmatprep.subr.mxu0 0.0
        %3123 = vmatpush1.msra.mxu0 0.0
        %3124 = vmatprep.subr.mxu0 0.0
        %3125 = vmatpush1.msra.mxu0 0.0
        %3126 = vmatprep.subr.mxu0 0.0
        %3127 = vmatpush1.msra.mxu0 0.0
        %3128 = vmatprep.subr.mxu0 0.0
        %3129 = vmatpush1.msra.mxu0 0.0
        %3130 = vmatprep.subr.mxu0 0.0
        %3131 = vmatpush1.msra.mxu0 0.0
        %3132 = vmatprep.subr.mxu0 0.0
        %3133 = vmatpush1.msra.mxu0 0.0
        %3134 = vmatprep.subr.mxu0 0.0
        %3135 = vmatpush1.msra.mxu0 0.0
        %3136 = vmatprep.subr.mxu0 0.0
        %3137 = vmatpush1.msra.mxu0 0.0
        %3138 = vmatprep.subr.mxu0 0.0
        %3139 = vmatpush1.msra.mxu0 0.0
        %3140 = vmatprep.subr.mxu0 0.0
        %3141 = vmatpush1.msra.mxu0 0.0
        %3142 = vmatprep.subr.mxu0 0.0
        %3143 = vmatpush1.msra.mxu0 0.0
        %3144 = vmatprep.subr.mxu0 0.0
        %3145 = vmatpush1.msra.mxu0 0.0
        %3146 = vmatprep.subr.mxu0 0.0
        %3147 = vmatpush1.msra.mxu0 0.0
        %3148 = vmatprep.subr.mxu0 0.0
        %3149 = vmatpush1.msra.mxu0 0.0
        %3150 = vmatprep.subr.mxu0 0.0
        %3151 = vmatpush1.msra.mxu0 0.0
        %3152 = vmatprep.subr.mxu0 0.0
        %3153 = vmatpush1.msra.mxu0 0.0
        %3154 = vmatprep.subr.mxu0 0.0
        %3155 = vmatpush1.msra.mxu0 0.0
        %3156 = vmatprep.subr.mxu0 0.0
        %3157 = vmatpush1.msra.mxu0 0.0
        %3158 = vmatprep.subr.mxu0 0.0
        %3159 = vmatpush1.msra.mxu0 0.0
        %3160 = vmatprep.subr.mxu0 0.0
        %3161 = vmatpush1.msra.mxu0 0.0
        %3162 = vmatprep.subr.mxu0 0.0
        %3163 = vmatpush1.msra.mxu0 0.0
        %3164 = vmatprep.subr.mxu0 0.0
        %3165 = vmatpush1.msra.mxu0 0.0
        %3166 = vmatprep.subr.mxu0 0.0
        %3167 = vmatpush1.msra.mxu0 0.0
        %3168 = vmatprep.subr.mxu0 0.0
        %3169 = vmatpush1.msra.mxu0 0.0
        %3170 = vmatprep.subr.mxu0 0.0
        %3171 = vmatpush1.msra.mxu0 0.0
        %3172 = vmatprep.subr.mxu0 0.0
        %3173 = vmatpush1.msra.mxu0 0.0
        %3174 = vmatprep.subr.mxu0 0.0
        %3175 = vmatpush1.msra.mxu0 0.0
        %3176 = vmatprep.subr.mxu0 0.0
        %3177 = vmatpush1.msra.mxu0 0.0
        %3178 = vmatprep.subr.mxu0 0.0
        %3179 = vmatpush1.msra.mxu0 0.0
        %3180 = vmatprep.subr.mxu0 0.0
        %3181 = vmatpush1.msra.mxu0 0.0
        %3182 = vmatprep.subr.mxu0 0.0
        %3183 = vmatpush1.msra.mxu0 0.0
        %3184 = vmatprep.mubr.f32.mxu0 0.0
        %3185 = vmatmul.mubr.f32.gmra.mrb[0].mxu0 %v3112
        %v3186 = vpop.f32.mrb[0].mxu0
        %v3187 = vadd.f32 0.0, %v3186
        %v3188 = vpop.f32.mrb[0].mxu0
        %v3189 = vadd.f32 0.0, %v3188
        %3190 = vdwg.mxu0
        %3191 = vmatprep.subr.mxu0 0.0
        %3192 = vmatpush1.msra.mxu0 %v3118
        %3193 = vmatprep.subr.mxu0 0.0
        %3194 = vmatpush1.msra.mxu0 0.0
        %3195 = vmatprep.subr.mxu0 0.0
        %3196 = vmatpush1.msra.mxu0 0.0
        %3197 = vmatprep.subr.mxu0 0.0
        %3198 = vmatpush1.msra.mxu0 0.0
        %3199 = vmatprep.subr.mxu0 0.0
        %3200 = vmatpush1.msra.mxu0 0.0
        %3201 = vmatprep.subr.mxu0 0.0
        %3202 = vmatpush1.msra.mxu0 0.0
        %3203 = vmatprep.subr.mxu0 0.0
        %3204 = vmatpush1.msra.mxu0 0.0
        %3205 = vmatprep.subr.mxu0 0.0
        %3206 = vmatpush1.msra.mxu0 0.0
        %3207 = vmatprep.subr.mxu0 0.0
        %3208 = vmatpush1.msra.mxu0 0.0
        %3209 = vmatprep.subr.mxu0 0.0
        %3210 = vmatpush1.msra.mxu0 0.0
        %3211 = vmatprep.subr.mxu0 0.0
        %3212 = vmatpush1.msra.mxu0 0.0
        %3213 = vmatprep.subr.mxu0 0.0
        %3214 = vmatpush1.msra.mxu0 0.0
        %3215 = vmatprep.subr.mxu0 0.0
        %3216 = vmatpush1.msra.mxu0 0.0
        %3217 = vmatprep.subr.mxu0 0.0
        %3218 = vmatpush1.msra.mxu0 0.0
        %3219 = vmatprep.subr.mxu0 0.0
        %3220 = vmatpush1.msra.mxu0 0.0
        %3221 = vmatprep.subr.mxu0 0.0
        %3222 = vmatpush1.msra.mxu0 0.0
        %3223 = vmatprep.subr.mxu0 0.0
        %3224 = vmatpush1.msra.mxu0 0.0
        %3225 = vmatprep.subr.mxu0 0.0
        %3226 = vmatpush1.msra.mxu0 0.0
        %3227 = vmatprep.subr.mxu0 0.0
        %3228 = vmatpush1.msra.mxu0 0.0
        %3229 = vmatprep.subr.mxu0 0.0
        %3230 = vmatpush1.msra.mxu0 0.0
        %3231 = vmatprep.subr.mxu0 0.0
        %3232 = vmatpush1.msra.mxu0 0.0
        %3233 = vmatprep.subr.mxu0 0.0
        %3234 = vmatpush1.msra.mxu0 0.0
        %3235 = vmatprep.subr.mxu0 0.0
        %3236 = vmatpush1.msra.mxu0 0.0
        %3237 = vmatprep.subr.mxu0 0.0
        %3238 = vmatpush1.msra.mxu0 0.0
        %3239 = vmatprep.subr.mxu0 0.0
        %3240 = vmatpush1.msra.mxu0 0.0
        %3241 = vmatprep.subr.mxu0 0.0
        %3242 = vmatpush1.msra.mxu0 0.0
        %3243 = vmatprep.subr.mxu0 0.0
        %3244 = vmatpush1.msra.mxu0 0.0
        %3245 = vmatprep.subr.mxu0 0.0
        %3246 = vmatpush1.msra.mxu0 0.0
        %3247 = vmatprep.subr.mxu0 0.0
        %3248 = vmatpush1.msra.mxu0 0.0
        %3249 = vmatprep.subr.mxu0 0.0
        %3250 = vmatpush1.msra.mxu0 0.0
        %3251 = vmatprep.subr.mxu0 0.0
        %3252 = vmatpush1.msra.mxu0 0.0
        %3253 = vmatprep.subr.mxu0 0.0
        %3254 = vmatpush1.msra.mxu0 0.0
        %3255 = vmatprep.mubr.f32.mxu0 0.0
        %3256 = vmatmul.mubr.f32.gmra.mrb[0].mxu0 %v3112
        %v3257 = vpop.f32.mrb[0].mxu0
        %v3258 = vadd.f32 0.0, %v3257
        %v3259 = vpop.f32.mrb[0].mxu0
        %3260 = vdwg.mxu0
        %v3261 = vadd.f32 %v3098, %v3187
        %v3262 = vadd.f32 %v3099, %v3189
        %v3263 = vadd.f32 %v3100, %v3258
        %v3264 = vmul.f32 %v3261, %v1745
        %v3265 = vmul.f32 %v3262, %v1749
        %v3266 = vmul.f32 %v3263, %v1753
        %v3267 = vsel %vm282, %v3264, 0.0
        %v3268 = vsel %vm282, %v3265, 0.0
        %v3269 = vadd.f32 %v3267, %v3268
        %v3270 = vsel %vm282, %v3266, 0.0
        %v3271 = vadd.f32 %v3269, %v3270
        %3272 = vadd.xlane.f32.xlu0 %v3271
        %v3273 = vpop.xlane.xlu0 %3272
        %v3274 = vmul.f32 %v3264, %v3264
        %v3275 = vmul.f32 %v3265, %v3265
        %v3276 = vmul.f32 %v3266, %v3266
        %v3277 = vsel %vm282, %v3274, 0.0
        %v3278 = vsel %vm282, %v3275, 0.0
        %v3279 = vadd.f32 %v3277, %v3278
        %v3280 = vsel %vm282, %v3276, 0.0
        %v3281 = vadd.f32 %v3279, %v3280
        %3282 = vadd.xlane.f32.xlu0 %v3281
        %v3283 = vpop.xlane.xlu0 %3282
        %v3284 = vmul.f32 %v3273, 0.00390625
        %v3285 = vmul.f32 %v3283, 0.00390625
        %v3286 = vmul.f32 %v3284, %v3284
        %v3287 = vsub.f32 %v3285, %v3286
        %v3288 = vsub.f32 %v3261, %v3284
        %v3289 = vsub.f32 %v3262, %v3284
        %v3290 = vsub.f32 %v3263, %v3284
        %v3291 = vadd.f32 %v3287, 1e-05
        %v3292 = vrsqrt.pop %v3291
        %v3293 = vmul.f32 %v3288, %v3292
        %v3294 = vmul.f32 %v3289, %v3292
        %v3295 = vmul.f32 %v3290, %v3292
        %3296 = vset.pattern.permute.xlu0 2
        %3297 = vperm.xlu0 %3296, %v259
        %v3298 = vpop.permute.xlu0 %3297
        %v3300 = vmul.f32 %v3293, %v3298
        %v3301 = vmul.f32 %v3294, %v3298
        %v3302 = vmul.f32 %v3295, %v3298
        %3303 = vset.pattern.permute.xlu0 3
        %3304 = vperm.xlu0 %3303, %v259
        %v3305 = vpop.permute.xlu0 %3304
        %v3307 = vadd.f32 %v3300, %v3305
        %v3308 = vadd.f32 %v3301, %v3305
        %v3309 = vadd.f32 %v3302, %v3305
        %v3311 = vadd.f32 %v3307, %v254
        %v3312 = vadd.f32 %v3308, %v262
        %v3313 = vadd.f32 %v3309, %v255
        %v3316 = vcombine.low %v3311, %v3312
        %3318 = vst [vmem:[%s253] sm:$0xff] %v3316
        %3319 = vst [vmem:[%s253 + $0x8] sm:$0xf] %v3313
        %s3320 = sand.u32 %s141, 1
        %s3321 = scalar_lea.sflag [#allocation4], %s3320
        %s3322 = sand.u32 %s141, 1
        %s3323 = smul.addr %s3322, 12
        %s3324 = scalar_lea.vmem [#allocation7], %s3323
        // Predicated region
        $region49: #{tpu_custom_call.1} parent=39 // pred_check
          %p3325 = pneg %p151
        $region50: #{tpu_custom_call.1} parent=39 // pred_check_branch
          %3327 = sbr.rel (%p3325) target = $region52
        $region51: #{tpu_custom_call.1} parent=39 // pred_region
          %s3329 = ssub.s32 192, 192
          %3330 = vsyncadd %s3321, %s3329
          %s3331 = smul.addr %s23, 3
          %s3332 = smul.addr %s3331, 64
          %s3333 = scalar_lea.hbm %s5, %s3332
          %s3335 = sshll.u32 %s3324, 4
          %s3336 = int_to_ptr.vmem [resolvable:$true] %s3335
          %3338 = dma.vmem_to_hbm [thread:$0]  %s3336, 192, %s3333, %s3321
        $region52: #{tpu_custom_call.1} parent=39 // pred_fallthru
          _
      $region40: #{tpu_custom_call.1} parent=5 // pred_fallthru
        _
      %p3339 = scmp.le.s32.totalorder 2, %s18
      // Predicated region
      $region53: #{tpu_custom_call.1} parent=5 // pred_check
        %p3340 = pneg %p3339
      $region54: #{tpu_custom_call.1} parent=5 // pred_check_branch
        %3342 = sbr.rel (%p3340) target = $region56
      $region55: #{tpu_custom_call.1} parent=5 // pred_region
        %s3343 = ssub.s32 %s18, 2
        // Predicated region
        $region57: #{tpu_custom_call.1} parent=55 // pred_check
          %p3344 = pneg %p157
        $region58: #{tpu_custom_call.1} parent=55 // pred_check_branch
          %3346 = sbr.rel (%p3344) target = $region60
        $region59: #{tpu_custom_call.1} parent=55 // pred_region
          %s3347 = sand.u32 %s142, 1
          %s3348 = scalar_lea.sflag [#allocation4], %s3347
          %s3349 = sand.u32 %s142, 1
          %s3350 = smul.addr %s3349, 12
          %s3351 = scalar_lea.vmem [#allocation7], %s3350
          %3352 = dma.done %s3348, 192
        $region60: #{tpu_custom_call.1} parent=55 // pred_fallthru
          _
      $region56: #{tpu_custom_call.1} parent=5 // pred_fallthru
        _
    $region6: #{tpu_custom_call.1} parent=1 // loop_footer
      %s22 = sadd.s32 1, %s18
    $region7: #{tpu_custom_call.1} parent=1 // loop_footer_branch
      %17 = sbr.rel target = $region3
    $region8: #{tpu_custom_call.1} parent=1 // loop_exit
      _
    %3353 = vsyncpa [#allocation3], 1
    %s3354 = scalar_lea.sflag [#allocation3], 1
    %3355 = vsyncpa %s3354, 1
    %3356 = vsyncpa [#allocation6], 1
    %3357 = vsyncpa [#allocation4], 1
    %s3358 = scalar_lea.sflag [#allocation4], 1
    %3359 = vsyncpa %s3358, 1

</llo_original>
